<compile_context>
chip_gen: v6e
topology: v6e:2x2x1
jax: 0.10.0
libtpu: 0.0.40
codegen_flags: <defaults>
</compile_context>

<pallas_src>
import functools

import numpy as np
import jax
import jax.numpy as jnp
from jax.experimental import pallas as pl
from jax.experimental.pallas import tpu as pltpu


LANE = 128             # TPU lane width; feature dim is zero-padded to this.
DEFAULT_BLOCK_B = 32   # sequences per grid step (M=256, out lanes=128 at T=4).
                       # Prefer 16 on v5e (M=128 matches the 4x128x128 MXU).


# ----------------------------- fused Pallas kernel ---------------------------

def ucdm_fused_kernel(xf_ref, cxf_ref, w1_ref, b1_ref, w2_ref, b2_ref,
                      mpre_ref, mpost_ref, pool_ref, exp_ref,
                      u_ref, tl_ref, ts_ref, o_ref, *, d_orig):
    """One batch block of block_b sequences.

    xf_ref / cxf_ref : (M,  Dp)  item(+pos) / cluster item(+pos) embeds, M=block_b*L
    w*_ref           : (Dp, Dp)  linear weight, already transposed (W^T)
    b*_ref           : (1,  Dp)  linear bias
    mpre_ref         : (M,  M)   1.0 off-diagonal, 0.0 on diagonal
    mpost_ref        : (M,  M)   1.0 within-sequence, 0.0 cross-sequence
    pool_ref         : (Bt, M)   per-sequence mean pooling matrix (1/L entries)
    exp_ref          : (MT, Bt)  row-expansion matrix (repeat each row T times)
    u_ref            : (Bt, Dp)  user embedding
    tl_ref / ts_ref  : (MT, Dp)  long / short target embeddings (flattened B*T)
    o_ref            : (1,  MT)  y_pred block (lane-dense)
    """
    Dp = xf_ref.shape[1]
    inv_sqrt_d = 1.0 / float(np.sqrt(d_orig))   # scale uses the ORIGINAL dim

    mpre = mpre_ref[...]
    mpost = mpost_ref[...]
    pool = pool_ref[...]
    expand = exp_ref[...]

    def att_block(xf, w, b):
        # Q == K in the reference (same linear, same input).
        q = jnp.maximum(
            jnp.dot(xf, w, preferred_element_type=jnp.float32) + b, 0.0)   # (M,Dp)
        aff = jax.lax.dot_general(
            q, q, (((1,), (1,)), ((), ())),
            preferred_element_type=jnp.float32) * inv_sqrt_d               # (M,M)
        # diag -> 0 before sigmoid (sigmoid(0)=0.5, as in masked_fill + sigmoid),
        # cross-sequence entries killed after sigmoid.
        s = jax.nn.sigmoid(aff * mpre) * mpost                             # (M,M)
        # Reassociated: (pool @ S) @ x  ==  mean_l (S @ x)  per sequence.
        pooled = jnp.dot(pool, s, preferred_element_type=jnp.float32)      # (Bt,M)
        return jnp.dot(pooled, xf, preferred_element_type=jnp.float32)     # (Bt,Dp)

    attn = att_block(xf_ref[...], w1_ref[...], b1_ref[...])    # (Bt, Dp)
    clus = att_block(cxf_ref[...], w2_ref[...], b2_ref[...])   # (Bt, Dp)

    # Broadcast (Bt, Dp) -> (MT, Dp) with a tiny 0/1 expansion matmul.
    u_exp = jnp.dot(expand, u_ref[...], preferred_element_type=jnp.float32)
    at_exp = jnp.dot(expand, attn, preferred_element_type=jnp.float32)
    cl_exp = jnp.dot(expand, clus, preferred_element_type=jnp.float32)

    tl = tl_ref[...]
    ts = ts_ref[...]
    ones_row = jnp.ones((1, Dp), jnp.float32)

    def rowdist(a, t):
        # ||a_r - t_r|| produced directly as a (1, MT) lane-dense row.
        d = a - t
        d2 = jax.lax.dot_general(ones_row, d * d, (((1,), (1,)), ((), ())),
                                 preferred_element_type=jnp.float32)        # (1,MT)
        return jnp.sqrt(d2)

    o_ref[...] = (0.1 * rowdist(u_exp, tl)
                  + 0.8 * rowdist(at_exp, ts)
                  + 0.1 * rowdist(cl_exp, ts))


# ----------------------------- pallas_call wrapper ----------------------------

def ucdm_fused(x, cx, w1t, b1, w2t, b2, u, tl, ts, *,
               d_orig, block_b=DEFAULT_BLOCK_B):
    """x/cx: (B, L, Dp) ; w*t: (Dp, Dp) ; b*: (1, Dp) ; u: (B, Dp) ;
    tl/ts: (B, T, Dp)  ->  y_pred (B, T)."""
    B, L, Dp = x.shape
    T = tl.shape[1]
    assert block_b % 8 == 0, "block_b must be a multiple of 8"

    nblk = int(pl.cdiv(B, block_b))
    Bp = nblk * block_b
    pad = Bp - B
    if pad:
        padb = lambda a: jnp.pad(a, [(0, pad)] + [(0, 0)] * (a.ndim - 1))
        x, cx, u, tl, ts = (padb(a) for a in (x, cx, u, tl, ts))

    M = block_b * L        # flattened sequence rows per block
    MT = block_b * T       # flattened targets per block (output lanes)

    # Lane-dense 2-D tiles for every operand.
    xf = x.reshape(Bp * L, Dp).astype(jnp.float32)
    cxf = cx.reshape(Bp * L, Dp).astype(jnp.float32)
    tlf = tl.reshape(Bp * T, Dp).astype(jnp.float32)
    tsf = ts.reshape(Bp * T, Dp).astype(jnp.float32)

    # Constant tensors hoisted out of the kernel (constant index_map -> DMA'd
    # once and stay resident across the whole grid).
    idx = np.arange(M)
    seq_of = idx // L
    mask_pre = jnp.asarray((idx[:, None] != idx[None, :]).astype(np.float32))
    mask_post = jnp.asarray((seq_of[:, None] == seq_of[None, :]).astype(np.float32))
    pool = jnp.asarray(
        np.where(seq_of[None, :] == np.arange(block_b)[:, None],
                 np.float32(1.0 / L), np.float32(0.0)).astype(np.float32))
    expand = jnp.asarray(
        (np.arange(MT)[:, None] // T == np.arange(block_b)[None, :])
        .astype(np.float32))

    kernel = functools.partial(ucdm_fused_kernel, d_orig=d_orig)
    out = pl.pallas_call(
        kernel,
        out_shape=jax.ShapeDtypeStruct((nblk, MT), jnp.float32),
        grid=(nblk,),
        in_specs=[
            pl.BlockSpec((M, Dp), lambda i: (i, 0)),            # xf
            pl.BlockSpec((M, Dp), lambda i: (i, 0)),            # cxf
            pl.BlockSpec((Dp, Dp), lambda i: (0, 0)),           # W1^T
            pl.BlockSpec((1, Dp), lambda i: (0, 0)),            # b1
            pl.BlockSpec((Dp, Dp), lambda i: (0, 0)),           # W2^T
            pl.BlockSpec((1, Dp), lambda i: (0, 0)),            # b2
            pl.BlockSpec((M, M), lambda i: (0, 0)),             # diag mask
            pl.BlockSpec((M, M), lambda i: (0, 0)),             # same-seq mask
            pl.BlockSpec((block_b, M), lambda i: (0, 0)),       # pooling matrix
            pl.BlockSpec((MT, block_b), lambda i: (0, 0)),      # expansion matrix
            pl.BlockSpec((block_b, Dp), lambda i: (i, 0)),      # user emb
            pl.BlockSpec((MT, Dp), lambda i: (i, 0)),           # tgt long (flat)
            pl.BlockSpec((MT, Dp), lambda i: (i, 0)),           # tgt short (flat)
        ],
        out_specs=pl.BlockSpec((1, MT), lambda i: (i, 0)),       # lane-dense y
        compiler_params=pltpu.CompilerParams(
            dimension_semantics=("parallel",)),   # megacore / 2-TC on v7x
        # VMEM use per step is <2 MiB (masks + aff temporaries), well inside
        # the default scoped limit on all of v5e/v6e/v7x -> no explicit limit.
    )(xf, cxf,
      w1t.astype(jnp.float32), b1.astype(jnp.float32),
      w2t.astype(jnp.float32), b2.astype(jnp.float32),
      mask_pre, mask_post, pool, expand,
      u.astype(jnp.float32), tlf, tsf)
    return out.reshape(Bp, T)[:B]


# ----------------------------- UCDM parameters --------------------------------

def position_embed(L, D):
    pe = np.array(
        [[pos / np.power(1000.0, 2.0 * i) / D for i in range(D)]
         for pos in range(L)])
    pe[:, 0::2] = np.sin(pe[:, 0::2])
    pe[:, 1::2] = np.cos(pe[:, 1::2])
    return jnp.asarray(pe, dtype=jnp.float32)


def init_params(key, num_user, num_item, D, L):
    ks = jax.random.split(key, 8)
    p = {
        "user_embed":       jax.random.normal(ks[0], (num_user, D)) * (1.0 / D),
        "item_embed":       jax.random.normal(ks[1], (num_item, D)) * (1.0 / D),
        "item_embed_2":     jax.random.normal(ks[2], (num_item, D)) * (1.0 / D),
        "item_embed_short": jax.random.normal(ks[3], (num_item, D)),
        "item_embed_long":  jax.random.normal(ks[4], (num_item, D)),
        "linear1_w":        jax.random.normal(ks[5], (D, D)) * np.sqrt(2.0 / D),
        "linear2_w":        jax.random.normal(ks[6], (D, D)) * np.sqrt(2.0 / D),
        "linear1_b":        jax.random.uniform(ks[7], (D,), minval=-1.0 / np.sqrt(D),
                                               maxval=1.0 / np.sqrt(D)),
        "linear2_b":        jnp.zeros((D,), jnp.float32),
        "b":                jnp.zeros((num_item, 1), jnp.float32),  # unused in y_pred
        "pos_embed":        position_embed(L, D),
    }
    return jax.tree_util.tree_map(lambda a: a.astype(jnp.float32), p)


def pad_params(params, Dp):
    """Zero-pad all feature dims to Dp=128 lanes (done once, numerically inert)."""
    D = params["item_embed"].shape[1]
    padf = lambda a: jnp.pad(a, [(0, 0)] * (a.ndim - 1) + [(0, Dp - D)])
    return {
        "item_embed":       padf(params["item_embed"]),
        "item_embed_2":     padf(params["item_embed_2"]),
        "item_embed_short": padf(params["item_embed_short"]),
        "item_embed_long":  padf(params["item_embed_long"]),
        "user_embed":       padf(params["user_embed"]),
        "pos_embed":        padf(params["pos_embed"]),
        "linear1_wt":       jnp.pad(params["linear1_w"].T, ((0, Dp - D), (0, Dp - D))),
        "linear2_wt":       jnp.pad(params["linear2_w"].T, ((0, Dp - D), (0, Dp - D))),
        "linear1_b":        jnp.pad(params["linear1_b"], ((0, Dp - D),)).reshape(1, Dp),
        "linear2_b":        jnp.pad(params["linear2_b"], ((0, Dp - D),)).reshape(1, Dp),
    }


# ----------------------------- UCDM forward (device) --------------------------

@functools.partial(jax.jit, static_argnames=("d_orig", "block_b"))
def ucdm_forward(padded, seq_item, user_id, target, sequences, *,
                 d_orig, block_b=DEFAULT_BLOCK_B):
    """for_pred=False path of UCDM.forward.  Returns y_pred of shape (B, T).

    Cluster dedup: the original's arr_cat / mapping_index machinery resolves
    exactly to "cluster attention of sequences[user_id[b]] per batch row b"
    (the original already requires every user_id to be present in a cluster),
    so user_cluster_seq / user_label are not needed on the device path.
    """
    x = padded["item_embed"][seq_item] + padded["pos_embed"][None]        # (B,L,Dp)
    cseq = sequences[user_id]                                             # (B,L)
    cx = padded["item_embed_2"][cseq] + padded["pos_embed"][None]         # (B,L,Dp)
    u = padded["user_embed"][user_id]                                     # (B,Dp)
    tl = padded["item_embed_long"][target]                                # (B,T,Dp)
    ts = padded["item_embed_short"][target]                               # (B,T,Dp)
    return ucdm_fused(x, cx,
                      padded["linear1_wt"], padded["linear1_b"],
                      padded["linear2_wt"], padded["linear2_b"],
                      u, tl, ts, d_orig=d_orig, block_b=block_b)


# --------------------------- reference (pure JAX) ------------------------------

def ucdm_forward_ref(params, seq_item, user_id, target,
                     user_cluster_seq, sequences_np, user_label, L, D):
    """Faithful mirror of the PyTorch module (incl. the arr_cat/mapping loop)."""
    def att_ref(x, w, b):
        q = jax.nn.relu(jnp.einsum("bld,de->ble", x, w.T) + b)
        aff = jnp.einsum("bld,bmd->blm", q, q) / jnp.sqrt(jnp.float32(D))
        eye = jnp.eye(L, dtype=bool)
        aff = jnp.where(eye[None], 0.0, aff)
        s = jax.nn.sigmoid(aff)
        return jnp.mean(jnp.einsum("blm,bmd->bld", s, x), axis=1)

    x = params["item_embed"][seq_item] + params["pos_embed"][None]
    attention = att_ref(x, params["linear1_w"], params["linear1_b"])
    arr_cat = np.concatenate([np.asarray(c) for c in user_cluster_seq], axis=0)
    mapping = np.array([np.where(arr_cat == int(u))[0][0] for u in np.asarray(user_id)])
    cx = params["item_embed_2"][jnp.asarray(sequences_np[arr_cat])] + params["pos_embed"][None]
    cluster_output = att_ref(cx, params["linear2_w"], params["linear2_b"])[mapping]
    u = params["user_embed"][user_id][:, None, :]
    ts = params["item_embed_short"][target]
    tl = params["item_embed_long"][target]
    return (0.1 * jnp.sqrt(jnp.sum((u - tl) ** 2, axis=2))
            + 0.8 * jnp.sqrt(jnp.sum((attention[:, None, :] - ts) ** 2, axis=2))
            + 0.1 * jnp.sqrt(jnp.sum((cluster_output[:, None, :] - ts) ** 2, axis=2)))


# ----------------------------------- main --------------------------------------

if __name__ == "__main__":
    num_user, num_item = 16, 20
    D, L = 32, 8          # embedding_dim d, sequence length L
    B, T = 2, 4           # batch, targets per user

    key = jax.random.PRNGKey(0)
    kp, k1, k2, k3 = jax.random.split(key, 4)
    params = init_params(kp, num_user, num_item, D, L)
    padded = pad_params(params, LANE)

    # deterministic example inputs
    seq_item = jax.random.randint(k1, (B, L), 0, num_item, dtype=jnp.int32)
    target = jax.random.randint(k2, (B, T), 0, num_item, dtype=jnp.int32)
    user_id = jnp.array([3, 10], dtype=jnp.int32)                  # (B,)
    user_label = np.arange(B)                                      # only len() is used
    user_cluster_seq = [np.arange(0, 8), np.arange(8, 16)]         # clusters cover users
    sequences_np = np.asarray(
        jax.random.randint(k3, (num_user, L), 0, num_item, dtype=jnp.int32))
    sequences = jnp.asarray(sequences_np, dtype=jnp.int32)

    y_pred = ucdm_forward(padded, seq_item, user_id, target, sequences, d_orig=D)
    y_pred = jax.block_until_ready(y_pred)

    y_ref = ucdm_forward_ref(params, seq_item, user_id, target,
                             user_cluster_seq, sequences_np, user_label, L, D)
    np.testing.assert_allclose(np.asarray(y_pred), np.asarray(y_ref),
                               rtol=1e-4, atol=1e-4)
    assert y_pred.shape == (B, T)
    print("KERNEL_OK")
</pallas_src>

<mosaic_0001>
module attributes {stable_mosaic.version = 11 : i64} {
  func.func @ucdm_fused_kernel(%arg0: i32, %arg1: memref<256x128xf32, #tpu.memory_space<vmem>>, %arg2: memref<256x128xf32, #tpu.memory_space<vmem>>, %arg3: memref<128x128xf32, #tpu.memory_space<vmem>>, %arg4: memref<1x128xf32, #tpu.memory_space<vmem>>, %arg5: memref<128x128xf32, #tpu.memory_space<vmem>>, %arg6: memref<1x128xf32, #tpu.memory_space<vmem>>, %arg7: memref<256x256xf32, #tpu.memory_space<vmem>>, %arg8: memref<256x256xf32, #tpu.memory_space<vmem>>, %arg9: memref<32x256xf32, #tpu.memory_space<vmem>>, %arg10: memref<128x32xf32, #tpu.memory_space<vmem>>, %arg11: memref<32x128xf32, #tpu.memory_space<vmem>>, %arg12: memref<128x128xf32, #tpu.memory_space<vmem>>, %arg13: memref<128x128xf32, #tpu.memory_space<vmem>>, %arg14: memref<1x128xf32, #tpu.memory_space<vmem>>) attributes {dimension_semantics = [#tpu.dimension_semantics<parallel>], iteration_bounds = array<i64: 1>, scalar_prefetch = 0 : i64, scratch_operands = 0 : i64, tpu.core_type = #tpu.core_type<tc>, window_params = [{transform_indices = @transform_0, window_bounds = array<i64: 256, 128>}, {transform_indices = @transform_1, window_bounds = array<i64: 256, 128>}, {pipeline_mode = #tpu.pipeline_mode<synchronous>, transform_indices = @transform_2, window_bounds = array<i64: 128, 128>}, {pipeline_mode = #tpu.pipeline_mode<synchronous>, transform_indices = @transform_3, window_bounds = array<i64: 1, 128>}, {pipeline_mode = #tpu.pipeline_mode<synchronous>, transform_indices = @transform_4, window_bounds = array<i64: 128, 128>}, {pipeline_mode = #tpu.pipeline_mode<synchronous>, transform_indices = @transform_5, window_bounds = array<i64: 1, 128>}, {pipeline_mode = #tpu.pipeline_mode<synchronous>, transform_indices = @transform_6, window_bounds = array<i64: 256, 256>}, {pipeline_mode = #tpu.pipeline_mode<synchronous>, transform_indices = @transform_7, window_bounds = array<i64: 256, 256>}, {pipeline_mode = #tpu.pipeline_mode<synchronous>, transform_indices = @transform_8, window_bounds = array<i64: 32, 256>}, {pipeline_mode = #tpu.pipeline_mode<synchronous>, transform_indices = @transform_9, window_bounds = array<i64: 128, 32>}, {transform_indices = @transform_10, window_bounds = array<i64: 32, 128>}, {transform_indices = @transform_11, window_bounds = array<i64: 128, 128>}, {transform_indices = @transform_12, window_bounds = array<i64: 128, 128>}, {transform_indices = @transform_13, window_bounds = array<i64: 1, 128>}]} {
    %c0 = arith.constant 0 : index
    %c0_0 = arith.constant 0 : index
    %0 = vector.load %arg7[%c0, %c0_0] : memref<256x256xf32, #tpu.memory_space<vmem>>, vector<256x256xf32>
    %c0_1 = arith.constant 0 : index
    %c0_2 = arith.constant 0 : index
    %1 = vector.load %arg8[%c0_1, %c0_2] : memref<256x256xf32, #tpu.memory_space<vmem>>, vector<256x256xf32>
    %c0_3 = arith.constant 0 : index
    %c0_4 = arith.constant 0 : index
    %2 = vector.load %arg9[%c0_3, %c0_4] : memref<32x256xf32, #tpu.memory_space<vmem>>, vector<32x256xf32>
    %c0_5 = arith.constant 0 : index
    %c0_6 = arith.constant 0 : index
    %3 = vector.load %arg10[%c0_5, %c0_6] : memref<128x32xf32, #tpu.memory_space<vmem>>, vector<128x32xf32>
    %c0_7 = arith.constant 0 : index
    %c0_8 = arith.constant 0 : index
    %4 = vector.load %arg1[%c0_7, %c0_8] : memref<256x128xf32, #tpu.memory_space<vmem>>, vector<256x128xf32>
    %c0_9 = arith.constant 0 : index
    %c0_10 = arith.constant 0 : index
    %5 = vector.load %arg3[%c0_9, %c0_10] : memref<128x128xf32, #tpu.memory_space<vmem>>, vector<128x128xf32>
    %c0_11 = arith.constant 0 : index
    %c0_12 = arith.constant 0 : index
    %6 = vector.load %arg4[%c0_11, %c0_12] : memref<1x128xf32, #tpu.memory_space<vmem>>, vector<1x128xf32>
    %cst = arith.constant dense<0.000000e+00> : vector<256x128xf32>
    %7 = tpu.matmul %4, %5, %cst {dimension_numbers = #tpu.dot_dimension_numbers<[1], [0], [0], [1], [0, 0, 1, 1], [], []>} : vector<256x128xf32>, vector<128x128xf32>, vector<256x128xf32> -> vector<256x128xf32>
    %8 = vector.broadcast %6 : vector<1x128xf32> to vector<256x128xf32>
    %9 = arith.addf %7, %8 : vector<256x128xf32>
    %cst_13 = arith.constant 0.000000e+00 : f32
    %10 = vector.broadcast %cst_13 : f32 to vector<256x128xf32>
    %11 = arith.maximumf %9, %10 : vector<256x128xf32>
    %cst_14 = arith.constant dense<0.000000e+00> : vector<256x256xf32>
    %12 = tpu.matmul %11, %11, %cst_14 {dimension_numbers = #tpu.dot_dimension_numbers<[1], [1], [0], [0], [0, 0, 1, 0], [], []>} : vector<256x128xf32>, vector<256x128xf32>, vector<256x256xf32> -> vector<256x256xf32>
    %cst_15 = arith.constant 0.176776692 : f32
    %13 = vector.broadcast %cst_15 : f32 to vector<256x256xf32>
    %14 = arith.mulf %12, %13 : vector<256x256xf32>
    %15 = arith.mulf %14, %0 : vector<256x256xf32>
    %16 = arith.negf %15 : vector<256x256xf32>
    %17 = math.exp %16 : vector<256x256xf32>
    %cst_16 = arith.constant 1.000000e+00 : f32
    %18 = vector.broadcast %cst_16 : f32 to vector<256x256xf32>
    %19 = arith.addf %18, %17 : vector<256x256xf32>
    %20 = arith.divf %18, %19 : vector<256x256xf32>
    %21 = arith.mulf %20, %1 : vector<256x256xf32>
    %cst_17 = arith.constant dense<0.000000e+00> : vector<32x256xf32>
    %22 = tpu.matmul %2, %21, %cst_17 {dimension_numbers = #tpu.dot_dimension_numbers<[1], [0], [0], [1], [0, 0, 1, 1], [], []>} : vector<32x256xf32>, vector<256x256xf32>, vector<32x256xf32> -> vector<32x256xf32>
    %cst_18 = arith.constant dense<0.000000e+00> : vector<32x128xf32>
    %23 = tpu.matmul %22, %4, %cst_18 {dimension_numbers = #tpu.dot_dimension_numbers<[1], [0], [0], [1], [0, 0, 1, 1], [], []>} : vector<32x256xf32>, vector<256x128xf32>, vector<32x128xf32> -> vector<32x128xf32>
    %c0_19 = arith.constant 0 : index
    %c0_20 = arith.constant 0 : index
    %24 = vector.load %arg2[%c0_19, %c0_20] : memref<256x128xf32, #tpu.memory_space<vmem>>, vector<256x128xf32>
    %c0_21 = arith.constant 0 : index
    %c0_22 = arith.constant 0 : index
    %25 = vector.load %arg5[%c0_21, %c0_22] : memref<128x128xf32, #tpu.memory_space<vmem>>, vector<128x128xf32>
    %c0_23 = arith.constant 0 : index
    %c0_24 = arith.constant 0 : index
    %26 = vector.load %arg6[%c0_23, %c0_24] : memref<1x128xf32, #tpu.memory_space<vmem>>, vector<1x128xf32>
    %cst_25 = arith.constant dense<0.000000e+00> : vector<256x128xf32>
    %27 = tpu.matmul %24, %25, %cst_25 {dimension_numbers = #tpu.dot_dimension_numbers<[1], [0], [0], [1], [0, 0, 1, 1], [], []>} : vector<256x128xf32>, vector<128x128xf32>, vector<256x128xf32> -> vector<256x128xf32>
    %28 = vector.broadcast %26 : vector<1x128xf32> to vector<256x128xf32>
    %29 = arith.addf %27, %28 : vector<256x128xf32>
    %cst_26 = arith.constant 0.000000e+00 : f32
    %30 = vector.broadcast %cst_26 : f32 to vector<256x128xf32>
    %31 = arith.maximumf %29, %30 : vector<256x128xf32>
    %cst_27 = arith.constant dense<0.000000e+00> : vector<256x256xf32>
    %32 = tpu.matmul %31, %31, %cst_27 {dimension_numbers = #tpu.dot_dimension_numbers<[1], [1], [0], [0], [0, 0, 1, 0], [], []>} : vector<256x128xf32>, vector<256x128xf32>, vector<256x256xf32> -> vector<256x256xf32>
    %cst_28 = arith.constant 0.176776692 : f32
    %33 = vector.broadcast %cst_28 : f32 to vector<256x256xf32>
    %34 = arith.mulf %32, %33 : vector<256x256xf32>
    %35 = arith.mulf %34, %0 : vector<256x256xf32>
    %36 = arith.negf %35 : vector<256x256xf32>
    %37 = math.exp %36 : vector<256x256xf32>
    %cst_29 = arith.constant 1.000000e+00 : f32
    %38 = vector.broadcast %cst_29 : f32 to vector<256x256xf32>
    %39 = arith.addf %38, %37 : vector<256x256xf32>
    %40 = arith.divf %38, %39 : vector<256x256xf32>
    %41 = arith.mulf %40, %1 : vector<256x256xf32>
    %cst_30 = arith.constant dense<0.000000e+00> : vector<32x256xf32>
    %42 = tpu.matmul %2, %41, %cst_30 {dimension_numbers = #tpu.dot_dimension_numbers<[1], [0], [0], [1], [0, 0, 1, 1], [], []>} : vector<32x256xf32>, vector<256x256xf32>, vector<32x256xf32> -> vector<32x256xf32>
    %cst_31 = arith.constant dense<0.000000e+00> : vector<32x128xf32>
    %43 = tpu.matmul %42, %24, %cst_31 {dimension_numbers = #tpu.dot_dimension_numbers<[1], [0], [0], [1], [0, 0, 1, 1], [], []>} : vector<32x256xf32>, vector<256x128xf32>, vector<32x128xf32> -> vector<32x128xf32>
    %c0_32 = arith.constant 0 : index
    %c0_33 = arith.constant 0 : index
    %44 = vector.load %arg11[%c0_32, %c0_33] : memref<32x128xf32, #tpu.memory_space<vmem>>, vector<32x128xf32>
    %cst_34 = arith.constant dense<0.000000e+00> : vector<128x128xf32>
    %45 = tpu.matmul %3, %44, %cst_34 {dimension_numbers = #tpu.dot_dimension_numbers<[1], [0], [0], [1], [0, 0, 1, 1], [], []>} : vector<128x32xf32>, vector<32x128xf32>, vector<128x128xf32> -> vector<128x128xf32>
    %cst_35 = arith.constant dense<0.000000e+00> : vector<128x128xf32>
    %46 = tpu.matmul %3, %23, %cst_35 {dimension_numbers = #tpu.dot_dimension_numbers<[1], [0], [0], [1], [0, 0, 1, 1], [], []>} : vector<128x32xf32>, vector<32x128xf32>, vector<128x128xf32> -> vector<128x128xf32>
    %cst_36 = arith.constant dense<0.000000e+00> : vector<128x128xf32>
    %47 = tpu.matmul %3, %43, %cst_36 {dimension_numbers = #tpu.dot_dimension_numbers<[1], [0], [0], [1], [0, 0, 1, 1], [], []>} : vector<128x32xf32>, vector<32x128xf32>, vector<128x128xf32> -> vector<128x128xf32>
    %c0_37 = arith.constant 0 : index
    %c0_38 = arith.constant 0 : index
    %48 = vector.load %arg12[%c0_37, %c0_38] : memref<128x128xf32, #tpu.memory_space<vmem>>, vector<128x128xf32>
    %c0_39 = arith.constant 0 : index
    %c0_40 = arith.constant 0 : index
    %49 = vector.load %arg13[%c0_39, %c0_40] : memref<128x128xf32, #tpu.memory_space<vmem>>, vector<128x128xf32>
    %cst_41 = arith.constant 1.000000e+00 : f32
    %50 = vector.broadcast %cst_41 : f32 to vector<1x128xf32>
    %51 = arith.subf %45, %48 : vector<128x128xf32>
    %52 = arith.mulf %51, %51 : vector<128x128xf32>
    %cst_42 = arith.constant dense<0.000000e+00> : vector<1x128xf32>
    %53 = tpu.matmul %50, %52, %cst_42 {dimension_numbers = #tpu.dot_dimension_numbers<[1], [1], [0], [0], [0, 0, 1, 0], [], []>} : vector<1x128xf32>, vector<128x128xf32>, vector<1x128xf32> -> vector<1x128xf32>
    %54 = math.sqrt %53 : vector<1x128xf32>
    %cst_43 = arith.constant 1.000000e-01 : f32
    %55 = vector.broadcast %cst_43 : f32 to vector<1x128xf32>
    %56 = arith.mulf %55, %54 : vector<1x128xf32>
    %57 = arith.subf %46, %49 : vector<128x128xf32>
    %58 = arith.mulf %57, %57 : vector<128x128xf32>
    %cst_44 = arith.constant dense<0.000000e+00> : vector<1x128xf32>
    %59 = tpu.matmul %50, %58, %cst_44 {dimension_numbers = #tpu.dot_dimension_numbers<[1], [1], [0], [0], [0, 0, 1, 0], [], []>} : vector<1x128xf32>, vector<128x128xf32>, vector<1x128xf32> -> vector<1x128xf32>
    %60 = math.sqrt %59 : vector<1x128xf32>
    %cst_45 = arith.constant 8.000000e-01 : f32
    %61 = vector.broadcast %cst_45 : f32 to vector<1x128xf32>
    %62 = arith.mulf %61, %60 : vector<1x128xf32>
    %63 = arith.addf %56, %62 : vector<1x128xf32>
    %64 = arith.subf %47, %49 : vector<128x128xf32>
    %65 = arith.mulf %64, %64 : vector<128x128xf32>
    %cst_46 = arith.constant dense<0.000000e+00> : vector<1x128xf32>
    %66 = tpu.matmul %50, %65, %cst_46 {dimension_numbers = #tpu.dot_dimension_numbers<[1], [1], [0], [0], [0, 0, 1, 0], [], []>} : vector<1x128xf32>, vector<128x128xf32>, vector<1x128xf32> -> vector<1x128xf32>
    %67 = math.sqrt %66 : vector<1x128xf32>
    %cst_47 = arith.constant 1.000000e-01 : f32
    %68 = vector.broadcast %cst_47 : f32 to vector<1x128xf32>
    %69 = arith.mulf %68, %67 : vector<1x128xf32>
    %70 = arith.addf %63, %69 : vector<1x128xf32>
    %c0_48 = arith.constant 0 : index
    %c0_49 = arith.constant 0 : index
    %71 = vector.load %arg14[%c0_48, %c0_49] : memref<1x128xf32, #tpu.memory_space<vmem>>, vector<1x128xf32>
    tpu.vector_store %arg14[%c0_48, %c0_49], %70 {strides = array<i32>} : memref<1x128xf32, #tpu.memory_space<vmem>>, vector<1x128xf32>,
    return
  }
  func.func @transform_0(%arg0: i32) -> (i32, i32) {
    %c0_i32 = arith.constant 0 : i32
    %c0_i32_0 = arith.constant 0 : i32
    return %arg0, %c0_i32 : i32, i32
  }
  func.func @transform_1(%arg0: i32) -> (i32, i32) {
    %c0_i32 = arith.constant 0 : i32
    %c0_i32_0 = arith.constant 0 : i32
    return %arg0, %c0_i32 : i32, i32
  }
  func.func @transform_2(%arg0: i32) -> (i32, i32) {
    %c0_i32 = arith.constant 0 : i32
    %c0_i32_0 = arith.constant 0 : i32
    %c0_i32_1 = arith.constant 0 : i32
    return %c0_i32, %c0_i32_0 : i32, i32
  }
  func.func @transform_3(%arg0: i32) -> (i32, i32) {
    %c0_i32 = arith.constant 0 : i32
    %c0_i32_0 = arith.constant 0 : i32
    %c0_i32_1 = arith.constant 0 : i32
    return %c0_i32, %c0_i32_0 : i32, i32
  }
  func.func @transform_4(%arg0: i32) -> (i32, i32) {
    %c0_i32 = arith.constant 0 : i32
    %c0_i32_0 = arith.constant 0 : i32
    %c0_i32_1 = arith.constant 0 : i32
    return %c0_i32, %c0_i32_0 : i32, i32
  }
  func.func @transform_5(%arg0: i32) -> (i32, i32) {
    %c0_i32 = arith.constant 0 : i32
    %c0_i32_0 = arith.constant 0 : i32
    %c0_i32_1 = arith.constant 0 : i32
    return %c0_i32, %c0_i32_0 : i32, i32
  }
  func.func @transform_6(%arg0: i32) -> (i32, i32) {
    %c0_i32 = arith.constant 0 : i32
    %c0_i32_0 = arith.constant 0 : i32
    %c0_i32_1 = arith.constant 0 : i32
    return %c0_i32, %c0_i32_0 : i32, i32
  }
  func.func @transform_7(%arg0: i32) -> (i32, i32) {
    %c0_i32 = arith.constant 0 : i32
    %c0_i32_0 = arith.constant 0 : i32
    %c0_i32_1 = arith.constant 0 : i32
    return %c0_i32, %c0_i32_0 : i32, i32
  }
  func.func @transform_8(%arg0: i32) -> (i32, i32) {
    %c0_i32 = arith.constant 0 : i32
    %c0_i32_0 = arith.constant 0 : i32
    %c0_i32_1 = arith.constant 0 : i32
    return %c0_i32, %c0_i32_0 : i32, i32
  }
  func.func @transform_9(%arg0: i32) -> (i32, i32) {
    %c0_i32 = arith.constant 0 : i32
    %c0_i32_0 = arith.constant 0 : i32
    %c0_i32_1 = arith.constant 0 : i32
    return %c0_i32, %c0_i32_0 : i32, i32
  }
  func.func @transform_10(%arg0: i32) -> (i32, i32) {
    %c0_i32 = arith.constant 0 : i32
    %c0_i32_0 = arith.constant 0 : i32
    return %arg0, %c0_i32 : i32, i32
  }
  func.func @transform_11(%arg0: i32) -> (i32, i32) {
    %c0_i32 = arith.constant 0 : i32
    %c0_i32_0 = arith.constant 0 : i32
    return %arg0, %c0_i32 : i32, i32
  }
  func.func @transform_12(%arg0: i32) -> (i32, i32) {
    %c0_i32 = arith.constant 0 : i32
    %c0_i32_0 = arith.constant 0 : i32
    return %arg0, %c0_i32 : i32, i32
  }
  func.func @transform_13(%arg0: i32) -> (i32, i32) {
    %c0_i32 = arith.constant 0 : i32
    %c0_i32_0 = arith.constant 0 : i32
    return %arg0, %c0_i32 : i32, i32
  }
}

</mosaic_0001>

<llo_original>
// kernel: ucdm_forward.1
$region0: #{ucdm_forward.1}
  #allocation0 [shape = 'u32[]', space=smem, size = 0x4, offset = 0x4, fixed_abs, tag = 'smem constant byte address 0x4 - core index']
  #allocation1 [shape = 'u32[144,128]{1,0:T(1,128)}', space=vmem, size = 0x12000, scoped, tag = 'internal scratch']
  %s0 = inlined_call_operand.vmem [shape: f32[256,128], index: 0, kind: input, shape index: {}]
  %s1 = inlined_call_operand.vmem [shape: f32[256,128], index: 1, kind: input, shape index: {}]
  %s2 = inlined_call_operand.vmem [shape: f32[128,128], index: 2, kind: input, shape index: {}]
  %s3 = inlined_call_operand.hbm [shape: f32[1,128], index: 3, kind: input, shape index: {}]
  %s4 = inlined_call_operand.vmem [shape: f32[128,128], index: 4, kind: input, shape index: {}]
  %s5 = inlined_call_operand.hbm [shape: f32[1,128], index: 5, kind: input, shape index: {}]
  %s6 = inlined_call_operand.vmem [shape: f32[256,256], index: 6, kind: input, shape index: {}]
  %s7 = inlined_call_operand.vmem [shape: f32[256,256], index: 7, kind: input, shape index: {}]
  %s8 = inlined_call_operand.hbm [shape: f32[32,256], index: 8, kind: input, shape index: {}]
  %s9 = inlined_call_operand.vmem [shape: f32[128,32], index: 9, kind: input, shape index: {}]
  %s10 = inlined_call_operand.vmem [shape: f32[32,128], index: 10, kind: input, shape index: {}]
  %s11 = inlined_call_operand.vmem [shape: f32[128,128], index: 11, kind: input, shape index: {}]
  %s12 = inlined_call_operand.vmem [shape: f32[128,128], index: 12, kind: input, shape index: {}]
  %s13 = inlined_call_operand.vmem [shape: f32[1,128], index: 13, kind: output, shape index: {}]
  %s14 = sld [smem:[#allocation0]]
  $region74: #{ucdm_forward.1} parent=0
    _
  %s16 = ssub.s32 1, %s14
  %s17 = scalar_select 0, %s16, %s14
  $region1: #{ucdm_forward.1} parent=0
    #allocation2 [shape = 'u8[512]{0}', space=vmem, size = 0x400, scoped, tag = 'input window, operand 3, single buffered']
    #allocation3 [shape = 's32[1]{0}', space=sflag, size = 0x4, scoped, tag = 'scoped memory for ucdm_forward.1']
    #allocation4 [shape = 'u8[512]{0}', space=vmem, size = 0x400, scoped, tag = 'input window, operand 5, single buffered']
    #allocation5 [shape = 's32[1]{0}', space=sflag, size = 0x4, scoped, tag = 'scoped memory for ucdm_forward.1']
    #allocation6 [shape = 'u8[32768]{0}', space=vmem, size = 0x8000, scoped, tag = 'input window, operand 8, single buffered']
    %18 = vsyncpa [#allocation3], 0
    %19 = vsyncpa [#allocation5], 0
    // Predicated region
    $region2: #{ucdm_forward.1} parent=1 // pred_check
      _
    $region3: #{ucdm_forward.1} parent=1 // pred_check_branch
      %21 = sbr.rel (0) target = $region5
    $region4: #{ucdm_forward.1} parent=1 // pred_region
      _
    $region5: #{ucdm_forward.1} parent=1 // pred_fallthru
      _
    // Predicated region
    $region6: #{ucdm_forward.1} parent=1 // pred_check
      _
    $region7: #{ucdm_forward.1} parent=1 // pred_check_branch
      %23 = sbr.rel (0) target = $region9
    $region8: #{ucdm_forward.1} parent=1 // pred_region
      _
    $region9: #{ucdm_forward.1} parent=1 // pred_fallthru
      _
    // Predicated region
    $region10: #{ucdm_forward.1} parent=1 // pred_check
      _
    $region11: #{ucdm_forward.1} parent=1 // pred_check_branch
      %25 = sbr.rel (0) target = $region13
    $region12: #{ucdm_forward.1} parent=1 // pred_region
      _
    $region13: #{ucdm_forward.1} parent=1 // pred_fallthru
      _
    // Predicated region
    $region14: #{ucdm_forward.1} parent=1 // pred_check
      _
    $region15: #{ucdm_forward.1} parent=1 // pred_check_branch
      %27 = sbr.rel (0) target = $region17
    $region16: #{ucdm_forward.1} parent=1 // pred_region
      %s29 = ssub.s32 16, 16
      %30 = vsyncadd [#allocation3], %s29
      %s32 = sshll.u32 [#allocation2], 4
      %s33 = int_to_ptr.vmem [resolvable:$true] %s32
      %35 = dma.hbm_to_vmem [thread:$0]  %s3, 16, %s33, [#allocation3]
    $region17: #{ucdm_forward.1} parent=1 // pred_fallthru
      _
    // Predicated region
    $region18: #{ucdm_forward.1} parent=1 // pred_check
      _
    $region19: #{ucdm_forward.1} parent=1 // pred_check_branch
      %37 = sbr.rel (0) target = $region21
    $region20: #{ucdm_forward.1} parent=1 // pred_region
      _
    $region21: #{ucdm_forward.1} parent=1 // pred_fallthru
      _
    // Predicated region
    $region22: #{ucdm_forward.1} parent=1 // pred_check
      _
    $region23: #{ucdm_forward.1} parent=1 // pred_check_branch
      %39 = sbr.rel (0) target = $region25
    $region24: #{ucdm_forward.1} parent=1 // pred_region
      %s41 = ssub.s32 16, 16
      %42 = vsyncadd [#allocation5], %s41
      %s44 = sshll.u32 [#allocation4], 4
      %s45 = int_to_ptr.vmem [resolvable:$true] %s44
      %47 = dma.hbm_to_vmem [thread:$0]  %s5, 16, %s45, [#allocation5]
    $region25: #{ucdm_forward.1} parent=1 // pred_fallthru
      _
    // Predicated region
    $region26: #{ucdm_forward.1} parent=1 // pred_check
      _
    $region27: #{ucdm_forward.1} parent=1 // pred_check_branch
      %49 = sbr.rel (0) target = $region29
    $region28: #{ucdm_forward.1} parent=1 // pred_region
      _
    $region29: #{ucdm_forward.1} parent=1 // pred_fallthru
      _
    // Predicated region
    $region30: #{ucdm_forward.1} parent=1 // pred_check
      _
    $region31: #{ucdm_forward.1} parent=1 // pred_check_branch
      %51 = sbr.rel (0) target = $region33
    $region32: #{ucdm_forward.1} parent=1 // pred_region
      _
    $region33: #{ucdm_forward.1} parent=1 // pred_fallthru
      _
    // Predicated region
    $region34: #{ucdm_forward.1} parent=1 // pred_check
      _
    $region35: #{ucdm_forward.1} parent=1 // pred_check_branch
      %53 = sbr.rel (0) target = $region37
    $region36: #{ucdm_forward.1} parent=1 // pred_region
      %s55 = ssub.s32 1024, 1024
      %56 = vsyncadd [#allocation5], %s55
      %s57 = sshll.u32 [#allocation6], 4
      %s58 = int_to_ptr.vmem [resolvable:$true] %s57
      %63 = dma.hbm_to_vmem [thread:$0]  %s8, 1024, %s58, [#allocation5], 256, 256, 16
    $region37: #{ucdm_forward.1} parent=1 // pred_fallthru
      _
    // Predicated region
    $region38: #{ucdm_forward.1} parent=1 // pred_check
      _
    $region39: #{ucdm_forward.1} parent=1 // pred_check_branch
      %65 = sbr.rel (0) target = $region41
    $region40: #{ucdm_forward.1} parent=1 // pred_region
      _
    $region41: #{ucdm_forward.1} parent=1 // pred_fallthru
      _
    // Predicated region
    $region42: #{ucdm_forward.1} parent=1 // pred_check
      _
    $region43: #{ucdm_forward.1} parent=1 // pred_check_branch
      %67 = sbr.rel (0) target = $region45
    $region44: #{ucdm_forward.1} parent=1 // pred_region
      _
    $region45: #{ucdm_forward.1} parent=1 // pred_fallthru
      _
    // Predicated region
    $region46: #{ucdm_forward.1} parent=1 // pred_check
      _
    $region47: #{ucdm_forward.1} parent=1 // pred_check_branch
      %69 = sbr.rel (0) target = $region49
    $region48: #{ucdm_forward.1} parent=1 // pred_region
      _
    $region49: #{ucdm_forward.1} parent=1 // pred_fallthru
      _
    // Predicated region
    $region50: #{ucdm_forward.1} parent=1 // pred_check
      _
    $region51: #{ucdm_forward.1} parent=1 // pred_check_branch
      %71 = sbr.rel (0) target = $region53
    $region52: #{ucdm_forward.1} parent=1 // pred_region
      _
    $region53: #{ucdm_forward.1} parent=1 // pred_fallthru
      _
    // Predicated region
    $region54: #{ucdm_forward.1} parent=1 // pred_check
      _
    $region55: #{ucdm_forward.1} parent=1 // pred_check_branch
      %73 = sbr.rel (0) target = $region57
    $region56: #{ucdm_forward.1} parent=1 // pred_region
      %74 = dma.done [#allocation3], 16
    $region57: #{ucdm_forward.1} parent=1 // pred_fallthru
      _
    // Predicated region
    $region58: #{ucdm_forward.1} parent=1 // pred_check
      _
    $region59: #{ucdm_forward.1} parent=1 // pred_check_branch
      %76 = sbr.rel (0) target = $region61
    $region60: #{ucdm_forward.1} parent=1 // pred_region
      %77 = dma.done [#allocation5], 16
    $region61: #{ucdm_forward.1} parent=1 // pred_fallthru
      _
    // Predicated region
    $region62: #{ucdm_forward.1} parent=1 // pred_check
      _
    $region63: #{ucdm_forward.1} parent=1 // pred_check_branch
      %79 = sbr.rel (0) target = $region65
    $region64: #{ucdm_forward.1} parent=1 // pred_region
      %80 = dma.done [#allocation5], 1024
    $region65: #{ucdm_forward.1} parent=1 // pred_fallthru
      _
    %v81 = vld [vmem:[%s6] sm:$0xff]
    %v82 = vld [vmem:[%s6 + $0x8] sm:$0xff]
    %v83 = vld [vmem:[%s6 + $0x10] sm:$0xff]
    %v84 = vld [vmem:[%s6 + $0x18] sm:$0xff]
    %v85 = vld [vmem:[%s6 + $0x20] sm:$0xff]
    %v86 = vld [vmem:[%s6 + $0x28] sm:$0xff]
    %v87 = vld [vmem:[%s6 + $0x30] sm:$0xff]
    %v88 = vld [vmem:[%s6 + $0x38] sm:$0xff]
    %v89 = vld [vmem:[%s6 + $0x40] sm:$0xff]
    %v90 = vld [vmem:[%s6 + $0x48] sm:$0xff]
    %v91 = vld [vmem:[%s6 + $0x50] sm:$0xff]
    %v92 = vld [vmem:[%s6 + $0x58] sm:$0xff]
    %v93 = vld [vmem:[%s6 + $0x60] sm:$0xff]
    %v94 = vld [vmem:[%s6 + $0x68] sm:$0xff]
    %v95 = vld [vmem:[%s6 + $0x70] sm:$0xff]
    %v96 = vld [vmem:[%s6 + $0x78] sm:$0xff]
    %v97 = vld [vmem:[%s6 + $0x80] sm:$0xff]
    %v98 = vld [vmem:[%s6 + $0x88] sm:$0xff]
    %v99 = vld [vmem:[%s6 + $0x90] sm:$0xff]
    %v100 = vld [vmem:[%s6 + $0x98] sm:$0xff]
    %v101 = vld [vmem:[%s6 + $0xa0] sm:$0xff]
    %v102 = vld [vmem:[%s6 + $0xa8] sm:$0xff]
    %v103 = vld [vmem:[%s6 + $0xb0] sm:$0xff]
    %v104 = vld [vmem:[%s6 + $0xb8] sm:$0xff]
    %v105 = vld [vmem:[%s6 + $0xc0] sm:$0xff]
    %v106 = vld [vmem:[%s6 + $0xc8] sm:$0xff]
    %v107 = vld [vmem:[%s6 + $0xd0] sm:$0xff]
    %v108 = vld [vmem:[%s6 + $0xd8] sm:$0xff]
    %v109 = vld [vmem:[%s6 + $0xe0] sm:$0xff]
    %v110 = vld [vmem:[%s6 + $0xe8] sm:$0xff]
    %v111 = vld [vmem:[%s6 + $0xf0] sm:$0xff]
    %v112 = vld [vmem:[%s6 + $0xf8] sm:$0xff]
    %v113 = vld [vmem:[%s6 + $0x100] sm:$0xff]
    %v114 = vld [vmem:[%s6 + $0x108] sm:$0xff]
    %v115 = vld [vmem:[%s6 + $0x110] sm:$0xff]
    %v116 = vld [vmem:[%s6 + $0x118] sm:$0xff]
    %v117 = vld [vmem:[%s6 + $0x120] sm:$0xff]
    %v118 = vld [vmem:[%s6 + $0x128] sm:$0xff]
    %v119 = vld [vmem:[%s6 + $0x130] sm:$0xff]
    %v120 = vld [vmem:[%s6 + $0x138] sm:$0xff]
    %v121 = vld [vmem:[%s6 + $0x140] sm:$0xff]
    %v122 = vld [vmem:[%s6 + $0x148] sm:$0xff]
    %v123 = vld [vmem:[%s6 + $0x150] sm:$0xff]
    %v124 = vld [vmem:[%s6 + $0x158] sm:$0xff]
    %v125 = vld [vmem:[%s6 + $0x160] sm:$0xff]
    %v126 = vld [vmem:[%s6 + $0x168] sm:$0xff]
    %v127 = vld [vmem:[%s6 + $0x170] sm:$0xff]
    %v128 = vld [vmem:[%s6 + $0x178] sm:$0xff]
    %v129 = vld [vmem:[%s6 + $0x180] sm:$0xff]
    %v130 = vld [vmem:[%s6 + $0x188] sm:$0xff]
    %v131 = vld [vmem:[%s6 + $0x190] sm:$0xff]
    %v132 = vld [vmem:[%s6 + $0x198] sm:$0xff]
    %v133 = vld [vmem:[%s6 + $0x1a0] sm:$0xff]
    %v134 = vld [vmem:[%s6 + $0x1a8] sm:$0xff]
    %v135 = vld [vmem:[%s6 + $0x1b0] sm:$0xff]
    %v136 = vld [vmem:[%s6 + $0x1b8] sm:$0xff]
    %v137 = vld [vmem:[%s6 + $0x1c0] sm:$0xff]
    %v138 = vld [vmem:[%s6 + $0x1c8] sm:$0xff]
    %v139 = vld [vmem:[%s6 + $0x1d0] sm:$0xff]
    %v140 = vld [vmem:[%s6 + $0x1d8] sm:$0xff]
    %v141 = vld [vmem:[%s6 + $0x1e0] sm:$0xff]
    %v142 = vld [vmem:[%s6 + $0x1e8] sm:$0xff]
    %v143 = vld [vmem:[%s6 + $0x1f0] sm:$0xff]
    %v144 = vld [vmem:[%s6 + $0x1f8] sm:$0xff]
    %v145 = vld [vmem:[%s7] sm:$0xff]
    %v146 = vld [vmem:[%s7 + $0x8] sm:$0xff]
    %v147 = vld [vmem:[%s7 + $0x10] sm:$0xff]
    %v148 = vld [vmem:[%s7 + $0x18] sm:$0xff]
    %v149 = vld [vmem:[%s7 + $0x20] sm:$0xff]
    %v150 = vld [vmem:[%s7 + $0x28] sm:$0xff]
    %v151 = vld [vmem:[%s7 + $0x30] sm:$0xff]
    %v152 = vld [vmem:[%s7 + $0x38] sm:$0xff]
    %v153 = vld [vmem:[%s7 + $0x40] sm:$0xff]
    %v154 = vld [vmem:[%s7 + $0x48] sm:$0xff]
    %v155 = vld [vmem:[%s7 + $0x50] sm:$0xff]
    %v156 = vld [vmem:[%s7 + $0x58] sm:$0xff]
    %v157 = vld [vmem:[%s7 + $0x60] sm:$0xff]
    %v158 = vld [vmem:[%s7 + $0x68] sm:$0xff]
    %v159 = vld [vmem:[%s7 + $0x70] sm:$0xff]
    %v160 = vld [vmem:[%s7 + $0x78] sm:$0xff]
    %v161 = vld [vmem:[%s7 + $0x80] sm:$0xff]
    %v162 = vld [vmem:[%s7 + $0x88] sm:$0xff]
    %v163 = vld [vmem:[%s7 + $0x90] sm:$0xff]
    %v164 = vld [vmem:[%s7 + $0x98] sm:$0xff]
    %v165 = vld [vmem:[%s7 + $0xa0] sm:$0xff]
    %v166 = vld [vmem:[%s7 + $0xa8] sm:$0xff]
    %v167 = vld [vmem:[%s7 + $0xb0] sm:$0xff]
    %v168 = vld [vmem:[%s7 + $0xb8] sm:$0xff]
    %v169 = vld [vmem:[%s7 + $0xc0] sm:$0xff]
    %v170 = vld [vmem:[%s7 + $0xc8] sm:$0xff]
    %v171 = vld [vmem:[%s7 + $0xd0] sm:$0xff]
    %v172 = vld [vmem:[%s7 + $0xd8] sm:$0xff]
    %v173 = vld [vmem:[%s7 + $0xe0] sm:$0xff]
    %v174 = vld [vmem:[%s7 + $0xe8] sm:$0xff]
    %v175 = vld [vmem:[%s7 + $0xf0] sm:$0xff]
    %v176 = vld [vmem:[%s7 + $0xf8] sm:$0xff]
    %v177 = vld [vmem:[%s7 + $0x100] sm:$0xff]
    %v178 = vld [vmem:[%s7 + $0x108] sm:$0xff]
    %v179 = vld [vmem:[%s7 + $0x110] sm:$0xff]
    %v180 = vld [vmem:[%s7 + $0x118] sm:$0xff]
    %v181 = vld [vmem:[%s7 + $0x120] sm:$0xff]
    %v182 = vld [vmem:[%s7 + $0x128] sm:$0xff]
    %v183 = vld [vmem:[%s7 + $0x130] sm:$0xff]
    %v184 = vld [vmem:[%s7 + $0x138] sm:$0xff]
    %v185 = vld [vmem:[%s7 + $0x140] sm:$0xff]
    %v186 = vld [vmem:[%s7 + $0x148] sm:$0xff]
    %v187 = vld [vmem:[%s7 + $0x150] sm:$0xff]
    %v188 = vld [vmem:[%s7 + $0x158] sm:$0xff]
    %v189 = vld [vmem:[%s7 + $0x160] sm:$0xff]
    %v190 = vld [vmem:[%s7 + $0x168] sm:$0xff]
    %v191 = vld [vmem:[%s7 + $0x170] sm:$0xff]
    %v192 = vld [vmem:[%s7 + $0x178] sm:$0xff]
    %v193 = vld [vmem:[%s7 + $0x180] sm:$0xff]
    %v194 = vld [vmem:[%s7 + $0x188] sm:$0xff]
    %v195 = vld [vmem:[%s7 + $0x190] sm:$0xff]
    %v196 = vld [vmem:[%s7 + $0x198] sm:$0xff]
    %v197 = vld [vmem:[%s7 + $0x1a0] sm:$0xff]
    %v198 = vld [vmem:[%s7 + $0x1a8] sm:$0xff]
    %v199 = vld [vmem:[%s7 + $0x1b0] sm:$0xff]
    %v200 = vld [vmem:[%s7 + $0x1b8] sm:$0xff]
    %v201 = vld [vmem:[%s7 + $0x1c0] sm:$0xff]
    %v202 = vld [vmem:[%s7 + $0x1c8] sm:$0xff]
    %v203 = vld [vmem:[%s7 + $0x1d0] sm:$0xff]
    %v204 = vld [vmem:[%s7 + $0x1d8] sm:$0xff]
    %v205 = vld [vmem:[%s7 + $0x1e0] sm:$0xff]
    %v206 = vld [vmem:[%s7 + $0x1e8] sm:$0xff]
    %v207 = vld [vmem:[%s7 + $0x1f0] sm:$0xff]
    %v208 = vld [vmem:[%s7 + $0x1f8] sm:$0xff]
    %v209 = vld [vmem:[#allocation6] sm:$0xff]
    %v210 = vld [vmem:[#allocation6 + $0x8] sm:$0xff]
    %v211 = vld [vmem:[#allocation6 + $0x10] sm:$0xff]
    %v212 = vld [vmem:[#allocation6 + $0x18] sm:$0xff]
    %v213 = vld [vmem:[#allocation6 + $0x20] sm:$0xff]
    %v214 = vld [vmem:[#allocation6 + $0x28] sm:$0xff]
    %v215 = vld [vmem:[#allocation6 + $0x30] sm:$0xff]
    %v216 = vld [vmem:[#allocation6 + $0x38] sm:$0xff]
    %v217 = vld [vmem:[%s9] sm:$0xff]
    %v218 = vld [vmem:[%s9 + $0x8] sm:$0xff]
    %v219 = vld [vmem:[%s9 + $0x10] sm:$0xff]
    %v220 = vld [vmem:[%s9 + $0x18] sm:$0xff]
    %v221 = vld [vmem:[%s9 + $0x20] sm:$0xff]
    %v222 = vld [vmem:[%s9 + $0x28] sm:$0xff]
    %v223 = vld [vmem:[%s9 + $0x30] sm:$0xff]
    %v224 = vld [vmem:[%s9 + $0x38] sm:$0xff]
    %v225 = vld [vmem:[%s9 + $0x40] sm:$0xff]
    %v226 = vld [vmem:[%s9 + $0x48] sm:$0xff]
    %v227 = vld [vmem:[%s9 + $0x50] sm:$0xff]
    %v228 = vld [vmem:[%s9 + $0x58] sm:$0xff]
    %v229 = vld [vmem:[%s9 + $0x60] sm:$0xff]
    %v230 = vld [vmem:[%s9 + $0x68] sm:$0xff]
    %v231 = vld [vmem:[%s9 + $0x70] sm:$0xff]
    %v232 = vld [vmem:[%s9 + $0x78] sm:$0xff]
    %v233 = vld [vmem:[%s0] sm:$0xff]
    %v234 = vld [vmem:[%s0 + $0x8] sm:$0xff]
    %v235 = vld [vmem:[%s0 + $0x10] sm:$0xff]
    %v236 = vld [vmem:[%s0 + $0x18] sm:$0xff]
    %v237 = vld [vmem:[%s0 + $0x20] sm:$0xff]
    %v238 = vld [vmem:[%s0 + $0x28] sm:$0xff]
    %v239 = vld [vmem:[%s0 + $0x30] sm:$0xff]
    %v240 = vld [vmem:[%s0 + $0x38] sm:$0xff]
    %v241 = vld [vmem:[%s0 + $0x40] sm:$0xff]
    %v242 = vld [vmem:[%s0 + $0x48] sm:$0xff]
    %v243 = vld [vmem:[%s0 + $0x50] sm:$0xff]
    %v244 = vld [vmem:[%s0 + $0x58] sm:$0xff]
    %v245 = vld [vmem:[%s0 + $0x60] sm:$0xff]
    %v246 = vld [vmem:[%s0 + $0x68] sm:$0xff]
    %v247 = vld [vmem:[%s0 + $0x70] sm:$0xff]
    %v248 = vld [vmem:[%s0 + $0x78] sm:$0xff]
    %v249 = vld [vmem:[%s0 + $0x80] sm:$0xff]
    %v250 = vld [vmem:[%s0 + $0x88] sm:$0xff]
    %v251 = vld [vmem:[%s0 + $0x90] sm:$0xff]
    %v252 = vld [vmem:[%s0 + $0x98] sm:$0xff]
    %v253 = vld [vmem:[%s0 + $0xa0] sm:$0xff]
    %v254 = vld [vmem:[%s0 + $0xa8] sm:$0xff]
    %v255 = vld [vmem:[%s0 + $0xb0] sm:$0xff]
    %v256 = vld [vmem:[%s0 + $0xb8] sm:$0xff]
    %v257 = vld [vmem:[%s0 + $0xc0] sm:$0xff]
    %v258 = vld [vmem:[%s0 + $0xc8] sm:$0xff]
    %v259 = vld [vmem:[%s0 + $0xd0] sm:$0xff]
    %v260 = vld [vmem:[%s0 + $0xd8] sm:$0xff]
    %v261 = vld [vmem:[%s0 + $0xe0] sm:$0xff]
    %v262 = vld [vmem:[%s0 + $0xe8] sm:$0xff]
    %v263 = vld [vmem:[%s0 + $0xf0] sm:$0xff]
    %v264 = vld [vmem:[%s0 + $0xf8] sm:$0xff]
    %v265 = vld [vmem:[%s2] sm:$0xff]
    %v266 = vld [vmem:[%s2 + $0x8] sm:$0xff]
    %v267 = vld [vmem:[%s2 + $0x10] sm:$0xff]
    %v268 = vld [vmem:[%s2 + $0x18] sm:$0xff]
    %v269 = vld [vmem:[%s2 + $0x20] sm:$0xff]
    %v270 = vld [vmem:[%s2 + $0x28] sm:$0xff]
    %v271 = vld [vmem:[%s2 + $0x30] sm:$0xff]
    %v272 = vld [vmem:[%s2 + $0x38] sm:$0xff]
    %v273 = vld [vmem:[%s2 + $0x40] sm:$0xff]
    %v274 = vld [vmem:[%s2 + $0x48] sm:$0xff]
    %v275 = vld [vmem:[%s2 + $0x50] sm:$0xff]
    %v276 = vld [vmem:[%s2 + $0x58] sm:$0xff]
    %v277 = vld [vmem:[%s2 + $0x60] sm:$0xff]
    %v278 = vld [vmem:[%s2 + $0x68] sm:$0xff]
    %v279 = vld [vmem:[%s2 + $0x70] sm:$0xff]
    %v280 = vld [vmem:[%s2 + $0x78] sm:$0xff]
    %v281 = vld [vmem:[#allocation2] sm:$0x1]
    %v283 = vlaneseq
    %v284 = vshrl.u32 %v283, 7
    %v285 = vsub.s32 0, %v284
    %v286 = vrot.slane %v281, %v285
    %288 = vmatprep.subr.mxu0 0.0
    %289 = vmatpush1.msra.mxu0 %v280
    %290 = vmatprep.subr.mxu0 0.0
    %291 = vmatpush1.msra.mxu0 %v279
    %292 = vmatprep.subr.mxu0 0.0
    %293 = vmatpush1.msra.mxu0 %v278
    %294 = vmatprep.subr.mxu0 0.0
    %295 = vmatpush1.msra.mxu0 %v277
    %296 = vmatprep.subr.mxu0 0.0
    %297 = vmatpush1.msra.mxu0 %v276
    %298 = vmatprep.subr.mxu0 0.0
    %299 = vmatpush1.msra.mxu0 %v275
    %300 = vmatprep.subr.mxu0 0.0
    %301 = vmatpush1.msra.mxu0 %v274
    %302 = vmatprep.subr.mxu0 0.0
    %303 = vmatpush1.msra.mxu0 %v273
    %304 = vmatprep.subr.mxu0 0.0
    %305 = vmatpush1.msra.mxu0 %v272
    %306 = vmatprep.subr.mxu0 0.0
    %307 = vmatpush1.msra.mxu0 %v271
    %308 = vmatprep.subr.mxu0 0.0
    %309 = vmatpush1.msra.mxu0 %v270
    %310 = vmatprep.subr.mxu0 0.0
    %311 = vmatpush1.msra.mxu0 %v269
    %312 = vmatprep.subr.mxu0 0.0
    %313 = vmatpush1.msra.mxu0 %v268
    %314 = vmatprep.subr.mxu0 0.0
    %315 = vmatpush1.msra.mxu0 %v267
    %316 = vmatprep.subr.mxu0 0.0
    %317 = vmatpush1.msra.mxu0 %v266
    %318 = vmatprep.subr.mxu0 0.0
    %319 = vmatpush1.msra.mxu0 %v265
    %320 = vmatprep.subr.mxu0 0.0
    %321 = vmatpush2.msra.mxu0 0.0
    %322 = vmatprep.subr.mxu0 0.0
    %323 = vmatpush2.msra.mxu0 0.0
    %324 = vmatprep.subr.mxu0 0.0
    %325 = vmatpush2.msra.mxu0 0.0
    %326 = vmatprep.subr.mxu0 0.0
    %327 = vmatpush2.msra.mxu0 0.0
    %328 = vmatprep.subr.mxu0 0.0
    %329 = vmatpush2.msra.mxu0 0.0
    %330 = vmatprep.subr.mxu0 0.0
    %331 = vmatpush2.msra.mxu0 0.0
    %332 = vmatprep.subr.mxu0 0.0
    %333 = vmatpush2.msra.mxu0 0.0
    %334 = vmatprep.subr.mxu0 0.0
    %335 = vmatpush2.msra.mxu0 0.0
    %336 = vmatprep.subr.mxu0 0.0
    %337 = vmatpush2.msra.mxu0 0.0
    %338 = vmatprep.subr.mxu0 0.0
    %339 = vmatpush2.msra.mxu0 0.0
    %340 = vmatprep.subr.mxu0 0.0
    %341 = vmatpush2.msra.mxu0 0.0
    %342 = vmatprep.subr.mxu0 0.0
    %343 = vmatpush2.msra.mxu0 0.0
    %344 = vmatprep.subr.mxu0 0.0
    %345 = vmatpush2.msra.mxu0 0.0
    %346 = vmatprep.subr.mxu0 0.0
    %347 = vmatpush2.msra.mxu0 0.0
    %348 = vmatprep.subr.mxu0 0.0
    %349 = vmatpush2.msra.mxu0 0.0
    %350 = vmatprep.subr.mxu0 0.0
    %351 = vmatpush2.msra.mxu0 0.0
    %352 = vmatprep.mubr.f32.mxu0 0.0
    %353 = vmatmul.mubr.f32.gmra.mxu0 %v233
    %v354 = vpop.f32.mrf.mxu0
    %v355 = vadd.f32 %v286, %v354
    %v356 = vpop.f32.mrf.mxu0
    %357 = vmatprep.mubr.f32.mxu0 0.0
    %358 = vmatmul.mubr.f32.gmra.mxu0 %v234
    %v359 = vpop.f32.mrf.mxu0
    %v360 = vadd.f32 %v286, %v359
    %v361 = vpop.f32.mrf.mxu0
    %362 = vmatprep.mubr.f32.mxu0 0.0
    %363 = vmatmul.mubr.f32.gmra.mxu0 %v235
    %v364 = vpop.f32.mrf.mxu0
    %v365 = vadd.f32 %v286, %v364
    %v366 = vpop.f32.mrf.mxu0
    %367 = vmatprep.mubr.f32.mxu0 0.0
    %368 = vmatmul.mubr.f32.gmra.mxu0 %v236
    %v369 = vpop.f32.mrf.mxu0
    %v370 = vadd.f32 %v286, %v369
    %v371 = vpop.f32.mrf.mxu0
    %372 = vmatprep.mubr.f32.mxu0 0.0
    %373 = vmatmul.mubr.f32.gmra.mxu0 %v237
    %v374 = vpop.f32.mrf.mxu0
    %v375 = vadd.f32 %v286, %v374
    %v376 = vpop.f32.mrf.mxu0
    %377 = vmatprep.mubr.f32.mxu0 0.0
    %378 = vmatmul.mubr.f32.gmra.mxu0 %v238
    %v379 = vpop.f32.mrf.mxu0
    %v380 = vadd.f32 %v286, %v379
    %v381 = vpop.f32.mrf.mxu0
    %382 = vmatprep.mubr.f32.mxu0 0.0
    %383 = vmatmul.mubr.f32.gmra.mxu0 %v239
    %v384 = vpop.f32.mrf.mxu0
    %v385 = vadd.f32 %v286, %v384
    %v386 = vpop.f32.mrf.mxu0
    %387 = vmatprep.mubr.f32.mxu0 0.0
    %388 = vmatmul.mubr.f32.gmra.mxu0 %v240
    %v389 = vpop.f32.mrf.mxu0
    %v390 = vadd.f32 %v286, %v389
    %v391 = vpop.f32.mrf.mxu0
    %392 = vmatprep.mubr.f32.mxu0 0.0
    %393 = vmatmul.mubr.f32.gmra.mxu0 %v241
    %v394 = vpop.f32.mrf.mxu0
    %v395 = vadd.f32 %v286, %v394
    %v396 = vpop.f32.mrf.mxu0
    %397 = vmatprep.mubr.f32.mxu0 0.0
    %398 = vmatmul.mubr.f32.gmra.mxu0 %v242
    %v399 = vpop.f32.mrf.mxu0
    %v400 = vadd.f32 %v286, %v399
    %v401 = vpop.f32.mrf.mxu0
    %402 = vmatprep.mubr.f32.mxu0 0.0
    %403 = vmatmul.mubr.f32.gmra.mxu0 %v243
    %v404 = vpop.f32.mrf.mxu0
    %v405 = vadd.f32 %v286, %v404
    %v406 = vpop.f32.mrf.mxu0
    %407 = vmatprep.mubr.f32.mxu0 0.0
    %408 = vmatmul.mubr.f32.gmra.mxu0 %v244
    %v409 = vpop.f32.mrf.mxu0
    %v410 = vadd.f32 %v286, %v409
    %v411 = vpop.f32.mrf.mxu0
    %412 = vmatprep.mubr.f32.mxu0 0.0
    %413 = vmatmul.mubr.f32.gmra.mxu0 %v245
    %v414 = vpop.f32.mrf.mxu0
    %v415 = vadd.f32 %v286, %v414
    %v416 = vpop.f32.mrf.mxu0
    %417 = vmatprep.mubr.f32.mxu0 0.0
    %418 = vmatmul.mubr.f32.gmra.mxu0 %v246
    %v419 = vpop.f32.mrf.mxu0
    %v420 = vadd.f32 %v286, %v419
    %v421 = vpop.f32.mrf.mxu0
    %422 = vmatprep.mubr.f32.mxu0 0.0
    %423 = vmatmul.mubr.f32.gmra.mxu0 %v247
    %v424 = vpop.f32.mrf.mxu0
    %v425 = vadd.f32 %v286, %v424
    %v426 = vpop.f32.mrf.mxu0
    %427 = vmatprep.mubr.f32.mxu0 0.0
    %428 = vmatmul.mubr.f32.gmra.mxu0 %v248
    %v429 = vpop.f32.mrf.mxu0
    %v430 = vadd.f32 %v286, %v429
    %v431 = vpop.f32.mrf.mxu0
    %432 = vmatprep.mubr.f32.mxu0 0.0
    %433 = vmatmul.mubr.f32.gmra.mxu0 %v249
    %v434 = vpop.f32.mrf.mxu0
    %v435 = vadd.f32 %v286, %v434
    %v436 = vpop.f32.mrf.mxu0
    %437 = vmatprep.mubr.f32.mxu0 0.0
    %438 = vmatmul.mubr.f32.gmra.mxu0 %v250
    %v439 = vpop.f32.mrf.mxu0
    %v440 = vadd.f32 %v286, %v439
    %v441 = vpop.f32.mrf.mxu0
    %442 = vmatprep.mubr.f32.mxu0 0.0
    %443 = vmatmul.mubr.f32.gmra.mxu0 %v251
    %v444 = vpop.f32.mrf.mxu0
    %v445 = vadd.f32 %v286, %v444
    %v446 = vpop.f32.mrf.mxu0
    %447 = vmatprep.mubr.f32.mxu0 0.0
    %448 = vmatmul.mubr.f32.gmra.mxu0 %v252
    %v449 = vpop.f32.mrf.mxu0
    %v450 = vadd.f32 %v286, %v449
    %v451 = vpop.f32.mrf.mxu0
    %452 = vmatprep.mubr.f32.mxu0 0.0
    %453 = vmatmul.mubr.f32.gmra.mxu0 %v253
    %v454 = vpop.f32.mrf.mxu0
    %v455 = vadd.f32 %v286, %v454
    %v456 = vpop.f32.mrf.mxu0
    %457 = vmatprep.mubr.f32.mxu0 0.0
    %458 = vmatmul.mubr.f32.gmra.mxu0 %v254
    %v459 = vpop.f32.mrf.mxu0
    %v460 = vadd.f32 %v286, %v459
    %v461 = vpop.f32.mrf.mxu0
    %462 = vmatprep.mubr.f32.mxu0 0.0
    %463 = vmatmul.mubr.f32.gmra.mxu0 %v255
    %v464 = vpop.f32.mrf.mxu0
    %v465 = vadd.f32 %v286, %v464
    %v466 = vpop.f32.mrf.mxu0
    %467 = vmatprep.mubr.f32.mxu0 0.0
    %468 = vmatmul.mubr.f32.gmra.mxu0 %v256
    %v469 = vpop.f32.mrf.mxu0
    %v470 = vadd.f32 %v286, %v469
    %v471 = vpop.f32.mrf.mxu0
    %472 = vmatprep.mubr.f32.mxu0 0.0
    %473 = vmatmul.mubr.f32.gmra.mxu0 %v257
    %v474 = vpop.f32.mrf.mxu0
    %v475 = vadd.f32 %v286, %v474
    %v476 = vpop.f32.mrf.mxu0
    %477 = vmatprep.mubr.f32.mxu0 0.0
    %478 = vmatmul.mubr.f32.gmra.mxu0 %v258
    %v479 = vpop.f32.mrf.mxu0
    %v480 = vadd.f32 %v286, %v479
    %v481 = vpop.f32.mrf.mxu0
    %482 = vmatprep.mubr.f32.mxu0 0.0
    %483 = vmatmul.mubr.f32.gmra.mxu0 %v259
    %v484 = vpop.f32.mrf.mxu0
    %v485 = vadd.f32 %v286, %v484
    %v486 = vpop.f32.mrf.mxu0
    %487 = vmatprep.mubr.f32.mxu0 0.0
    %488 = vmatmul.mubr.f32.gmra.mxu0 %v260
    %v489 = vpop.f32.mrf.mxu0
    %v490 = vadd.f32 %v286, %v489
    %v491 = vpop.f32.mrf.mxu0
    %492 = vmatprep.mubr.f32.mxu0 0.0
    %493 = vmatmul.mubr.f32.gmra.mxu0 %v261
    %v494 = vpop.f32.mrf.mxu0
    %v495 = vadd.f32 %v286, %v494
    %v496 = vpop.f32.mrf.mxu0
    %497 = vmatprep.mubr.f32.mxu0 0.0
    %498 = vmatmul.mubr.f32.gmra.mxu0 %v262
    %v499 = vpop.f32.mrf.mxu0
    %v500 = vadd.f32 %v286, %v499
    %v501 = vpop.f32.mrf.mxu0
    %502 = vmatprep.mubr.f32.mxu0 0.0
    %503 = vmatmul.mubr.f32.gmra.mxu0 %v263
    %v504 = vpop.f32.mrf.mxu0
    %v505 = vadd.f32 %v286, %v504
    %v506 = vpop.f32.mrf.mxu0
    %507 = vmatprep.mubr.f32.mxu0 0.0
    %508 = vmatmul.mubr.f32.gmra.mxu0 %v264
    %v509 = vpop.f32.mrf.mxu0
    %v510 = vadd.f32 %v286, %v509
    %v511 = vpop.f32.mrf.mxu0
    %512 = vdwg.mxu0
    %v513 = vmax.f32 %v355, 0.0
    %v514 = vmax.f32 %v360, 0.0
    %v515 = vmax.f32 %v365, 0.0
    %v516 = vmax.f32 %v370, 0.0
    %v517 = vmax.f32 %v375, 0.0
    %v518 = vmax.f32 %v380, 0.0
    %v519 = vmax.f32 %v385, 0.0
    %v520 = vmax.f32 %v390, 0.0
    %v521 = vmax.f32 %v395, 0.0
    %v522 = vmax.f32 %v400, 0.0
    %v523 = vmax.f32 %v405, 0.0
    %v524 = vmax.f32 %v410, 0.0
    %v525 = vmax.f32 %v415, 0.0
    %v526 = vmax.f32 %v420, 0.0
    %v527 = vmax.f32 %v425, 0.0
    %v528 = vmax.f32 %v430, 0.0
    %v529 = vmax.f32 %v435, 0.0
    %v530 = vmax.f32 %v440, 0.0
    %v531 = vmax.f32 %v445, 0.0
    %v532 = vmax.f32 %v450, 0.0
    %v533 = vmax.f32 %v455, 0.0
    %v534 = vmax.f32 %v460, 0.0
    %v535 = vmax.f32 %v465, 0.0
    %v536 = vmax.f32 %v470, 0.0
    %v537 = vmax.f32 %v475, 0.0
    %v538 = vmax.f32 %v480, 0.0
    %v539 = vmax.f32 %v485, 0.0
    %v540 = vmax.f32 %v490, 0.0
    %v541 = vmax.f32 %v495, 0.0
    %v542 = vmax.f32 %v500, 0.0
    %v543 = vmax.f32 %v505, 0.0
    %v544 = vmax.f32 %v510, 0.0
    %545 = vmatprep.subr.mxu0 0.0
    %546 = vmatpush1.xpose.msra.mxu0 %v528
    %547 = vmatprep.subr.mxu0 0.0
    %548 = vmatpush1.xpose.msra.mxu0 %v527
    %549 = vmatprep.subr.mxu0 0.0
    %550 = vmatpush1.xpose.msra.mxu0 %v526
    %551 = vmatprep.subr.mxu0 0.0
    %552 = vmatpush1.xpose.msra.mxu0 %v525
    %553 = vmatprep.subr.mxu0 0.0
    %554 = vmatpush1.xpose.msra.mxu0 %v524
    %555 = vmatprep.subr.mxu0 0.0
    %556 = vmatpush1.xpose.msra.mxu0 %v523
    %557 = vmatprep.subr.mxu0 0.0
    %558 = vmatpush1.xpose.msra.mxu0 %v522
    %559 = vmatprep.subr.mxu0 0.0
    %560 = vmatpush1.xpose.msra.mxu0 %v521
    %561 = vmatprep.subr.mxu0 0.0
    %562 = vmatpush1.xpose.msra.mxu0 %v520
    %563 = vmatprep.subr.mxu0 0.0
    %564 = vmatpush1.xpose.msra.mxu0 %v519
    %565 = vmatprep.subr.mxu0 0.0
    %566 = vmatpush1.xpose.msra.mxu0 %v518
    %567 = vmatprep.subr.mxu0 0.0
    %568 = vmatpush1.xpose.msra.mxu0 %v517
    %569 = vmatprep.subr.mxu0 0.0
    %570 = vmatpush1.xpose.msra.mxu0 %v516
    %571 = vmatprep.subr.mxu0 0.0
    %572 = vmatpush1.xpose.msra.mxu0 %v515
    %573 = vmatprep.subr.mxu0 0.0
    %574 = vmatpush1.xpose.msra.mxu0 %v514
    %575 = vmatprep.subr.mxu0 0.0
    %576 = vmatpush1.xpose.msra.mxu0 %v513
    %577 = vmatprep.subr.mxu0 0.0
    %578 = vmatpush2.xpose.msra.mxu0 %v544
    %579 = vmatprep.subr.mxu0 0.0
    %580 = vmatpush2.xpose.msra.mxu0 %v543
    %581 = vmatprep.subr.mxu0 0.0
    %582 = vmatpush2.xpose.msra.mxu0 %v542
    %583 = vmatprep.subr.mxu0 0.0
    %584 = vmatpush2.xpose.msra.mxu0 %v541
    %585 = vmatprep.subr.mxu0 0.0
    %586 = vmatpush2.xpose.msra.mxu0 %v540
    %587 = vmatprep.subr.mxu0 0.0
    %588 = vmatpush2.xpose.msra.mxu0 %v539
    %589 = vmatprep.subr.mxu0 0.0
    %590 = vmatpush2.xpose.msra.mxu0 %v538
    %591 = vmatprep.subr.mxu0 0.0
    %592 = vmatpush2.xpose.msra.mxu0 %v537
    %593 = vmatprep.subr.mxu0 0.0
    %594 = vmatpush2.xpose.msra.mxu0 %v536
    %595 = vmatprep.subr.mxu0 0.0
    %596 = vmatpush2.xpose.msra.mxu0 %v535
    %597 = vmatprep.subr.mxu0 0.0
    %598 = vmatpush2.xpose.msra.mxu0 %v534
    %599 = vmatprep.subr.mxu0 0.0
    %600 = vmatpush2.xpose.msra.mxu0 %v533
    %601 = vmatprep.subr.mxu0 0.0
    %602 = vmatpush2.xpose.msra.mxu0 %v532
    %603 = vmatprep.subr.mxu0 0.0
    %604 = vmatpush2.xpose.msra.mxu0 %v531
    %605 = vmatprep.subr.mxu0 0.0
    %606 = vmatpush2.xpose.msra.mxu0 %v530
    %607 = vmatprep.subr.mxu0 0.0
    %608 = vmatpush2.xpose.msra.mxu0 %v529
    %609 = vmatprep.mubr.f32.mxu0 0.0
    %610 = vmatmul.mubr.f32.gmra.mxu0 %v513
    %v611 = vpop.f32.mrf.mxu0
    %v612 = vadd.f32 0.0, %v611
    %v613 = vpop.f32.mrf.mxu0
    %v614 = vadd.f32 0.0, %v613
    %615 = vmatprep.mubr.f32.mxu0 0.0
    %616 = vmatmul.mubr.f32.gmra.mxu0 %v514
    %v617 = vpop.f32.mrf.mxu0
    %v618 = vadd.f32 0.0, %v617
    %v619 = vpop.f32.mrf.mxu0
    %v620 = vadd.f32 0.0, %v619
    %621 = vmatprep.mubr.f32.mxu0 0.0
    %622 = vmatmul.mubr.f32.gmra.mxu0 %v515
    %v623 = vpop.f32.mrf.mxu0
    %v624 = vadd.f32 0.0, %v623
    %v625 = vpop.f32.mrf.mxu0
    %v626 = vadd.f32 0.0, %v625
    %627 = vmatprep.mubr.f32.mxu0 0.0
    %628 = vmatmul.mubr.f32.gmra.mxu0 %v516
    %v629 = vpop.f32.mrf.mxu0
    %v630 = vadd.f32 0.0, %v629
    %v631 = vpop.f32.mrf.mxu0
    %v632 = vadd.f32 0.0, %v631
    %633 = vmatprep.mubr.f32.mxu0 0.0
    %634 = vmatmul.mubr.f32.gmra.mxu0 %v517
    %v635 = vpop.f32.mrf.mxu0
    %v636 = vadd.f32 0.0, %v635
    %v637 = vpop.f32.mrf.mxu0
    %v638 = vadd.f32 0.0, %v637
    %639 = vmatprep.mubr.f32.mxu0 0.0
    %640 = vmatmul.mubr.f32.gmra.mxu0 %v518
    %v641 = vpop.f32.mrf.mxu0
    %v642 = vadd.f32 0.0, %v641
    %v643 = vpop.f32.mrf.mxu0
    %v644 = vadd.f32 0.0, %v643
    %645 = vmatprep.mubr.f32.mxu0 0.0
    %646 = vmatmul.mubr.f32.gmra.mxu0 %v519
    %v647 = vpop.f32.mrf.mxu0
    %v648 = vadd.f32 0.0, %v647
    %v649 = vpop.f32.mrf.mxu0
    %v650 = vadd.f32 0.0, %v649
    %651 = vmatprep.mubr.f32.mxu0 0.0
    %652 = vmatmul.mubr.f32.gmra.mxu0 %v520
    %v653 = vpop.f32.mrf.mxu0
    %v654 = vadd.f32 0.0, %v653
    %v655 = vpop.f32.mrf.mxu0
    %v656 = vadd.f32 0.0, %v655
    %657 = vmatprep.mubr.f32.mxu0 0.0
    %658 = vmatmul.mubr.f32.gmra.mxu0 %v521
    %v659 = vpop.f32.mrf.mxu0
    %v660 = vadd.f32 0.0, %v659
    %v661 = vpop.f32.mrf.mxu0
    %v662 = vadd.f32 0.0, %v661
    %663 = vmatprep.mubr.f32.mxu0 0.0
    %664 = vmatmul.mubr.f32.gmra.mxu0 %v522
    %v665 = vpop.f32.mrf.mxu0
    %v666 = vadd.f32 0.0, %v665
    %v667 = vpop.f32.mrf.mxu0
    %v668 = vadd.f32 0.0, %v667
    %669 = vmatprep.mubr.f32.mxu0 0.0
    %670 = vmatmul.mubr.f32.gmra.mxu0 %v523
    %v671 = vpop.f32.mrf.mxu0
    %v672 = vadd.f32 0.0, %v671
    %v673 = vpop.f32.mrf.mxu0
    %v674 = vadd.f32 0.0, %v673
    %675 = vmatprep.mubr.f32.mxu0 0.0
    %676 = vmatmul.mubr.f32.gmra.mxu0 %v524
    %v677 = vpop.f32.mrf.mxu0
    %v678 = vadd.f32 0.0, %v677
    %v679 = vpop.f32.mrf.mxu0
    %v680 = vadd.f32 0.0, %v679
    %681 = vmatprep.mubr.f32.mxu0 0.0
    %682 = vmatmul.mubr.f32.gmra.mxu0 %v525
    %v683 = vpop.f32.mrf.mxu0
    %v684 = vadd.f32 0.0, %v683
    %v685 = vpop.f32.mrf.mxu0
    %v686 = vadd.f32 0.0, %v685
    %687 = vmatprep.mubr.f32.mxu0 0.0
    %688 = vmatmul.mubr.f32.gmra.mxu0 %v526
    %v689 = vpop.f32.mrf.mxu0
    %v690 = vadd.f32 0.0, %v689
    %v691 = vpop.f32.mrf.mxu0
    %v692 = vadd.f32 0.0, %v691
    %693 = vmatprep.mubr.f32.mxu0 0.0
    %694 = vmatmul.mubr.f32.gmra.mxu0 %v527
    %v695 = vpop.f32.mrf.mxu0
    %v696 = vadd.f32 0.0, %v695
    %v697 = vpop.f32.mrf.mxu0
    %v698 = vadd.f32 0.0, %v697
    %699 = vmatprep.mubr.f32.mxu0 0.0
    %700 = vmatmul.mubr.f32.gmra.mxu0 %v528
    %v701 = vpop.f32.mrf.mxu0
    %v702 = vadd.f32 0.0, %v701
    %v703 = vpop.f32.mrf.mxu0
    %v704 = vadd.f32 0.0, %v703
    %705 = vmatprep.mubr.f32.mxu0 0.0
    %706 = vmatmul.mubr.f32.gmra.mxu0 %v529
    %v707 = vpop.f32.mrf.mxu0
    %v708 = vadd.f32 0.0, %v707
    %v709 = vpop.f32.mrf.mxu0
    %v710 = vadd.f32 0.0, %v709
    %711 = vmatprep.mubr.f32.mxu0 0.0
    %712 = vmatmul.mubr.f32.gmra.mxu0 %v530
    %v713 = vpop.f32.mrf.mxu0
    %v714 = vadd.f32 0.0, %v713
    %v715 = vpop.f32.mrf.mxu0
    %v716 = vadd.f32 0.0, %v715
    %717 = vmatprep.mubr.f32.mxu0 0.0
    %718 = vmatmul.mubr.f32.gmra.mxu0 %v531
    %v719 = vpop.f32.mrf.mxu0
    %v720 = vadd.f32 0.0, %v719
    %v721 = vpop.f32.mrf.mxu0
    %v722 = vadd.f32 0.0, %v721
    %723 = vmatprep.mubr.f32.mxu0 0.0
    %724 = vmatmul.mubr.f32.gmra.mxu0 %v532
    %v725 = vpop.f32.mrf.mxu0
    %v726 = vadd.f32 0.0, %v725
    %v727 = vpop.f32.mrf.mxu0
    %v728 = vadd.f32 0.0, %v727
    %729 = vmatprep.mubr.f32.mxu0 0.0
    %730 = vmatmul.mubr.f32.gmra.mxu0 %v533
    %v731 = vpop.f32.mrf.mxu0
    %v732 = vadd.f32 0.0, %v731
    %v733 = vpop.f32.mrf.mxu0
    %v734 = vadd.f32 0.0, %v733
    %735 = vmatprep.mubr.f32.mxu0 0.0
    %736 = vmatmul.mubr.f32.gmra.mxu0 %v534
    %v737 = vpop.f32.mrf.mxu0
    %v738 = vadd.f32 0.0, %v737
    %v739 = vpop.f32.mrf.mxu0
    %v740 = vadd.f32 0.0, %v739
    %741 = vmatprep.mubr.f32.mxu0 0.0
    %742 = vmatmul.mubr.f32.gmra.mxu0 %v535
    %v743 = vpop.f32.mrf.mxu0
    %v744 = vadd.f32 0.0, %v743
    %v745 = vpop.f32.mrf.mxu0
    %v746 = vadd.f32 0.0, %v745
    %747 = vmatprep.mubr.f32.mxu0 0.0
    %748 = vmatmul.mubr.f32.gmra.mxu0 %v536
    %v749 = vpop.f32.mrf.mxu0
    %v750 = vadd.f32 0.0, %v749
    %v751 = vpop.f32.mrf.mxu0
    %v752 = vadd.f32 0.0, %v751
    %753 = vmatprep.mubr.f32.mxu0 0.0
    %754 = vmatmul.mubr.f32.gmra.mxu0 %v537
    %v755 = vpop.f32.mrf.mxu0
    %v756 = vadd.f32 0.0, %v755
    %v757 = vpop.f32.mrf.mxu0
    %v758 = vadd.f32 0.0, %v757
    %759 = vmatprep.mubr.f32.mxu0 0.0
    %760 = vmatmul.mubr.f32.gmra.mxu0 %v538
    %v761 = vpop.f32.mrf.mxu0
    %v762 = vadd.f32 0.0, %v761
    %v763 = vpop.f32.mrf.mxu0
    %v764 = vadd.f32 0.0, %v763
    %765 = vmatprep.mubr.f32.mxu0 0.0
    %766 = vmatmul.mubr.f32.gmra.mxu0 %v539
    %v767 = vpop.f32.mrf.mxu0
    %v768 = vadd.f32 0.0, %v767
    %v769 = vpop.f32.mrf.mxu0
    %v770 = vadd.f32 0.0, %v769
    %771 = vmatprep.mubr.f32.mxu0 0.0
    %772 = vmatmul.mubr.f32.gmra.mxu0 %v540
    %v773 = vpop.f32.mrf.mxu0
    %v774 = vadd.f32 0.0, %v773
    %v775 = vpop.f32.mrf.mxu0
    %v776 = vadd.f32 0.0, %v775
    %777 = vmatprep.mubr.f32.mxu0 0.0
    %778 = vmatmul.mubr.f32.gmra.mxu0 %v541
    %v779 = vpop.f32.mrf.mxu0
    %v780 = vadd.f32 0.0, %v779
    %v781 = vpop.f32.mrf.mxu0
    %v782 = vadd.f32 0.0, %v781
    %783 = vmatprep.mubr.f32.mxu0 0.0
    %784 = vmatmul.mubr.f32.gmra.mxu0 %v542
    %v785 = vpop.f32.mrf.mxu0
    %v786 = vadd.f32 0.0, %v785
    %v787 = vpop.f32.mrf.mxu0
    %v788 = vadd.f32 0.0, %v787
    %789 = vmatprep.mubr.f32.mxu0 0.0
    %790 = vmatmul.mubr.f32.gmra.mxu0 %v543
    %v791 = vpop.f32.mrf.mxu0
    %v792 = vadd.f32 0.0, %v791
    %v793 = vpop.f32.mrf.mxu0
    %v794 = vadd.f32 0.0, %v793
    %795 = vmatprep.mubr.f32.mxu0 0.0
    %796 = vmatmul.mubr.f32.gmra.mxu0 %v544
    %v797 = vpop.f32.mrf.mxu0
    %v798 = vadd.f32 0.0, %v797
    %v799 = vpop.f32.mrf.mxu0
    %v800 = vadd.f32 0.0, %v799
    %801 = vdwg.mxu0
    %v802 = vmul.f32 %v612, 0.17677669
    %v803 = vmul.f32 %v614, 0.17677669
    %v804 = vmul.f32 %v618, 0.17677669
    %v805 = vmul.f32 %v620, 0.17677669
    %v806 = vmul.f32 %v624, 0.17677669
    %v807 = vmul.f32 %v626, 0.17677669
    %v808 = vmul.f32 %v630, 0.17677669
    %v809 = vmul.f32 %v632, 0.17677669
    %v810 = vmul.f32 %v636, 0.17677669
    %v811 = vmul.f32 %v638, 0.17677669
    %v812 = vmul.f32 %v642, 0.17677669
    %v813 = vmul.f32 %v644, 0.17677669
    %v814 = vmul.f32 %v648, 0.17677669
    %v815 = vmul.f32 %v650, 0.17677669
    %v816 = vmul.f32 %v654, 0.17677669
    %v817 = vmul.f32 %v656, 0.17677669
    %v818 = vmul.f32 %v660, 0.17677669
    %v819 = vmul.f32 %v662, 0.17677669
    %v820 = vmul.f32 %v666, 0.17677669
    %v821 = vmul.f32 %v668, 0.17677669
    %v822 = vmul.f32 %v672, 0.17677669
    %v823 = vmul.f32 %v674, 0.17677669
    %v824 = vmul.f32 %v678, 0.17677669
    %v825 = vmul.f32 %v680, 0.17677669
    %v826 = vmul.f32 %v684, 0.17677669
    %v827 = vmul.f32 %v686, 0.17677669
    %v828 = vmul.f32 %v690, 0.17677669
    %v829 = vmul.f32 %v692, 0.17677669
    %v830 = vmul.f32 %v696, 0.17677669
    %v831 = vmul.f32 %v698, 0.17677669
    %v832 = vmul.f32 %v702, 0.17677669
    %v833 = vmul.f32 %v704, 0.17677669
    %v834 = vmul.f32 %v708, 0.17677669
    %v835 = vmul.f32 %v710, 0.17677669
    %v836 = vmul.f32 %v714, 0.17677669
    %v837 = vmul.f32 %v716, 0.17677669
    %v838 = vmul.f32 %v720, 0.17677669
    %v839 = vmul.f32 %v722, 0.17677669
    %v840 = vmul.f32 %v726, 0.17677669
    %v841 = vmul.f32 %v728, 0.17677669
    %v842 = vmul.f32 %v732, 0.17677669
    %v843 = vmul.f32 %v734, 0.17677669
    %v844 = vmul.f32 %v738, 0.17677669
    %v845 = vmul.f32 %v740, 0.17677669
    %v846 = vmul.f32 %v744, 0.17677669
    %v847 = vmul.f32 %v746, 0.17677669
    %v848 = vmul.f32 %v750, 0.17677669
    %v849 = vmul.f32 %v752, 0.17677669
    %v850 = vmul.f32 %v756, 0.17677669
    %v851 = vmul.f32 %v758, 0.17677669
    %v852 = vmul.f32 %v762, 0.17677669
    %v853 = vmul.f32 %v764, 0.17677669
    %v854 = vmul.f32 %v768, 0.17677669
    %v855 = vmul.f32 %v770, 0.17677669
    %v856 = vmul.f32 %v774, 0.17677669
    %v857 = vmul.f32 %v776, 0.17677669
    %v858 = vmul.f32 %v780, 0.17677669
    %v859 = vmul.f32 %v782, 0.17677669
    %v860 = vmul.f32 %v786, 0.17677669
    %v861 = vmul.f32 %v788, 0.17677669
    %v862 = vmul.f32 %v792, 0.17677669
    %v863 = vmul.f32 %v794, 0.17677669
    %v864 = vmul.f32 %v798, 0.17677669
    %v865 = vmul.f32 %v800, 0.17677669
    %v866 = vmul.f32 %v802, %v81
    %v867 = vmul.f32 %v803, %v82
    %v868 = vmul.f32 %v804, %v83
    %v869 = vmul.f32 %v805, %v84
    %v870 = vmul.f32 %v806, %v85
    %v871 = vmul.f32 %v807, %v86
    %v872 = vmul.f32 %v808, %v87
    %v873 = vmul.f32 %v809, %v88
    %v874 = vmul.f32 %v810, %v89
    %v875 = vmul.f32 %v811, %v90
    %v876 = vmul.f32 %v812, %v91
    %v877 = vmul.f32 %v813, %v92
    %v878 = vmul.f32 %v814, %v93
    %v879 = vmul.f32 %v815, %v94
    %v880 = vmul.f32 %v816, %v95
    %v881 = vmul.f32 %v817, %v96
    %v882 = vmul.f32 %v818, %v97
    %v883 = vmul.f32 %v819, %v98
    %v884 = vmul.f32 %v820, %v99
    %v885 = vmul.f32 %v821, %v100
    %v886 = vmul.f32 %v822, %v101
    %v887 = vmul.f32 %v823, %v102
    %v888 = vmul.f32 %v824, %v103
    %v889 = vmul.f32 %v825, %v104
    %v890 = vmul.f32 %v826, %v105
    %v891 = vmul.f32 %v827, %v106
    %v892 = vmul.f32 %v828, %v107
    %v893 = vmul.f32 %v829, %v108
    %v894 = vmul.f32 %v830, %v109
    %v895 = vmul.f32 %v831, %v110
    %v896 = vmul.f32 %v832, %v111
    %v897 = vmul.f32 %v833, %v112
    %v898 = vmul.f32 %v834, %v113
    %v899 = vmul.f32 %v835, %v114
    %v900 = vmul.f32 %v836, %v115
    %v901 = vmul.f32 %v837, %v116
    %v902 = vmul.f32 %v838, %v117
    %v903 = vmul.f32 %v839, %v118
    %v904 = vmul.f32 %v840, %v119
    %v905 = vmul.f32 %v841, %v120
    %v906 = vmul.f32 %v842, %v121
    %v907 = vmul.f32 %v843, %v122
    %v908 = vmul.f32 %v844, %v123
    %v909 = vmul.f32 %v845, %v124
    %v910 = vmul.f32 %v846, %v125
    %v911 = vmul.f32 %v847, %v126
    %v912 = vmul.f32 %v848, %v127
    %v913 = vmul.f32 %v849, %v128
    %v914 = vmul.f32 %v850, %v129
    %v915 = vmul.f32 %v851, %v130
    %v916 = vmul.f32 %v852, %v131
    %v917 = vmul.f32 %v853, %v132
    %v918 = vmul.f32 %v854, %v133
    %v919 = vmul.f32 %v855, %v134
    %v920 = vmul.f32 %v856, %v135
    %v921 = vmul.f32 %v857, %v136
    %v922 = vmul.f32 %v858, %v137
    %v923 = vmul.f32 %v859, %v138
    %v924 = vmul.f32 %v860, %v139
    %v925 = vmul.f32 %v861, %v140
    %v926 = vmul.f32 %v862, %v141
    %v927 = vmul.f32 %v863, %v142
    %v928 = vmul.f32 %v864, %v143
    %v929 = vmul.f32 %v865, %v144
    %v930 = vxor.u32 %v866, 2147483648
    %v931 = vxor.u32 %v867, 2147483648
    %v932 = vxor.u32 %v868, 2147483648
    %v933 = vxor.u32 %v869, 2147483648
    %v934 = vxor.u32 %v870, 2147483648
    %v935 = vxor.u32 %v871, 2147483648
    %v936 = vxor.u32 %v872, 2147483648
    %v937 = vxor.u32 %v873, 2147483648
    %v938 = vxor.u32 %v874, 2147483648
    %v939 = vxor.u32 %v875, 2147483648
    %v940 = vxor.u32 %v876, 2147483648
    %v941 = vxor.u32 %v877, 2147483648
    %v942 = vxor.u32 %v878, 2147483648
    %v943 = vxor.u32 %v879, 2147483648
    %v944 = vxor.u32 %v880, 2147483648
    %v945 = vxor.u32 %v881, 2147483648
    %v946 = vxor.u32 %v882, 2147483648
    %v947 = vxor.u32 %v883, 2147483648
    %v948 = vxor.u32 %v884, 2147483648
    %v949 = vxor.u32 %v885, 2147483648
    %v950 = vxor.u32 %v886, 2147483648
    %v951 = vxor.u32 %v887, 2147483648
    %v952 = vxor.u32 %v888, 2147483648
    %v953 = vxor.u32 %v889, 2147483648
    %v954 = vxor.u32 %v890, 2147483648
    %v955 = vxor.u32 %v891, 2147483648
    %v956 = vxor.u32 %v892, 2147483648
    %v957 = vxor.u32 %v893, 2147483648
    %v958 = vxor.u32 %v894, 2147483648
    %v959 = vxor.u32 %v895, 2147483648
    %v960 = vxor.u32 %v896, 2147483648
    %v961 = vxor.u32 %v897, 2147483648
    %v962 = vxor.u32 %v898, 2147483648
    %v963 = vxor.u32 %v899, 2147483648
    %v964 = vxor.u32 %v900, 2147483648
    %v965 = vxor.u32 %v901, 2147483648
    %v966 = vxor.u32 %v902, 2147483648
    %v967 = vxor.u32 %v903, 2147483648
    %v968 = vxor.u32 %v904, 2147483648
    %v969 = vxor.u32 %v905, 2147483648
    %v970 = vxor.u32 %v906, 2147483648
    %v971 = vxor.u32 %v907, 2147483648
    %v972 = vxor.u32 %v908, 2147483648
    %v973 = vxor.u32 %v909, 2147483648
    %v974 = vxor.u32 %v910, 2147483648
    %v975 = vxor.u32 %v911, 2147483648
    %v976 = vxor.u32 %v912, 2147483648
    %v977 = vxor.u32 %v913, 2147483648
    %v978 = vxor.u32 %v914, 2147483648
    %v979 = vxor.u32 %v915, 2147483648
    %v980 = vxor.u32 %v916, 2147483648
    %v981 = vxor.u32 %v917, 2147483648
    %v982 = vxor.u32 %v918, 2147483648
    %v983 = vxor.u32 %v919, 2147483648
    %v984 = vxor.u32 %v920, 2147483648
    %v985 = vxor.u32 %v921, 2147483648
    %v986 = vxor.u32 %v922, 2147483648
    %v987 = vxor.u32 %v923, 2147483648
    %v988 = vxor.u32 %v924, 2147483648
    %v989 = vxor.u32 %v925, 2147483648
    %v990 = vxor.u32 %v926, 2147483648
    %v991 = vxor.u32 %v927, 2147483648
    %v992 = vxor.u32 %v928, 2147483648
    %v993 = vxor.u32 %v929, 2147483648
    %v994 = vmul.f32 %v930, 1.442695
    %v995 = vpow.pop %v994
    %v996 = vmul.f32 %v931, 1.442695
    %v997 = vpow.pop %v996
    %v998 = vmul.f32 %v932, 1.442695
    %v999 = vpow.pop %v998
    %v1000 = vmul.f32 %v933, 1.442695
    %v1001 = vpow.pop %v1000
    %v1002 = vmul.f32 %v934, 1.442695
    %v1003 = vpow.pop %v1002
    %v1004 = vmul.f32 %v935, 1.442695
    %v1005 = vpow.pop %v1004
    %v1006 = vmul.f32 %v936, 1.442695
    %v1007 = vpow.pop %v1006
    %v1008 = vmul.f32 %v937, 1.442695
    %v1009 = vpow.pop %v1008
    %v1010 = vmul.f32 %v938, 1.442695
    %v1011 = vpow.pop %v1010
    %v1012 = vmul.f32 %v939, 1.442695
    %v1013 = vpow.pop %v1012
    %v1014 = vmul.f32 %v940, 1.442695
    %v1015 = vpow.pop %v1014
    %v1016 = vmul.f32 %v941, 1.442695
    %v1017 = vpow.pop %v1016
    %v1018 = vmul.f32 %v942, 1.442695
    %v1019 = vpow.pop %v1018
    %v1020 = vmul.f32 %v943, 1.442695
    %v1021 = vpow.pop %v1020
    %v1022 = vmul.f32 %v944, 1.442695
    %v1023 = vpow.pop %v1022
    %v1024 = vmul.f32 %v945, 1.442695
    %v1025 = vpow.pop %v1024
    %v1026 = vmul.f32 %v946, 1.442695
    %v1027 = vpow.pop %v1026
    %v1028 = vmul.f32 %v947, 1.442695
    %v1029 = vpow.pop %v1028
    %v1030 = vmul.f32 %v948, 1.442695
    %v1031 = vpow.pop %v1030
    %v1032 = vmul.f32 %v949, 1.442695
    %v1033 = vpow.pop %v1032
    %v1034 = vmul.f32 %v950, 1.442695
    %v1035 = vpow.pop %v1034
    %v1036 = vmul.f32 %v951, 1.442695
    %v1037 = vpow.pop %v1036
    %v1038 = vmul.f32 %v952, 1.442695
    %v1039 = vpow.pop %v1038
    %v1040 = vmul.f32 %v953, 1.442695
    %v1041 = vpow.pop %v1040
    %v1042 = vmul.f32 %v954, 1.442695
    %v1043 = vpow.pop %v1042
    %v1044 = vmul.f32 %v955, 1.442695
    %v1045 = vpow.pop %v1044
    %v1046 = vmul.f32 %v956, 1.442695
    %v1047 = vpow.pop %v1046
    %v1048 = vmul.f32 %v957, 1.442695
    %v1049 = vpow.pop %v1048
    %v1050 = vmul.f32 %v958, 1.442695
    %v1051 = vpow.pop %v1050
    %v1052 = vmul.f32 %v959, 1.442695
    %v1053 = vpow.pop %v1052
    %v1054 = vmul.f32 %v960, 1.442695
    %v1055 = vpow.pop %v1054
    %v1056 = vmul.f32 %v961, 1.442695
    %v1057 = vpow.pop %v1056
    %v1058 = vmul.f32 %v962, 1.442695
    %v1059 = vpow.pop %v1058
    %v1060 = vmul.f32 %v963, 1.442695
    %v1061 = vpow.pop %v1060
    %v1062 = vmul.f32 %v964, 1.442695
    %v1063 = vpow.pop %v1062
    %v1064 = vmul.f32 %v965, 1.442695
    %v1065 = vpow.pop %v1064
    %v1066 = vmul.f32 %v966, 1.442695
    %v1067 = vpow.pop %v1066
    %v1068 = vmul.f32 %v967, 1.442695
    %v1069 = vpow.pop %v1068
    %v1070 = vmul.f32 %v968, 1.442695
    %v1071 = vpow.pop %v1070
    %v1072 = vmul.f32 %v969, 1.442695
    %v1073 = vpow.pop %v1072
    %v1074 = vmul.f32 %v970, 1.442695
    %v1075 = vpow.pop %v1074
    %v1076 = vmul.f32 %v971, 1.442695
    %v1077 = vpow.pop %v1076
    %v1078 = vmul.f32 %v972, 1.442695
    %v1079 = vpow.pop %v1078
    %v1080 = vmul.f32 %v973, 1.442695
    %v1081 = vpow.pop %v1080
    %v1082 = vmul.f32 %v974, 1.442695
    %v1083 = vpow.pop %v1082
    %v1084 = vmul.f32 %v975, 1.442695
    %v1085 = vpow.pop %v1084
    %v1086 = vmul.f32 %v976, 1.442695
    %v1087 = vpow.pop %v1086
    %v1088 = vmul.f32 %v977, 1.442695
    %v1089 = vpow.pop %v1088
    %v1090 = vmul.f32 %v978, 1.442695
    %v1091 = vpow.pop %v1090
    %v1092 = vmul.f32 %v979, 1.442695
    %v1093 = vpow.pop %v1092
    %v1094 = vmul.f32 %v980, 1.442695
    %v1095 = vpow.pop %v1094
    %v1096 = vmul.f32 %v981, 1.442695
    %v1097 = vpow.pop %v1096
    %v1098 = vmul.f32 %v982, 1.442695
    %v1099 = vpow.pop %v1098
    %v1100 = vmul.f32 %v983, 1.442695
    %v1101 = vpow.pop %v1100
    %v1102 = vmul.f32 %v984, 1.442695
    %v1103 = vpow.pop %v1102
    %v1104 = vmul.f32 %v985, 1.442695
    %v1105 = vpow.pop %v1104
    %v1106 = vmul.f32 %v986, 1.442695
    %v1107 = vpow.pop %v1106
    %v1108 = vmul.f32 %v987, 1.442695
    %v1109 = vpow.pop %v1108
    %v1110 = vmul.f32 %v988, 1.442695
    %v1111 = vpow.pop %v1110
    %v1112 = vmul.f32 %v989, 1.442695
    %v1113 = vpow.pop %v1112
    %v1114 = vmul.f32 %v990, 1.442695
    %v1115 = vpow.pop %v1114
    %v1116 = vmul.f32 %v991, 1.442695
    %v1117 = vpow.pop %v1116
    %v1118 = vmul.f32 %v992, 1.442695
    %v1119 = vpow.pop %v1118
    %v1120 = vmul.f32 %v993, 1.442695
    %v1121 = vpow.pop %v1120
    %v1122 = vadd.f32 %v995, 1.0
    %v1123 = vadd.f32 %v997, 1.0
    %v1124 = vadd.f32 %v999, 1.0
    %v1125 = vadd.f32 %v1001, 1.0
    %v1126 = vadd.f32 %v1003, 1.0
    %v1127 = vadd.f32 %v1005, 1.0
    %v1128 = vadd.f32 %v1007, 1.0
    %v1129 = vadd.f32 %v1009, 1.0
    %v1130 = vadd.f32 %v1011, 1.0
    %v1131 = vadd.f32 %v1013, 1.0
    %v1132 = vadd.f32 %v1015, 1.0
    %v1133 = vadd.f32 %v1017, 1.0
    %v1134 = vadd.f32 %v1019, 1.0
    %v1135 = vadd.f32 %v1021, 1.0
    %v1136 = vadd.f32 %v1023, 1.0
    %v1137 = vadd.f32 %v1025, 1.0
    %v1138 = vadd.f32 %v1027, 1.0
    %v1139 = vadd.f32 %v1029, 1.0
    %v1140 = vadd.f32 %v1031, 1.0
    %v1141 = vadd.f32 %v1033, 1.0
    %v1142 = vadd.f32 %v1035, 1.0
    %v1143 = vadd.f32 %v1037, 1.0
    %v1144 = vadd.f32 %v1039, 1.0
    %v1145 = vadd.f32 %v1041, 1.0
    %v1146 = vadd.f32 %v1043, 1.0
    %v1147 = vadd.f32 %v1045, 1.0
    %v1148 = vadd.f32 %v1047, 1.0
    %v1149 = vadd.f32 %v1049, 1.0
    %v1150 = vadd.f32 %v1051, 1.0
    %v1151 = vadd.f32 %v1053, 1.0
    %v1152 = vadd.f32 %v1055, 1.0
    %v1153 = vadd.f32 %v1057, 1.0
    %v1154 = vadd.f32 %v1059, 1.0
    %v1155 = vadd.f32 %v1061, 1.0
    %v1156 = vadd.f32 %v1063, 1.0
    %v1157 = vadd.f32 %v1065, 1.0
    %v1158 = vadd.f32 %v1067, 1.0
    %v1159 = vadd.f32 %v1069, 1.0
    %v1160 = vadd.f32 %v1071, 1.0
    %v1161 = vadd.f32 %v1073, 1.0
    %v1162 = vadd.f32 %v1075, 1.0
    %v1163 = vadd.f32 %v1077, 1.0
    %v1164 = vadd.f32 %v1079, 1.0
    %v1165 = vadd.f32 %v1081, 1.0
    %v1166 = vadd.f32 %v1083, 1.0
    %v1167 = vadd.f32 %v1085, 1.0
    %v1168 = vadd.f32 %v1087, 1.0
    %v1169 = vadd.f32 %v1089, 1.0
    %v1170 = vadd.f32 %v1091, 1.0
    %v1171 = vadd.f32 %v1093, 1.0
    %v1172 = vadd.f32 %v1095, 1.0
    %v1173 = vadd.f32 %v1097, 1.0
    %v1174 = vadd.f32 %v1099, 1.0
    %v1175 = vadd.f32 %v1101, 1.0
    %v1176 = vadd.f32 %v1103, 1.0
    %v1177 = vadd.f32 %v1105, 1.0
    %v1178 = vadd.f32 %v1107, 1.0
    %v1179 = vadd.f32 %v1109, 1.0
    %v1180 = vadd.f32 %v1111, 1.0
    %v1181 = vadd.f32 %v1113, 1.0
    %v1182 = vadd.f32 %v1115, 1.0
    %v1183 = vadd.f32 %v1117, 1.0
    %v1184 = vadd.f32 %v1119, 1.0
    %v1185 = vadd.f32 %v1121, 1.0
    %v1186 = vrcp.pop %v1122
    %v1187 = vmul.f32 1.0, %v1186
    %v1188 = vrcp.pop %v1123
    %v1189 = vmul.f32 1.0, %v1188
    %v1190 = vrcp.pop %v1124
    %v1191 = vmul.f32 1.0, %v1190
    %v1192 = vrcp.pop %v1125
    %v1193 = vmul.f32 1.0, %v1192
    %v1194 = vrcp.pop %v1126
    %v1195 = vmul.f32 1.0, %v1194
    %v1196 = vrcp.pop %v1127
    %v1197 = vmul.f32 1.0, %v1196
    %v1198 = vrcp.pop %v1128
    %v1199 = vmul.f32 1.0, %v1198
    %v1200 = vrcp.pop %v1129
    %v1201 = vmul.f32 1.0, %v1200
    %v1202 = vrcp.pop %v1130
    %v1203 = vmul.f32 1.0, %v1202
    %v1204 = vrcp.pop %v1131
    %v1205 = vmul.f32 1.0, %v1204
    %v1206 = vrcp.pop %v1132
    %v1207 = vmul.f32 1.0, %v1206
    %v1208 = vrcp.pop %v1133
    %v1209 = vmul.f32 1.0, %v1208
    %v1210 = vrcp.pop %v1134
    %v1211 = vmul.f32 1.0, %v1210
    %v1212 = vrcp.pop %v1135
    %v1213 = vmul.f32 1.0, %v1212
    %v1214 = vrcp.pop %v1136
    %v1215 = vmul.f32 1.0, %v1214
    %v1216 = vrcp.pop %v1137
    %v1217 = vmul.f32 1.0, %v1216
    %v1218 = vrcp.pop %v1138
    %v1219 = vmul.f32 1.0, %v1218
    %v1220 = vrcp.pop %v1139
    %v1221 = vmul.f32 1.0, %v1220
    %v1222 = vrcp.pop %v1140
    %v1223 = vmul.f32 1.0, %v1222
    %v1224 = vrcp.pop %v1141
    %v1225 = vmul.f32 1.0, %v1224
    %v1226 = vrcp.pop %v1142
    %v1227 = vmul.f32 1.0, %v1226
    %v1228 = vrcp.pop %v1143
    %v1229 = vmul.f32 1.0, %v1228
    %v1230 = vrcp.pop %v1144
    %v1231 = vmul.f32 1.0, %v1230
    %v1232 = vrcp.pop %v1145
    %v1233 = vmul.f32 1.0, %v1232
    %v1234 = vrcp.pop %v1146
    %v1235 = vmul.f32 1.0, %v1234
    %v1236 = vrcp.pop %v1147
    %v1237 = vmul.f32 1.0, %v1236
    %v1238 = vrcp.pop %v1148
    %v1239 = vmul.f32 1.0, %v1238
    %v1240 = vrcp.pop %v1149
    %v1241 = vmul.f32 1.0, %v1240
    %v1242 = vrcp.pop %v1150
    %v1243 = vmul.f32 1.0, %v1242
    %v1244 = vrcp.pop %v1151
    %v1245 = vmul.f32 1.0, %v1244
    %v1246 = vrcp.pop %v1152
    %v1247 = vmul.f32 1.0, %v1246
    %v1248 = vrcp.pop %v1153
    %v1249 = vmul.f32 1.0, %v1248
    %v1250 = vrcp.pop %v1154
    %v1251 = vmul.f32 1.0, %v1250
    %v1252 = vrcp.pop %v1155
    %v1253 = vmul.f32 1.0, %v1252
    %v1254 = vrcp.pop %v1156
    %v1255 = vmul.f32 1.0, %v1254
    %v1256 = vrcp.pop %v1157
    %v1257 = vmul.f32 1.0, %v1256
    %v1258 = vrcp.pop %v1158
    %v1259 = vmul.f32 1.0, %v1258
    %v1260 = vrcp.pop %v1159
    %v1261 = vmul.f32 1.0, %v1260
    %v1262 = vrcp.pop %v1160
    %v1263 = vmul.f32 1.0, %v1262
    %v1264 = vrcp.pop %v1161
    %v1265 = vmul.f32 1.0, %v1264
    %v1266 = vrcp.pop %v1162
    %v1267 = vmul.f32 1.0, %v1266
    %v1268 = vrcp.pop %v1163
    %v1269 = vmul.f32 1.0, %v1268
    %v1270 = vrcp.pop %v1164
    %v1271 = vmul.f32 1.0, %v1270
    %v1272 = vrcp.pop %v1165
    %v1273 = vmul.f32 1.0, %v1272
    %v1274 = vrcp.pop %v1166
    %v1275 = vmul.f32 1.0, %v1274
    %v1276 = vrcp.pop %v1167
    %v1277 = vmul.f32 1.0, %v1276
    %v1278 = vrcp.pop %v1168
    %v1279 = vmul.f32 1.0, %v1278
    %v1280 = vrcp.pop %v1169
    %v1281 = vmul.f32 1.0, %v1280
    %v1282 = vrcp.pop %v1170
    %v1283 = vmul.f32 1.0, %v1282
    %v1284 = vrcp.pop %v1171
    %v1285 = vmul.f32 1.0, %v1284
    %v1286 = vrcp.pop %v1172
    %v1287 = vmul.f32 1.0, %v1286
    %v1288 = vrcp.pop %v1173
    %v1289 = vmul.f32 1.0, %v1288
    %v1290 = vrcp.pop %v1174
    %v1291 = vmul.f32 1.0, %v1290
    %v1292 = vrcp.pop %v1175
    %v1293 = vmul.f32 1.0, %v1292
    %v1294 = vrcp.pop %v1176
    %v1295 = vmul.f32 1.0, %v1294
    %v1296 = vrcp.pop %v1177
    %v1297 = vmul.f32 1.0, %v1296
    %v1298 = vrcp.pop %v1178
    %v1299 = vmul.f32 1.0, %v1298
    %v1300 = vrcp.pop %v1179
    %v1301 = vmul.f32 1.0, %v1300
    %v1302 = vrcp.pop %v1180
    %v1303 = vmul.f32 1.0, %v1302
    %v1304 = vrcp.pop %v1181
    %v1305 = vmul.f32 1.0, %v1304
    %v1306 = vrcp.pop %v1182
    %v1307 = vmul.f32 1.0, %v1306
    %v1308 = vrcp.pop %v1183
    %v1309 = vmul.f32 1.0, %v1308
    %v1310 = vrcp.pop %v1184
    %v1311 = vmul.f32 1.0, %v1310
    %v1312 = vrcp.pop %v1185
    %v1313 = vmul.f32 1.0, %v1312
    %v1314 = vmul.f32 %v1187, %v145
    %v1315 = vmul.f32 %v1189, %v146
    %v1316 = vmul.f32 %v1191, %v147
    %v1317 = vmul.f32 %v1193, %v148
    %v1318 = vmul.f32 %v1195, %v149
    %v1319 = vmul.f32 %v1197, %v150
    %v1320 = vmul.f32 %v1199, %v151
    %v1321 = vmul.f32 %v1201, %v152
    %v1322 = vmul.f32 %v1203, %v153
    %v1323 = vmul.f32 %v1205, %v154
    %v1324 = vmul.f32 %v1207, %v155
    %v1325 = vmul.f32 %v1209, %v156
    %v1326 = vmul.f32 %v1211, %v157
    %v1327 = vmul.f32 %v1213, %v158
    %v1328 = vmul.f32 %v1215, %v159
    %v1329 = vmul.f32 %v1217, %v160
    %v1330 = vmul.f32 %v1219, %v161
    %v1331 = vmul.f32 %v1221, %v162
    %v1332 = vmul.f32 %v1223, %v163
    %v1333 = vmul.f32 %v1225, %v164
    %v1334 = vmul.f32 %v1227, %v165
    %v1335 = vmul.f32 %v1229, %v166
    %v1336 = vmul.f32 %v1231, %v167
    %v1337 = vmul.f32 %v1233, %v168
    %v1338 = vmul.f32 %v1235, %v169
    %v1339 = vmul.f32 %v1237, %v170
    %v1340 = vmul.f32 %v1239, %v171
    %v1341 = vmul.f32 %v1241, %v172
    %v1342 = vmul.f32 %v1243, %v173
    %v1343 = vmul.f32 %v1245, %v174
    %v1344 = vmul.f32 %v1247, %v175
    %v1345 = vmul.f32 %v1249, %v176
    %v1346 = vmul.f32 %v1251, %v177
    %v1347 = vmul.f32 %v1253, %v178
    %v1348 = vmul.f32 %v1255, %v179
    %v1349 = vmul.f32 %v1257, %v180
    %v1350 = vmul.f32 %v1259, %v181
    %v1351 = vmul.f32 %v1261, %v182
    %v1352 = vmul.f32 %v1263, %v183
    %v1353 = vmul.f32 %v1265, %v184
    %v1354 = vmul.f32 %v1267, %v185
    %v1355 = vmul.f32 %v1269, %v186
    %v1356 = vmul.f32 %v1271, %v187
    %v1357 = vmul.f32 %v1273, %v188
    %v1358 = vmul.f32 %v1275, %v189
    %v1359 = vmul.f32 %v1277, %v190
    %v1360 = vmul.f32 %v1279, %v191
    %v1361 = vmul.f32 %v1281, %v192
    %v1362 = vmul.f32 %v1283, %v193
    %v1363 = vmul.f32 %v1285, %v194
    %v1364 = vmul.f32 %v1287, %v195
    %v1365 = vmul.f32 %v1289, %v196
    %v1366 = vmul.f32 %v1291, %v197
    %v1367 = vmul.f32 %v1293, %v198
    %v1368 = vmul.f32 %v1295, %v199
    %v1369 = vmul.f32 %v1297, %v200
    %v1370 = vmul.f32 %v1299, %v201
    %v1371 = vmul.f32 %v1301, %v202
    %v1372 = vmul.f32 %v1303, %v203
    %v1373 = vmul.f32 %v1305, %v204
    %v1374 = vmul.f32 %v1307, %v205
    %v1375 = vmul.f32 %v1309, %v206
    %v1376 = vmul.f32 %v1311, %v207
    %v1377 = vmul.f32 %v1313, %v208
    %1378 = vmatprep.subr.mxu0 %v1345
    %1379 = vmatpush1.msra.mxu0 %v1344
    %1380 = vmatprep.subr.mxu0 %v1343
    %1381 = vmatpush1.msra.mxu0 %v1342
    %1382 = vmatprep.subr.mxu0 %v1341
    %1383 = vmatpush1.msra.mxu0 %v1340
    %1384 = vmatprep.subr.mxu0 %v1339
    %1385 = vmatpush1.msra.mxu0 %v1338
    %1386 = vmatprep.subr.mxu0 %v1337
    %1387 = vmatpush1.msra.mxu0 %v1336
    %1388 = vmatprep.subr.mxu0 %v1335
    %1389 = vmatpush1.msra.mxu0 %v1334
    %1390 = vmatprep.subr.mxu0 %v1333
    %1391 = vmatpush1.msra.mxu0 %v1332
    %1392 = vmatprep.subr.mxu0 %v1331
    %1393 = vmatpush1.msra.mxu0 %v1330
    %1394 = vmatprep.subr.mxu0 %v1329
    %1395 = vmatpush1.msra.mxu0 %v1328
    %1396 = vmatprep.subr.mxu0 %v1327
    %1397 = vmatpush1.msra.mxu0 %v1326
    %1398 = vmatprep.subr.mxu0 %v1325
    %1399 = vmatpush1.msra.mxu0 %v1324
    %1400 = vmatprep.subr.mxu0 %v1323
    %1401 = vmatpush1.msra.mxu0 %v1322
    %1402 = vmatprep.subr.mxu0 %v1321
    %1403 = vmatpush1.msra.mxu0 %v1320
    %1404 = vmatprep.subr.mxu0 %v1319
    %1405 = vmatpush1.msra.mxu0 %v1318
    %1406 = vmatprep.subr.mxu0 %v1317
    %1407 = vmatpush1.msra.mxu0 %v1316
    %1408 = vmatprep.subr.mxu0 %v1315
    %1409 = vmatpush1.msra.mxu0 %v1314
    %1410 = vmatprep.subr.mxu0 %v1377
    %1411 = vmatpush2.msra.mxu0 %v1376
    %1412 = vmatprep.subr.mxu0 %v1375
    %1413 = vmatpush2.msra.mxu0 %v1374
    %1414 = vmatprep.subr.mxu0 %v1373
    %1415 = vmatpush2.msra.mxu0 %v1372
    %1416 = vmatprep.subr.mxu0 %v1371
    %1417 = vmatpush2.msra.mxu0 %v1370
    %1418 = vmatprep.subr.mxu0 %v1369
    %1419 = vmatpush2.msra.mxu0 %v1368
    %1420 = vmatprep.subr.mxu0 %v1367
    %1421 = vmatpush2.msra.mxu0 %v1366
    %1422 = vmatprep.subr.mxu0 %v1365
    %1423 = vmatpush2.msra.mxu0 %v1364
    %1424 = vmatprep.subr.mxu0 %v1363
    %1425 = vmatpush2.msra.mxu0 %v1362
    %1426 = vmatprep.subr.mxu0 %v1361
    %1427 = vmatpush2.msra.mxu0 %v1360
    %1428 = vmatprep.subr.mxu0 %v1359
    %1429 = vmatpush2.msra.mxu0 %v1358
    %1430 = vmatprep.subr.mxu0 %v1357
    %1431 = vmatpush2.msra.mxu0 %v1356
    %1432 = vmatprep.subr.mxu0 %v1355
    %1433 = vmatpush2.msra.mxu0 %v1354
    %1434 = vmatprep.subr.mxu0 %v1353
    %1435 = vmatpush2.msra.mxu0 %v1352
    %1436 = vmatprep.subr.mxu0 %v1351
    %1437 = vmatpush2.msra.mxu0 %v1350
    %1438 = vmatprep.subr.mxu0 %v1349
    %1439 = vmatpush2.msra.mxu0 %v1348
    %1440 = vmatprep.subr.mxu0 %v1347
    %1441 = vmatpush2.msra.mxu0 %v1346
    %1442 = vmatprep.mubr.f32.mxu0 %v210
    %1443 = vmatmul.mubr.f32.gmra.mxu0 %v209
    %v1444 = vpop.f32.mrf.mxu0
    %v1445 = vadd.f32 0.0, %v1444
    %v1446 = vpop.f32.mrf.mxu0
    %v1447 = vadd.f32 0.0, %v1446
    %1448 = vmatprep.mubr.f32.mxu0 %v212
    %1449 = vmatmul.mubr.f32.gmra.mxu0 %v211
    %v1450 = vpop.f32.mrf.mxu0
    %v1451 = vadd.f32 0.0, %v1450
    %v1452 = vpop.f32.mrf.mxu0
    %v1453 = vadd.f32 0.0, %v1452
    %1454 = vmatprep.mubr.f32.mxu0 %v214
    %1455 = vmatmul.mubr.f32.gmra.mxu0 %v213
    %v1456 = vpop.f32.mrf.mxu0
    %v1457 = vadd.f32 0.0, %v1456
    %v1458 = vpop.f32.mrf.mxu0
    %v1459 = vadd.f32 0.0, %v1458
    %1460 = vmatprep.mubr.f32.mxu0 %v216
    %1461 = vmatmul.mubr.f32.gmra.mxu0 %v215
    %v1462 = vpop.f32.mrf.mxu0
    %v1463 = vadd.f32 0.0, %v1462
    %v1464 = vpop.f32.mrf.mxu0
    %v1465 = vadd.f32 0.0, %v1464
    %1466 = vdwg.mxu0
    %1467 = vmatprep.subr.mxu0 0.0
    %1468 = vmatpush1.msra.mxu0 %v248
    %1469 = vmatprep.subr.mxu0 0.0
    %1470 = vmatpush1.msra.mxu0 %v247
    %1471 = vmatprep.subr.mxu0 0.0
    %1472 = vmatpush1.msra.mxu0 %v246
    %1473 = vmatprep.subr.mxu0 0.0
    %1474 = vmatpush1.msra.mxu0 %v245
    %1475 = vmatprep.subr.mxu0 0.0
    %1476 = vmatpush1.msra.mxu0 %v244
    %1477 = vmatprep.subr.mxu0 0.0
    %1478 = vmatpush1.msra.mxu0 %v243
    %1479 = vmatprep.subr.mxu0 0.0
    %1480 = vmatpush1.msra.mxu0 %v242
    %1481 = vmatprep.subr.mxu0 0.0
    %1482 = vmatpush1.msra.mxu0 %v241
    %1483 = vmatprep.subr.mxu0 0.0
    %1484 = vmatpush1.msra.mxu0 %v240
    %1485 = vmatprep.subr.mxu0 0.0
    %1486 = vmatpush1.msra.mxu0 %v239
    %1487 = vmatprep.subr.mxu0 0.0
    %1488 = vmatpush1.msra.mxu0 %v238
    %1489 = vmatprep.subr.mxu0 0.0
    %1490 = vmatpush1.msra.mxu0 %v237
    %1491 = vmatprep.subr.mxu0 0.0
    %1492 = vmatpush1.msra.mxu0 %v236
    %1493 = vmatprep.subr.mxu0 0.0
    %1494 = vmatpush1.msra.mxu0 %v235
    %1495 = vmatprep.subr.mxu0 0.0
    %1496 = vmatpush1.msra.mxu0 %v234
    %1497 = vmatprep.subr.mxu0 0.0
    %1498 = vmatpush1.msra.mxu0 %v233
    %1499 = vmatprep.subr.mxu0 0.0
    %1500 = vmatpush2.msra.mxu0 %v264
    %1501 = vmatprep.subr.mxu0 0.0
    %1502 = vmatpush2.msra.mxu0 %v263
    %1503 = vmatprep.subr.mxu0 0.0
    %1504 = vmatpush2.msra.mxu0 %v262
    %1505 = vmatprep.subr.mxu0 0.0
    %1506 = vmatpush2.msra.mxu0 %v261
    %1507 = vmatprep.subr.mxu0 0.0
    %1508 = vmatpush2.msra.mxu0 %v260
    %1509 = vmatprep.subr.mxu0 0.0
    %1510 = vmatpush2.msra.mxu0 %v259
    %1511 = vmatprep.subr.mxu0 0.0
    %1512 = vmatpush2.msra.mxu0 %v258
    %1513 = vmatprep.subr.mxu0 0.0
    %1514 = vmatpush2.msra.mxu0 %v257
    %1515 = vmatprep.subr.mxu0 0.0
    %1516 = vmatpush2.msra.mxu0 %v256
    %1517 = vmatprep.subr.mxu0 0.0
    %1518 = vmatpush2.msra.mxu0 %v255
    %1519 = vmatprep.subr.mxu0 0.0
    %1520 = vmatpush2.msra.mxu0 %v254
    %1521 = vmatprep.subr.mxu0 0.0
    %1522 = vmatpush2.msra.mxu0 %v253
    %1523 = vmatprep.subr.mxu0 0.0
    %1524 = vmatpush2.msra.mxu0 %v252
    %1525 = vmatprep.subr.mxu0 0.0
    %1526 = vmatpush2.msra.mxu0 %v251
    %1527 = vmatprep.subr.mxu0 0.0
    %1528 = vmatpush2.msra.mxu0 %v250
    %1529 = vmatprep.subr.mxu0 0.0
    %1530 = vmatpush2.msra.mxu0 %v249
    %1531 = vmatprep.mubr.f32.mxu0 %v1447
    %1532 = vmatmul.mubr.f32.gmra.mxu0 %v1445
    %v1533 = vpop.f32.mrf.mxu0
    %v1534 = vadd.f32 0.0, %v1533
    %v1535 = vpop.f32.mrf.mxu0
    %1536 = vmatprep.mubr.f32.mxu0 %v1453
    %1537 = vmatmul.mubr.f32.gmra.mxu0 %v1451
    %v1538 = vpop.f32.mrf.mxu0
    %v1539 = vadd.f32 0.0, %v1538
    %v1540 = vpop.f32.mrf.mxu0
    %1541 = vmatprep.mubr.f32.mxu0 %v1459
    %1542 = vmatmul.mubr.f32.gmra.mxu0 %v1457
    %v1543 = vpop.f32.mrf.mxu0
    %v1544 = vadd.f32 0.0, %v1543
    %v1545 = vpop.f32.mrf.mxu0
    %1546 = vmatprep.mubr.f32.mxu0 %v1465
    %1547 = vmatmul.mubr.f32.gmra.mxu0 %v1463
    %v1548 = vpop.f32.mrf.mxu0
    %v1549 = vadd.f32 0.0, %v1548
    %v1550 = vpop.f32.mrf.mxu0
    %1551 = vdwg.mxu0
    %v1552 = vld [vmem:[%s1] sm:$0xff]
    %v1553 = vld [vmem:[%s1 + $0x8] sm:$0xff]
    %v1554 = vld [vmem:[%s1 + $0x10] sm:$0xff]
    %v1555 = vld [vmem:[%s1 + $0x18] sm:$0xff]
    %v1556 = vld [vmem:[%s1 + $0x20] sm:$0xff]
    %v1557 = vld [vmem:[%s1 + $0x28] sm:$0xff]
    %v1558 = vld [vmem:[%s1 + $0x30] sm:$0xff]
    %v1559 = vld [vmem:[%s1 + $0x38] sm:$0xff]
    %v1560 = vld [vmem:[%s1 + $0x40] sm:$0xff]
    %v1561 = vld [vmem:[%s1 + $0x48] sm:$0xff]
    %v1562 = vld [vmem:[%s1 + $0x50] sm:$0xff]
    %v1563 = vld [vmem:[%s1 + $0x58] sm:$0xff]
    %v1564 = vld [vmem:[%s1 + $0x60] sm:$0xff]
    %v1565 = vld [vmem:[%s1 + $0x68] sm:$0xff]
    %v1566 = vld [vmem:[%s1 + $0x70] sm:$0xff]
    %v1567 = vld [vmem:[%s1 + $0x78] sm:$0xff]
    %v1568 = vld [vmem:[%s1 + $0x80] sm:$0xff]
    %v1569 = vld [vmem:[%s1 + $0x88] sm:$0xff]
    %v1570 = vld [vmem:[%s1 + $0x90] sm:$0xff]
    %v1571 = vld [vmem:[%s1 + $0x98] sm:$0xff]
    %v1572 = vld [vmem:[%s1 + $0xa0] sm:$0xff]
    %v1573 = vld [vmem:[%s1 + $0xa8] sm:$0xff]
    %v1574 = vld [vmem:[%s1 + $0xb0] sm:$0xff]
    %v1575 = vld [vmem:[%s1 + $0xb8] sm:$0xff]
    %v1576 = vld [vmem:[%s1 + $0xc0] sm:$0xff]
    %v1577 = vld [vmem:[%s1 + $0xc8] sm:$0xff]
    %v1578 = vld [vmem:[%s1 + $0xd0] sm:$0xff]
    %v1579 = vld [vmem:[%s1 + $0xd8] sm:$0xff]
    %v1580 = vld [vmem:[%s1 + $0xe0] sm:$0xff]
    %v1581 = vld [vmem:[%s1 + $0xe8] sm:$0xff]
    %v1582 = vld [vmem:[%s1 + $0xf0] sm:$0xff]
    %v1583 = vld [vmem:[%s1 + $0xf8] sm:$0xff]
    %v1584 = vld [vmem:[%s4] sm:$0xff]
    %v1585 = vld [vmem:[%s4 + $0x8] sm:$0xff]
    %v1586 = vld [vmem:[%s4 + $0x10] sm:$0xff]
    %v1587 = vld [vmem:[%s4 + $0x18] sm:$0xff]
    %v1588 = vld [vmem:[%s4 + $0x20] sm:$0xff]
    %v1589 = vld [vmem:[%s4 + $0x28] sm:$0xff]
    %v1590 = vld [vmem:[%s4 + $0x30] sm:$0xff]
    %v1591 = vld [vmem:[%s4 + $0x38] sm:$0xff]
    %v1592 = vld [vmem:[%s4 + $0x40] sm:$0xff]
    %v1593 = vld [vmem:[%s4 + $0x48] sm:$0xff]
    %v1594 = vld [vmem:[%s4 + $0x50] sm:$0xff]
    %v1595 = vld [vmem:[%s4 + $0x58] sm:$0xff]
    %v1596 = vld [vmem:[%s4 + $0x60] sm:$0xff]
    %v1597 = vld [vmem:[%s4 + $0x68] sm:$0xff]
    %v1598 = vld [vmem:[%s4 + $0x70] sm:$0xff]
    %v1599 = vld [vmem:[%s4 + $0x78] sm:$0xff]
    %v1600 = vld [vmem:[#allocation4] sm:$0x1]
    %v1602 = vlaneseq
    %v1603 = vshrl.u32 %v1602, 7
    %v1604 = vsub.s32 0, %v1603
    %v1605 = vrot.slane %v1600, %v1604
    %1607 = vmatprep.subr.mxu0 0.0
    %1608 = vmatpush1.msra.mxu0 %v1599
    %1609 = vmatprep.subr.mxu0 0.0
    %1610 = vmatpush1.msra.mxu0 %v1598
    %1611 = vmatprep.subr.mxu0 0.0
    %1612 = vmatpush1.msra.mxu0 %v1597
    %1613 = vmatprep.subr.mxu0 0.0
    %1614 = vmatpush1.msra.mxu0 %v1596
    %1615 = vmatprep.subr.mxu0 0.0
    %1616 = vmatpush1.msra.mxu0 %v1595
    %1617 = vmatprep.subr.mxu0 0.0
    %1618 = vmatpush1.msra.mxu0 %v1594
    %1619 = vmatprep.subr.mxu0 0.0
    %1620 = vmatpush1.msra.mxu0 %v1593
    %1621 = vmatprep.subr.mxu0 0.0
    %1622 = vmatpush1.msra.mxu0 %v1592
    %1623 = vmatprep.subr.mxu0 0.0
    %1624 = vmatpush1.msra.mxu0 %v1591
    %1625 = vmatprep.subr.mxu0 0.0
    %1626 = vmatpush1.msra.mxu0 %v1590
    %1627 = vmatprep.subr.mxu0 0.0
    %1628 = vmatpush1.msra.mxu0 %v1589
    %1629 = vmatprep.subr.mxu0 0.0
    %1630 = vmatpush1.msra.mxu0 %v1588
    %1631 = vmatprep.subr.mxu0 0.0
    %1632 = vmatpush1.msra.mxu0 %v1587
    %1633 = vmatprep.subr.mxu0 0.0
    %1634 = vmatpush1.msra.mxu0 %v1586
    %1635 = vmatprep.subr.mxu0 0.0
    %1636 = vmatpush1.msra.mxu0 %v1585
    %1637 = vmatprep.subr.mxu0 0.0
    %1638 = vmatpush1.msra.mxu0 %v1584
    %1639 = vmatprep.subr.mxu0 0.0
    %1640 = vmatpush2.msra.mxu0 0.0
    %1641 = vmatprep.subr.mxu0 0.0
    %1642 = vmatpush2.msra.mxu0 0.0
    %1643 = vmatprep.subr.mxu0 0.0
    %1644 = vmatpush2.msra.mxu0 0.0
    %1645 = vmatprep.subr.mxu0 0.0
    %1646 = vmatpush2.msra.mxu0 0.0
    %1647 = vmatprep.subr.mxu0 0.0
    %1648 = vmatpush2.msra.mxu0 0.0
    %1649 = vmatprep.subr.mxu0 0.0
    %1650 = vmatpush2.msra.mxu0 0.0
    %1651 = vmatprep.subr.mxu0 0.0
    %1652 = vmatpush2.msra.mxu0 0.0
    %1653 = vmatprep.subr.mxu0 0.0
    %1654 = vmatpush2.msra.mxu0 0.0
    %1655 = vmatprep.subr.mxu0 0.0
    %1656 = vmatpush2.msra.mxu0 0.0
    %1657 = vmatprep.subr.mxu0 0.0
    %1658 = vmatpush2.msra.mxu0 0.0
    %1659 = vmatprep.subr.mxu0 0.0
    %1660 = vmatpush2.msra.mxu0 0.0
    %1661 = vmatprep.subr.mxu0 0.0
    %1662 = vmatpush2.msra.mxu0 0.0
    %1663 = vmatprep.subr.mxu0 0.0
    %1664 = vmatpush2.msra.mxu0 0.0
    %1665 = vmatprep.subr.mxu0 0.0
    %1666 = vmatpush2.msra.mxu0 0.0
    %1667 = vmatprep.subr.mxu0 0.0
    %1668 = vmatpush2.msra.mxu0 0.0
    %1669 = vmatprep.subr.mxu0 0.0
    %1670 = vmatpush2.msra.mxu0 0.0
    %1671 = vmatprep.mubr.f32.mxu0 0.0
    %1672 = vmatmul.mubr.f32.gmra.mxu0 %v1552
    %v1673 = vpop.f32.mrf.mxu0
    %v1674 = vadd.f32 %v1605, %v1673
    %v1675 = vpop.f32.mrf.mxu0
    %1676 = vmatprep.mubr.f32.mxu0 0.0
    %1677 = vmatmul.mubr.f32.gmra.mxu0 %v1553
    %v1678 = vpop.f32.mrf.mxu0
    %v1679 = vadd.f32 %v1605, %v1678
    %v1680 = vpop.f32.mrf.mxu0
    %1681 = vmatprep.mubr.f32.mxu0 0.0
    %1682 = vmatmul.mubr.f32.gmra.mxu0 %v1554
    %v1683 = vpop.f32.mrf.mxu0
    %v1684 = vadd.f32 %v1605, %v1683
    %v1685 = vpop.f32.mrf.mxu0
    %1686 = vmatprep.mubr.f32.mxu0 0.0
    %1687 = vmatmul.mubr.f32.gmra.mxu0 %v1555
    %v1688 = vpop.f32.mrf.mxu0
    %v1689 = vadd.f32 %v1605, %v1688
    %v1690 = vpop.f32.mrf.mxu0
    %1691 = vmatprep.mubr.f32.mxu0 0.0
    %1692 = vmatmul.mubr.f32.gmra.mxu0 %v1556
    %v1693 = vpop.f32.mrf.mxu0
    %v1694 = vadd.f32 %v1605, %v1693
    %v1695 = vpop.f32.mrf.mxu0
    %1696 = vmatprep.mubr.f32.mxu0 0.0
    %1697 = vmatmul.mubr.f32.gmra.mxu0 %v1557
    %v1698 = vpop.f32.mrf.mxu0
    %v1699 = vadd.f32 %v1605, %v1698
    %v1700 = vpop.f32.mrf.mxu0
    %1701 = vmatprep.mubr.f32.mxu0 0.0
    %1702 = vmatmul.mubr.f32.gmra.mxu0 %v1558
    %v1703 = vpop.f32.mrf.mxu0
    %v1704 = vadd.f32 %v1605, %v1703
    %v1705 = vpop.f32.mrf.mxu0
    %1706 = vmatprep.mubr.f32.mxu0 0.0
    %1707 = vmatmul.mubr.f32.gmra.mxu0 %v1559
    %v1708 = vpop.f32.mrf.mxu0
    %v1709 = vadd.f32 %v1605, %v1708
    %v1710 = vpop.f32.mrf.mxu0
    %1711 = vmatprep.mubr.f32.mxu0 0.0
    %1712 = vmatmul.mubr.f32.gmra.mxu0 %v1560
    %v1713 = vpop.f32.mrf.mxu0
    %v1714 = vadd.f32 %v1605, %v1713
    %v1715 = vpop.f32.mrf.mxu0
    %1716 = vmatprep.mubr.f32.mxu0 0.0
    %1717 = vmatmul.mubr.f32.gmra.mxu0 %v1561
    %v1718 = vpop.f32.mrf.mxu0
    %v1719 = vadd.f32 %v1605, %v1718
    %v1720 = vpop.f32.mrf.mxu0
    %1721 = vmatprep.mubr.f32.mxu0 0.0
    %1722 = vmatmul.mubr.f32.gmra.mxu0 %v1562
    %v1723 = vpop.f32.mrf.mxu0
    %v1724 = vadd.f32 %v1605, %v1723
    %v1725 = vpop.f32.mrf.mxu0
    %1726 = vmatprep.mubr.f32.mxu0 0.0
    %1727 = vmatmul.mubr.f32.gmra.mxu0 %v1563
    %v1728 = vpop.f32.mrf.mxu0
    %v1729 = vadd.f32 %v1605, %v1728
    %v1730 = vpop.f32.mrf.mxu0
    %1731 = vmatprep.mubr.f32.mxu0 0.0
    %1732 = vmatmul.mubr.f32.gmra.mxu0 %v1564
    %v1733 = vpop.f32.mrf.mxu0
    %v1734 = vadd.f32 %v1605, %v1733
    %v1735 = vpop.f32.mrf.mxu0
    %1736 = vmatprep.mubr.f32.mxu0 0.0
    %1737 = vmatmul.mubr.f32.gmra.mxu0 %v1565
    %v1738 = vpop.f32.mrf.mxu0
    %v1739 = vadd.f32 %v1605, %v1738
    %v1740 = vpop.f32.mrf.mxu0
    %1741 = vmatprep.mubr.f32.mxu0 0.0
    %1742 = vmatmul.mubr.f32.gmra.mxu0 %v1566
    %v1743 = vpop.f32.mrf.mxu0
    %v1744 = vadd.f32 %v1605, %v1743
    %v1745 = vpop.f32.mrf.mxu0
    %1746 = vmatprep.mubr.f32.mxu0 0.0
    %1747 = vmatmul.mubr.f32.gmra.mxu0 %v1567
    %v1748 = vpop.f32.mrf.mxu0
    %v1749 = vadd.f32 %v1605, %v1748
    %v1750 = vpop.f32.mrf.mxu0
    %1751 = vmatprep.mubr.f32.mxu0 0.0
    %1752 = vmatmul.mubr.f32.gmra.mxu0 %v1568
    %v1753 = vpop.f32.mrf.mxu0
    %v1754 = vadd.f32 %v1605, %v1753
    %v1755 = vpop.f32.mrf.mxu0
    %1756 = vmatprep.mubr.f32.mxu0 0.0
    %1757 = vmatmul.mubr.f32.gmra.mxu0 %v1569
    %v1758 = vpop.f32.mrf.mxu0
    %v1759 = vadd.f32 %v1605, %v1758
    %v1760 = vpop.f32.mrf.mxu0
    %1761 = vmatprep.mubr.f32.mxu0 0.0
    %1762 = vmatmul.mubr.f32.gmra.mxu0 %v1570
    %v1763 = vpop.f32.mrf.mxu0
    %v1764 = vadd.f32 %v1605, %v1763
    %v1765 = vpop.f32.mrf.mxu0
    %1766 = vmatprep.mubr.f32.mxu0 0.0
    %1767 = vmatmul.mubr.f32.gmra.mxu0 %v1571
    %v1768 = vpop.f32.mrf.mxu0
    %v1769 = vadd.f32 %v1605, %v1768
    %v1770 = vpop.f32.mrf.mxu0
    %1771 = vmatprep.mubr.f32.mxu0 0.0
    %1772 = vmatmul.mubr.f32.gmra.mxu0 %v1572
    %v1773 = vpop.f32.mrf.mxu0
    %v1774 = vadd.f32 %v1605, %v1773
    %v1775 = vpop.f32.mrf.mxu0
    %1776 = vmatprep.mubr.f32.mxu0 0.0
    %1777 = vmatmul.mubr.f32.gmra.mxu0 %v1573
    %v1778 = vpop.f32.mrf.mxu0
    %v1779 = vadd.f32 %v1605, %v1778
    %v1780 = vpop.f32.mrf.mxu0
    %1781 = vmatprep.mubr.f32.mxu0 0.0
    %1782 = vmatmul.mubr.f32.gmra.mxu0 %v1574
    %v1783 = vpop.f32.mrf.mxu0
    %v1784 = vadd.f32 %v1605, %v1783
    %v1785 = vpop.f32.mrf.mxu0
    %1786 = vmatprep.mubr.f32.mxu0 0.0
    %1787 = vmatmul.mubr.f32.gmra.mxu0 %v1575
    %v1788 = vpop.f32.mrf.mxu0
    %v1789 = vadd.f32 %v1605, %v1788
    %v1790 = vpop.f32.mrf.mxu0
    %1791 = vmatprep.mubr.f32.mxu0 0.0
    %1792 = vmatmul.mubr.f32.gmra.mxu0 %v1576
    %v1793 = vpop.f32.mrf.mxu0
    %v1794 = vadd.f32 %v1605, %v1793
    %v1795 = vpop.f32.mrf.mxu0
    %1796 = vmatprep.mubr.f32.mxu0 0.0
    %1797 = vmatmul.mubr.f32.gmra.mxu0 %v1577
    %v1798 = vpop.f32.mrf.mxu0
    %v1799 = vadd.f32 %v1605, %v1798
    %v1800 = vpop.f32.mrf.mxu0
    %1801 = vmatprep.mubr.f32.mxu0 0.0
    %1802 = vmatmul.mubr.f32.gmra.mxu0 %v1578
    %v1803 = vpop.f32.mrf.mxu0
    %v1804 = vadd.f32 %v1605, %v1803
    %v1805 = vpop.f32.mrf.mxu0
    %1806 = vmatprep.mubr.f32.mxu0 0.0
    %1807 = vmatmul.mubr.f32.gmra.mxu0 %v1579
    %v1808 = vpop.f32.mrf.mxu0
    %v1809 = vadd.f32 %v1605, %v1808
    %v1810 = vpop.f32.mrf.mxu0
    %1811 = vmatprep.mubr.f32.mxu0 0.0
    %1812 = vmatmul.mubr.f32.gmra.mxu0 %v1580
    %v1813 = vpop.f32.mrf.mxu0
    %v1814 = vadd.f32 %v1605, %v1813
    %v1815 = vpop.f32.mrf.mxu0
    %1816 = vmatprep.mubr.f32.mxu0 0.0
    %1817 = vmatmul.mubr.f32.gmra.mxu0 %v1581
    %v1818 = vpop.f32.mrf.mxu0
    %v1819 = vadd.f32 %v1605, %v1818
    %v1820 = vpop.f32.mrf.mxu0
    %1821 = vmatprep.mubr.f32.mxu0 0.0
    %1822 = vmatmul.mubr.f32.gmra.mxu0 %v1582
    %v1823 = vpop.f32.mrf.mxu0
    %v1824 = vadd.f32 %v1605, %v1823
    %v1825 = vpop.f32.mrf.mxu0
    %1826 = vmatprep.mubr.f32.mxu0 0.0
    %1827 = vmatmul.mubr.f32.gmra.mxu0 %v1583
    %v1828 = vpop.f32.mrf.mxu0
    %v1829 = vadd.f32 %v1605, %v1828
    %v1830 = vpop.f32.mrf.mxu0
    %1831 = vdwg.mxu0
    %v1832 = vmax.f32 %v1674, 0.0
    %v1833 = vmax.f32 %v1679, 0.0
    %v1834 = vmax.f32 %v1684, 0.0
    %v1835 = vmax.f32 %v1689, 0.0
    %v1836 = vmax.f32 %v1694, 0.0
    %v1837 = vmax.f32 %v1699, 0.0
    %v1838 = vmax.f32 %v1704, 0.0
    %v1839 = vmax.f32 %v1709, 0.0
    %v1840 = vmax.f32 %v1714, 0.0
    %v1841 = vmax.f32 %v1719, 0.0
    %v1842 = vmax.f32 %v1724, 0.0
    %v1843 = vmax.f32 %v1729, 0.0
    %v1844 = vmax.f32 %v1734, 0.0
    %v1845 = vmax.f32 %v1739, 0.0
    %v1846 = vmax.f32 %v1744, 0.0
    %v1847 = vmax.f32 %v1749, 0.0
    %v1848 = vmax.f32 %v1754, 0.0
    %v1849 = vmax.f32 %v1759, 0.0
    %v1850 = vmax.f32 %v1764, 0.0
    %v1851 = vmax.f32 %v1769, 0.0
    %v1852 = vmax.f32 %v1774, 0.0
    %v1853 = vmax.f32 %v1779, 0.0
    %v1854 = vmax.f32 %v1784, 0.0
    %v1855 = vmax.f32 %v1789, 0.0
    %v1856 = vmax.f32 %v1794, 0.0
    %v1857 = vmax.f32 %v1799, 0.0
    %v1858 = vmax.f32 %v1804, 0.0
    %v1859 = vmax.f32 %v1809, 0.0
    %v1860 = vmax.f32 %v1814, 0.0
    %v1861 = vmax.f32 %v1819, 0.0
    %v1862 = vmax.f32 %v1824, 0.0
    %v1863 = vmax.f32 %v1829, 0.0
    %1864 = vmatprep.subr.mxu0 0.0
    %1865 = vmatpush1.xpose.msra.mxu0 %v1847
    %1866 = vmatprep.subr.mxu0 0.0
    %1867 = vmatpush1.xpose.msra.mxu0 %v1846
    %1868 = vmatprep.subr.mxu0 0.0
    %1869 = vmatpush1.xpose.msra.mxu0 %v1845
    %1870 = vmatprep.subr.mxu0 0.0
    %1871 = vmatpush1.xpose.msra.mxu0 %v1844
    %1872 = vmatprep.subr.mxu0 0.0
    %1873 = vmatpush1.xpose.msra.mxu0 %v1843
    %1874 = vmatprep.subr.mxu0 0.0
    %1875 = vmatpush1.xpose.msra.mxu0 %v1842
    %1876 = vmatprep.subr.mxu0 0.0
    %1877 = vmatpush1.xpose.msra.mxu0 %v1841
    %1878 = vmatprep.subr.mxu0 0.0
    %1879 = vmatpush1.xpose.msra.mxu0 %v1840
    %1880 = vmatprep.subr.mxu0 0.0
    %1881 = vmatpush1.xpose.msra.mxu0 %v1839
    %1882 = vmatprep.subr.mxu0 0.0
    %1883 = vmatpush1.xpose.msra.mxu0 %v1838
    %1884 = vmatprep.subr.mxu0 0.0
    %1885 = vmatpush1.xpose.msra.mxu0 %v1837
    %1886 = vmatprep.subr.mxu0 0.0
    %1887 = vmatpush1.xpose.msra.mxu0 %v1836
    %1888 = vmatprep.subr.mxu0 0.0
    %1889 = vmatpush1.xpose.msra.mxu0 %v1835
    %1890 = vmatprep.subr.mxu0 0.0
    %1891 = vmatpush1.xpose.msra.mxu0 %v1834
    %1892 = vmatprep.subr.mxu0 0.0
    %1893 = vmatpush1.xpose.msra.mxu0 %v1833
    %1894 = vmatprep.subr.mxu0 0.0
    %1895 = vmatpush1.xpose.msra.mxu0 %v1832
    %1896 = vmatprep.subr.mxu0 0.0
    %1897 = vmatpush2.xpose.msra.mxu0 %v1863
    %1898 = vmatprep.subr.mxu0 0.0
    %1899 = vmatpush2.xpose.msra.mxu0 %v1862
    %1900 = vmatprep.subr.mxu0 0.0
    %1901 = vmatpush2.xpose.msra.mxu0 %v1861
    %1902 = vmatprep.subr.mxu0 0.0
    %1903 = vmatpush2.xpose.msra.mxu0 %v1860
    %1904 = vmatprep.subr.mxu0 0.0
    %1905 = vmatpush2.xpose.msra.mxu0 %v1859
    %1906 = vmatprep.subr.mxu0 0.0
    %1907 = vmatpush2.xpose.msra.mxu0 %v1858
    %1908 = vmatprep.subr.mxu0 0.0
    %1909 = vmatpush2.xpose.msra.mxu0 %v1857
    %1910 = vmatprep.subr.mxu0 0.0
    %1911 = vmatpush2.xpose.msra.mxu0 %v1856
    %1912 = vmatprep.subr.mxu0 0.0
    %1913 = vmatpush2.xpose.msra.mxu0 %v1855
    %1914 = vmatprep.subr.mxu0 0.0
    %1915 = vmatpush2.xpose.msra.mxu0 %v1854
    %1916 = vmatprep.subr.mxu0 0.0
    %1917 = vmatpush2.xpose.msra.mxu0 %v1853
    %1918 = vmatprep.subr.mxu0 0.0
    %1919 = vmatpush2.xpose.msra.mxu0 %v1852
    %1920 = vmatprep.subr.mxu0 0.0
    %1921 = vmatpush2.xpose.msra.mxu0 %v1851
    %1922 = vmatprep.subr.mxu0 0.0
    %1923 = vmatpush2.xpose.msra.mxu0 %v1850
    %1924 = vmatprep.subr.mxu0 0.0
    %1925 = vmatpush2.xpose.msra.mxu0 %v1849
    %1926 = vmatprep.subr.mxu0 0.0
    %1927 = vmatpush2.xpose.msra.mxu0 %v1848
    %1928 = vmatprep.mubr.f32.mxu0 0.0
    %1929 = vmatmul.mubr.f32.gmra.mxu0 %v1832
    %v1930 = vpop.f32.mrf.mxu0
    %v1931 = vadd.f32 0.0, %v1930
    %v1932 = vpop.f32.mrf.mxu0
    %v1933 = vadd.f32 0.0, %v1932
    %1934 = vmatprep.mubr.f32.mxu0 0.0
    %1935 = vmatmul.mubr.f32.gmra.mxu0 %v1833
    %v1936 = vpop.f32.mrf.mxu0
    %v1937 = vadd.f32 0.0, %v1936
    %v1938 = vpop.f32.mrf.mxu0
    %v1939 = vadd.f32 0.0, %v1938
    %1940 = vmatprep.mubr.f32.mxu0 0.0
    %1941 = vmatmul.mubr.f32.gmra.mxu0 %v1834
    %v1942 = vpop.f32.mrf.mxu0
    %v1943 = vadd.f32 0.0, %v1942
    %v1944 = vpop.f32.mrf.mxu0
    %v1945 = vadd.f32 0.0, %v1944
    %1946 = vmatprep.mubr.f32.mxu0 0.0
    %1947 = vmatmul.mubr.f32.gmra.mxu0 %v1835
    %v1948 = vpop.f32.mrf.mxu0
    %v1949 = vadd.f32 0.0, %v1948
    %v1950 = vpop.f32.mrf.mxu0
    %v1951 = vadd.f32 0.0, %v1950
    %1952 = vmatprep.mubr.f32.mxu0 0.0
    %1953 = vmatmul.mubr.f32.gmra.mxu0 %v1836
    %v1954 = vpop.f32.mrf.mxu0
    %v1955 = vadd.f32 0.0, %v1954
    %v1956 = vpop.f32.mrf.mxu0
    %v1957 = vadd.f32 0.0, %v1956
    %1958 = vmatprep.mubr.f32.mxu0 0.0
    %1959 = vmatmul.mubr.f32.gmra.mxu0 %v1837
    %v1960 = vpop.f32.mrf.mxu0
    %v1961 = vadd.f32 0.0, %v1960
    %v1962 = vpop.f32.mrf.mxu0
    %v1963 = vadd.f32 0.0, %v1962
    %1964 = vmatprep.mubr.f32.mxu0 0.0
    %1965 = vmatmul.mubr.f32.gmra.mxu0 %v1838
    %v1966 = vpop.f32.mrf.mxu0
    %v1967 = vadd.f32 0.0, %v1966
    %v1968 = vpop.f32.mrf.mxu0
    %v1969 = vadd.f32 0.0, %v1968
    %1970 = vmatprep.mubr.f32.mxu0 0.0
    %1971 = vmatmul.mubr.f32.gmra.mxu0 %v1839
    %v1972 = vpop.f32.mrf.mxu0
    %v1973 = vadd.f32 0.0, %v1972
    %v1974 = vpop.f32.mrf.mxu0
    %v1975 = vadd.f32 0.0, %v1974
    %1976 = vmatprep.mubr.f32.mxu0 0.0
    %1977 = vmatmul.mubr.f32.gmra.mxu0 %v1840
    %v1978 = vpop.f32.mrf.mxu0
    %v1979 = vadd.f32 0.0, %v1978
    %v1980 = vpop.f32.mrf.mxu0
    %v1981 = vadd.f32 0.0, %v1980
    %1982 = vmatprep.mubr.f32.mxu0 0.0
    %1983 = vmatmul.mubr.f32.gmra.mxu0 %v1841
    %v1984 = vpop.f32.mrf.mxu0
    %v1985 = vadd.f32 0.0, %v1984
    %v1986 = vpop.f32.mrf.mxu0
    %v1987 = vadd.f32 0.0, %v1986
    %1988 = vmatprep.mubr.f32.mxu0 0.0
    %1989 = vmatmul.mubr.f32.gmra.mxu0 %v1842
    %v1990 = vpop.f32.mrf.mxu0
    %v1991 = vadd.f32 0.0, %v1990
    %v1992 = vpop.f32.mrf.mxu0
    %v1993 = vadd.f32 0.0, %v1992
    %1994 = vmatprep.mubr.f32.mxu0 0.0
    %1995 = vmatmul.mubr.f32.gmra.mxu0 %v1843
    %v1996 = vpop.f32.mrf.mxu0
    %v1997 = vadd.f32 0.0, %v1996
    %v1998 = vpop.f32.mrf.mxu0
    %v1999 = vadd.f32 0.0, %v1998
    %2000 = vmatprep.mubr.f32.mxu0 0.0
    %2001 = vmatmul.mubr.f32.gmra.mxu0 %v1844
    %v2002 = vpop.f32.mrf.mxu0
    %v2003 = vadd.f32 0.0, %v2002
    %v2004 = vpop.f32.mrf.mxu0
    %v2005 = vadd.f32 0.0, %v2004
    %2006 = vmatprep.mubr.f32.mxu0 0.0
    %2007 = vmatmul.mubr.f32.gmra.mxu0 %v1845
    %v2008 = vpop.f32.mrf.mxu0
    %v2009 = vadd.f32 0.0, %v2008
    %v2010 = vpop.f32.mrf.mxu0
    %v2011 = vadd.f32 0.0, %v2010
    %2012 = vmatprep.mubr.f32.mxu0 0.0
    %2013 = vmatmul.mubr.f32.gmra.mxu0 %v1846
    %v2014 = vpop.f32.mrf.mxu0
    %v2015 = vadd.f32 0.0, %v2014
    %v2016 = vpop.f32.mrf.mxu0
    %v2017 = vadd.f32 0.0, %v2016
    %2018 = vmatprep.mubr.f32.mxu0 0.0
    %2019 = vmatmul.mubr.f32.gmra.mxu0 %v1847
    %v2020 = vpop.f32.mrf.mxu0
    %v2021 = vadd.f32 0.0, %v2020
    %v2022 = vpop.f32.mrf.mxu0
    %v2023 = vadd.f32 0.0, %v2022
    %2024 = vmatprep.mubr.f32.mxu0 0.0
    %2025 = vmatmul.mubr.f32.gmra.mxu0 %v1848
    %v2026 = vpop.f32.mrf.mxu0
    %v2027 = vadd.f32 0.0, %v2026
    %v2028 = vpop.f32.mrf.mxu0
    %v2029 = vadd.f32 0.0, %v2028
    %2030 = vmatprep.mubr.f32.mxu0 0.0
    %2031 = vmatmul.mubr.f32.gmra.mxu0 %v1849
    %v2032 = vpop.f32.mrf.mxu0
    %v2033 = vadd.f32 0.0, %v2032
    %v2034 = vpop.f32.mrf.mxu0
    %v2035 = vadd.f32 0.0, %v2034
    %2036 = vmatprep.mubr.f32.mxu0 0.0
    %2037 = vmatmul.mubr.f32.gmra.mxu0 %v1850
    %v2038 = vpop.f32.mrf.mxu0
    %v2039 = vadd.f32 0.0, %v2038
    %v2040 = vpop.f32.mrf.mxu0
    %v2041 = vadd.f32 0.0, %v2040
    %2042 = vmatprep.mubr.f32.mxu0 0.0
    %2043 = vmatmul.mubr.f32.gmra.mxu0 %v1851
    %v2044 = vpop.f32.mrf.mxu0
    %v2045 = vadd.f32 0.0, %v2044
    %v2046 = vpop.f32.mrf.mxu0
    %v2047 = vadd.f32 0.0, %v2046
    %2048 = vmatprep.mubr.f32.mxu0 0.0
    %2049 = vmatmul.mubr.f32.gmra.mxu0 %v1852
    %v2050 = vpop.f32.mrf.mxu0
    %v2051 = vadd.f32 0.0, %v2050
    %v2052 = vpop.f32.mrf.mxu0
    %v2053 = vadd.f32 0.0, %v2052
    %2054 = vmatprep.mubr.f32.mxu0 0.0
    %2055 = vmatmul.mubr.f32.gmra.mxu0 %v1853
    %v2056 = vpop.f32.mrf.mxu0
    %v2057 = vadd.f32 0.0, %v2056
    %v2058 = vpop.f32.mrf.mxu0
    %v2059 = vadd.f32 0.0, %v2058
    %2060 = vmatprep.mubr.f32.mxu0 0.0
    %2061 = vmatmul.mubr.f32.gmra.mxu0 %v1854
    %v2062 = vpop.f32.mrf.mxu0
    %v2063 = vadd.f32 0.0, %v2062
    %v2064 = vpop.f32.mrf.mxu0
    %v2065 = vadd.f32 0.0, %v2064
    %2066 = vmatprep.mubr.f32.mxu0 0.0
    %2067 = vmatmul.mubr.f32.gmra.mxu0 %v1855
    %v2068 = vpop.f32.mrf.mxu0
    %v2069 = vadd.f32 0.0, %v2068
    %v2070 = vpop.f32.mrf.mxu0
    %v2071 = vadd.f32 0.0, %v2070
    %2072 = vmatprep.mubr.f32.mxu0 0.0
    %2073 = vmatmul.mubr.f32.gmra.mxu0 %v1856
    %v2074 = vpop.f32.mrf.mxu0
    %v2075 = vadd.f32 0.0, %v2074
    %v2076 = vpop.f32.mrf.mxu0
    %v2077 = vadd.f32 0.0, %v2076
    %2078 = vmatprep.mubr.f32.mxu0 0.0
    %2079 = vmatmul.mubr.f32.gmra.mxu0 %v1857
    %v2080 = vpop.f32.mrf.mxu0
    %v2081 = vadd.f32 0.0, %v2080
    %v2082 = vpop.f32.mrf.mxu0
    %v2083 = vadd.f32 0.0, %v2082
    %2084 = vmatprep.mubr.f32.mxu0 0.0
    %2085 = vmatmul.mubr.f32.gmra.mxu0 %v1858
    %v2086 = vpop.f32.mrf.mxu0
    %v2087 = vadd.f32 0.0, %v2086
    %v2088 = vpop.f32.mrf.mxu0
    %v2089 = vadd.f32 0.0, %v2088
    %2090 = vmatprep.mubr.f32.mxu0 0.0
    %2091 = vmatmul.mubr.f32.gmra.mxu0 %v1859
    %v2092 = vpop.f32.mrf.mxu0
    %v2093 = vadd.f32 0.0, %v2092
    %v2094 = vpop.f32.mrf.mxu0
    %v2095 = vadd.f32 0.0, %v2094
    %2096 = vmatprep.mubr.f32.mxu0 0.0
    %2097 = vmatmul.mubr.f32.gmra.mxu0 %v1860
    %v2098 = vpop.f32.mrf.mxu0
    %v2099 = vadd.f32 0.0, %v2098
    %v2100 = vpop.f32.mrf.mxu0
    %v2101 = vadd.f32 0.0, %v2100
    %2102 = vmatprep.mubr.f32.mxu0 0.0
    %2103 = vmatmul.mubr.f32.gmra.mxu0 %v1861
    %v2104 = vpop.f32.mrf.mxu0
    %v2105 = vadd.f32 0.0, %v2104
    %v2106 = vpop.f32.mrf.mxu0
    %v2107 = vadd.f32 0.0, %v2106
    %2108 = vmatprep.mubr.f32.mxu0 0.0
    %2109 = vmatmul.mubr.f32.gmra.mxu0 %v1862
    %v2110 = vpop.f32.mrf.mxu0
    %v2111 = vadd.f32 0.0, %v2110
    %v2112 = vpop.f32.mrf.mxu0
    %v2113 = vadd.f32 0.0, %v2112
    %2114 = vmatprep.mubr.f32.mxu0 0.0
    %2115 = vmatmul.mubr.f32.gmra.mxu0 %v1863
    %v2116 = vpop.f32.mrf.mxu0
    %v2117 = vadd.f32 0.0, %v2116
    %v2118 = vpop.f32.mrf.mxu0
    %v2119 = vadd.f32 0.0, %v2118
    %2120 = vdwg.mxu0
    %v2121 = vmul.f32 %v1931, 0.17677669
    %v2122 = vmul.f32 %v1933, 0.17677669
    %v2123 = vmul.f32 %v1937, 0.17677669
    %v2124 = vmul.f32 %v1939, 0.17677669
    %v2125 = vmul.f32 %v1943, 0.17677669
    %v2126 = vmul.f32 %v1945, 0.17677669
    %v2127 = vmul.f32 %v1949, 0.17677669
    %v2128 = vmul.f32 %v1951, 0.17677669
    %v2129 = vmul.f32 %v1955, 0.17677669
    %v2130 = vmul.f32 %v1957, 0.17677669
    %v2131 = vmul.f32 %v1961, 0.17677669
    %v2132 = vmul.f32 %v1963, 0.17677669
    %v2133 = vmul.f32 %v1967, 0.17677669
    %v2134 = vmul.f32 %v1969, 0.17677669
    %v2135 = vmul.f32 %v1973, 0.17677669
    %v2136 = vmul.f32 %v1975, 0.17677669
    %v2137 = vmul.f32 %v1979, 0.17677669
    %v2138 = vmul.f32 %v1981, 0.17677669
    %v2139 = vmul.f32 %v1985, 0.17677669
    %v2140 = vmul.f32 %v1987, 0.17677669
    %v2141 = vmul.f32 %v1991, 0.17677669
    %v2142 = vmul.f32 %v1993, 0.17677669
    %v2143 = vmul.f32 %v1997, 0.17677669
    %v2144 = vmul.f32 %v1999, 0.17677669
    %v2145 = vmul.f32 %v2003, 0.17677669
    %v2146 = vmul.f32 %v2005, 0.17677669
    %v2147 = vmul.f32 %v2009, 0.17677669
    %v2148 = vmul.f32 %v2011, 0.17677669
    %v2149 = vmul.f32 %v2015, 0.17677669
    %v2150 = vmul.f32 %v2017, 0.17677669
    %v2151 = vmul.f32 %v2021, 0.17677669
    %v2152 = vmul.f32 %v2023, 0.17677669
    %v2153 = vmul.f32 %v2027, 0.17677669
    %v2154 = vmul.f32 %v2029, 0.17677669
    %v2155 = vmul.f32 %v2033, 0.17677669
    %v2156 = vmul.f32 %v2035, 0.17677669
    %v2157 = vmul.f32 %v2039, 0.17677669
    %v2158 = vmul.f32 %v2041, 0.17677669
    %v2159 = vmul.f32 %v2045, 0.17677669
    %v2160 = vmul.f32 %v2047, 0.17677669
    %v2161 = vmul.f32 %v2051, 0.17677669
    %v2162 = vmul.f32 %v2053, 0.17677669
    %v2163 = vmul.f32 %v2057, 0.17677669
    %v2164 = vmul.f32 %v2059, 0.17677669
    %v2165 = vmul.f32 %v2063, 0.17677669
    %v2166 = vmul.f32 %v2065, 0.17677669
    %v2167 = vmul.f32 %v2069, 0.17677669
    %v2168 = vmul.f32 %v2071, 0.17677669
    %v2169 = vmul.f32 %v2075, 0.17677669
    %v2170 = vmul.f32 %v2077, 0.17677669
    %v2171 = vmul.f32 %v2081, 0.17677669
    %v2172 = vmul.f32 %v2083, 0.17677669
    %v2173 = vmul.f32 %v2087, 0.17677669
    %v2174 = vmul.f32 %v2089, 0.17677669
    %v2175 = vmul.f32 %v2093, 0.17677669
    %v2176 = vmul.f32 %v2095, 0.17677669
    %v2177 = vmul.f32 %v2099, 0.17677669
    %v2178 = vmul.f32 %v2101, 0.17677669
    %v2179 = vmul.f32 %v2105, 0.17677669
    %v2180 = vmul.f32 %v2107, 0.17677669
    %v2181 = vmul.f32 %v2111, 0.17677669
    %v2182 = vmul.f32 %v2113, 0.17677669
    %v2183 = vmul.f32 %v2117, 0.17677669
    %v2184 = vmul.f32 %v2119, 0.17677669
    %v2185 = vmul.f32 %v2121, %v81
    %v2186 = vmul.f32 %v2122, %v82
    %v2187 = vmul.f32 %v2123, %v83
    %v2188 = vmul.f32 %v2124, %v84
    %v2189 = vmul.f32 %v2125, %v85
    %v2190 = vmul.f32 %v2126, %v86
    %v2191 = vmul.f32 %v2127, %v87
    %v2192 = vmul.f32 %v2128, %v88
    %v2193 = vmul.f32 %v2129, %v89
    %v2194 = vmul.f32 %v2130, %v90
    %v2195 = vmul.f32 %v2131, %v91
    %v2196 = vmul.f32 %v2132, %v92
    %v2197 = vmul.f32 %v2133, %v93
    %v2198 = vmul.f32 %v2134, %v94
    %v2199 = vmul.f32 %v2135, %v95
    %v2200 = vmul.f32 %v2136, %v96
    %v2201 = vmul.f32 %v2137, %v97
    %v2202 = vmul.f32 %v2138, %v98
    %v2203 = vmul.f32 %v2139, %v99
    %v2204 = vmul.f32 %v2140, %v100
    %v2205 = vmul.f32 %v2141, %v101
    %v2206 = vmul.f32 %v2142, %v102
    %v2207 = vmul.f32 %v2143, %v103
    %v2208 = vmul.f32 %v2144, %v104
    %v2209 = vmul.f32 %v2145, %v105
    %v2210 = vmul.f32 %v2146, %v106
    %v2211 = vmul.f32 %v2147, %v107
    %v2212 = vmul.f32 %v2148, %v108
    %v2213 = vmul.f32 %v2149, %v109
    %v2214 = vmul.f32 %v2150, %v110
    %v2215 = vmul.f32 %v2151, %v111
    %v2216 = vmul.f32 %v2152, %v112
    %v2217 = vmul.f32 %v2153, %v113
    %v2218 = vmul.f32 %v2154, %v114
    %v2219 = vmul.f32 %v2155, %v115
    %v2220 = vmul.f32 %v2156, %v116
    %v2221 = vmul.f32 %v2157, %v117
    %v2222 = vmul.f32 %v2158, %v118
    %v2223 = vmul.f32 %v2159, %v119
    %v2224 = vmul.f32 %v2160, %v120
    %v2225 = vmul.f32 %v2161, %v121
    %v2226 = vmul.f32 %v2162, %v122
    %v2227 = vmul.f32 %v2163, %v123
    %v2228 = vmul.f32 %v2164, %v124
    %v2229 = vmul.f32 %v2165, %v125
    %v2230 = vmul.f32 %v2166, %v126
    %v2231 = vmul.f32 %v2167, %v127
    %v2232 = vmul.f32 %v2168, %v128
    %v2233 = vmul.f32 %v2169, %v129
    %v2234 = vmul.f32 %v2170, %v130
    %v2235 = vmul.f32 %v2171, %v131
    %v2236 = vmul.f32 %v2172, %v132
    %v2237 = vmul.f32 %v2173, %v133
    %v2238 = vmul.f32 %v2174, %v134
    %v2239 = vmul.f32 %v2175, %v135
    %v2240 = vmul.f32 %v2176, %v136
    %v2241 = vmul.f32 %v2177, %v137
    %v2242 = vmul.f32 %v2178, %v138
    %v2243 = vmul.f32 %v2179, %v139
    %v2244 = vmul.f32 %v2180, %v140
    %v2245 = vmul.f32 %v2181, %v141
    %v2246 = vmul.f32 %v2182, %v142
    %v2247 = vmul.f32 %v2183, %v143
    %v2248 = vmul.f32 %v2184, %v144
    %v2249 = vxor.u32 %v2185, 2147483648
    %v2250 = vxor.u32 %v2186, 2147483648
    %v2251 = vxor.u32 %v2187, 2147483648
    %v2252 = vxor.u32 %v2188, 2147483648
    %v2253 = vxor.u32 %v2189, 2147483648
    %v2254 = vxor.u32 %v2190, 2147483648
    %v2255 = vxor.u32 %v2191, 2147483648
    %v2256 = vxor.u32 %v2192, 2147483648
    %v2257 = vxor.u32 %v2193, 2147483648
    %v2258 = vxor.u32 %v2194, 2147483648
    %v2259 = vxor.u32 %v2195, 2147483648
    %v2260 = vxor.u32 %v2196, 2147483648
    %v2261 = vxor.u32 %v2197, 2147483648
    %v2262 = vxor.u32 %v2198, 2147483648
    %v2263 = vxor.u32 %v2199, 2147483648
    %v2264 = vxor.u32 %v2200, 2147483648
    %v2265 = vxor.u32 %v2201, 2147483648
    %v2266 = vxor.u32 %v2202, 2147483648
    %v2267 = vxor.u32 %v2203, 2147483648
    %v2268 = vxor.u32 %v2204, 2147483648
    %v2269 = vxor.u32 %v2205, 2147483648
    %v2270 = vxor.u32 %v2206, 2147483648
    %v2271 = vxor.u32 %v2207, 2147483648
    %v2272 = vxor.u32 %v2208, 2147483648
    %v2273 = vxor.u32 %v2209, 2147483648
    %v2274 = vxor.u32 %v2210, 2147483648
    %v2275 = vxor.u32 %v2211, 2147483648
    %v2276 = vxor.u32 %v2212, 2147483648
    %v2277 = vxor.u32 %v2213, 2147483648
    %v2278 = vxor.u32 %v2214, 2147483648
    %v2279 = vxor.u32 %v2215, 2147483648
    %v2280 = vxor.u32 %v2216, 2147483648
    %v2281 = vxor.u32 %v2217, 2147483648
    %v2282 = vxor.u32 %v2218, 2147483648
    %v2283 = vxor.u32 %v2219, 2147483648
    %v2284 = vxor.u32 %v2220, 2147483648
    %v2285 = vxor.u32 %v2221, 2147483648
    %v2286 = vxor.u32 %v2222, 2147483648
    %v2287 = vxor.u32 %v2223, 2147483648
    %v2288 = vxor.u32 %v2224, 2147483648
    %v2289 = vxor.u32 %v2225, 2147483648
    %v2290 = vxor.u32 %v2226, 2147483648
    %v2291 = vxor.u32 %v2227, 2147483648
    %v2292 = vxor.u32 %v2228, 2147483648
    %v2293 = vxor.u32 %v2229, 2147483648
    %v2294 = vxor.u32 %v2230, 2147483648
    %v2295 = vxor.u32 %v2231, 2147483648
    %v2296 = vxor.u32 %v2232, 2147483648
    %v2297 = vxor.u32 %v2233, 2147483648
    %v2298 = vxor.u32 %v2234, 2147483648
    %v2299 = vxor.u32 %v2235, 2147483648
    %v2300 = vxor.u32 %v2236, 2147483648
    %v2301 = vxor.u32 %v2237, 2147483648
    %v2302 = vxor.u32 %v2238, 2147483648
    %v2303 = vxor.u32 %v2239, 2147483648
    %v2304 = vxor.u32 %v2240, 2147483648
    %v2305 = vxor.u32 %v2241, 2147483648
    %v2306 = vxor.u32 %v2242, 2147483648
    %v2307 = vxor.u32 %v2243, 2147483648
    %v2308 = vxor.u32 %v2244, 2147483648
    %v2309 = vxor.u32 %v2245, 2147483648
    %v2310 = vxor.u32 %v2246, 2147483648
    %v2311 = vxor.u32 %v2247, 2147483648
    %v2312 = vxor.u32 %v2248, 2147483648
    %v2313 = vmul.f32 %v2249, 1.442695
    %v2314 = vpow.pop %v2313
    %v2315 = vmul.f32 %v2250, 1.442695
    %v2316 = vpow.pop %v2315
    %v2317 = vmul.f32 %v2251, 1.442695
    %v2318 = vpow.pop %v2317
    %v2319 = vmul.f32 %v2252, 1.442695
    %v2320 = vpow.pop %v2319
    %v2321 = vmul.f32 %v2253, 1.442695
    %v2322 = vpow.pop %v2321
    %v2323 = vmul.f32 %v2254, 1.442695
    %v2324 = vpow.pop %v2323
    %v2325 = vmul.f32 %v2255, 1.442695
    %v2326 = vpow.pop %v2325
    %v2327 = vmul.f32 %v2256, 1.442695
    %v2328 = vpow.pop %v2327
    %v2329 = vmul.f32 %v2257, 1.442695
    %v2330 = vpow.pop %v2329
    %v2331 = vmul.f32 %v2258, 1.442695
    %v2332 = vpow.pop %v2331
    %v2333 = vmul.f32 %v2259, 1.442695
    %v2334 = vpow.pop %v2333
    %v2335 = vmul.f32 %v2260, 1.442695
    %v2336 = vpow.pop %v2335
    %v2337 = vmul.f32 %v2261, 1.442695
    %v2338 = vpow.pop %v2337
    %v2339 = vmul.f32 %v2262, 1.442695
    %v2340 = vpow.pop %v2339
    %v2341 = vmul.f32 %v2263, 1.442695
    %v2342 = vpow.pop %v2341
    %v2343 = vmul.f32 %v2264, 1.442695
    %v2344 = vpow.pop %v2343
    %v2345 = vmul.f32 %v2265, 1.442695
    %v2346 = vpow.pop %v2345
    %v2347 = vmul.f32 %v2266, 1.442695
    %v2348 = vpow.pop %v2347
    %v2349 = vmul.f32 %v2267, 1.442695
    %v2350 = vpow.pop %v2349
    %v2351 = vmul.f32 %v2268, 1.442695
    %v2352 = vpow.pop %v2351
    %v2353 = vmul.f32 %v2269, 1.442695
    %v2354 = vpow.pop %v2353
    %v2355 = vmul.f32 %v2270, 1.442695
    %v2356 = vpow.pop %v2355
    %v2357 = vmul.f32 %v2271, 1.442695
    %v2358 = vpow.pop %v2357
    %v2359 = vmul.f32 %v2272, 1.442695
    %v2360 = vpow.pop %v2359
    %v2361 = vmul.f32 %v2273, 1.442695
    %v2362 = vpow.pop %v2361
    %v2363 = vmul.f32 %v2274, 1.442695
    %v2364 = vpow.pop %v2363
    %v2365 = vmul.f32 %v2275, 1.442695
    %v2366 = vpow.pop %v2365
    %v2367 = vmul.f32 %v2276, 1.442695
    %v2368 = vpow.pop %v2367
    %v2369 = vmul.f32 %v2277, 1.442695
    %v2370 = vpow.pop %v2369
    %v2371 = vmul.f32 %v2278, 1.442695
    %v2372 = vpow.pop %v2371
    %v2373 = vmul.f32 %v2279, 1.442695
    %v2374 = vpow.pop %v2373
    %v2375 = vmul.f32 %v2280, 1.442695
    %v2376 = vpow.pop %v2375
    %v2377 = vmul.f32 %v2281, 1.442695
    %v2378 = vpow.pop %v2377
    %v2379 = vmul.f32 %v2282, 1.442695
    %v2380 = vpow.pop %v2379
    %v2381 = vmul.f32 %v2283, 1.442695
    %v2382 = vpow.pop %v2381
    %v2383 = vmul.f32 %v2284, 1.442695
    %v2384 = vpow.pop %v2383
    %v2385 = vmul.f32 %v2285, 1.442695
    %v2386 = vpow.pop %v2385
    %v2387 = vmul.f32 %v2286, 1.442695
    %v2388 = vpow.pop %v2387
    %v2389 = vmul.f32 %v2287, 1.442695
    %v2390 = vpow.pop %v2389
    %v2391 = vmul.f32 %v2288, 1.442695
    %v2392 = vpow.pop %v2391
    %v2393 = vmul.f32 %v2289, 1.442695
    %v2394 = vpow.pop %v2393
    %v2395 = vmul.f32 %v2290, 1.442695
    %v2396 = vpow.pop %v2395
    %v2397 = vmul.f32 %v2291, 1.442695
    %v2398 = vpow.pop %v2397
    %v2399 = vmul.f32 %v2292, 1.442695
    %v2400 = vpow.pop %v2399
    %v2401 = vmul.f32 %v2293, 1.442695
    %v2402 = vpow.pop %v2401
    %v2403 = vmul.f32 %v2294, 1.442695
    %v2404 = vpow.pop %v2403
    %v2405 = vmul.f32 %v2295, 1.442695
    %v2406 = vpow.pop %v2405
    %v2407 = vmul.f32 %v2296, 1.442695
    %v2408 = vpow.pop %v2407
    %v2409 = vmul.f32 %v2297, 1.442695
    %v2410 = vpow.pop %v2409
    %v2411 = vmul.f32 %v2298, 1.442695
    %v2412 = vpow.pop %v2411
    %v2413 = vmul.f32 %v2299, 1.442695
    %v2414 = vpow.pop %v2413
    %v2415 = vmul.f32 %v2300, 1.442695
    %v2416 = vpow.pop %v2415
    %v2417 = vmul.f32 %v2301, 1.442695
    %v2418 = vpow.pop %v2417
    %v2419 = vmul.f32 %v2302, 1.442695
    %v2420 = vpow.pop %v2419
    %v2421 = vmul.f32 %v2303, 1.442695
    %v2422 = vpow.pop %v2421
    %v2423 = vmul.f32 %v2304, 1.442695
    %v2424 = vpow.pop %v2423
    %v2425 = vmul.f32 %v2305, 1.442695
    %v2426 = vpow.pop %v2425
    %v2427 = vmul.f32 %v2306, 1.442695
    %v2428 = vpow.pop %v2427
    %v2429 = vmul.f32 %v2307, 1.442695
    %v2430 = vpow.pop %v2429
    %v2431 = vmul.f32 %v2308, 1.442695
    %v2432 = vpow.pop %v2431
    %v2433 = vmul.f32 %v2309, 1.442695
    %v2434 = vpow.pop %v2433
    %v2435 = vmul.f32 %v2310, 1.442695
    %v2436 = vpow.pop %v2435
    %v2437 = vmul.f32 %v2311, 1.442695
    %v2438 = vpow.pop %v2437
    %v2439 = vmul.f32 %v2312, 1.442695
    %v2440 = vpow.pop %v2439
    %v2441 = vadd.f32 %v2314, 1.0
    %v2442 = vadd.f32 %v2316, 1.0
    %v2443 = vadd.f32 %v2318, 1.0
    %v2444 = vadd.f32 %v2320, 1.0
    %v2445 = vadd.f32 %v2322, 1.0
    %v2446 = vadd.f32 %v2324, 1.0
    %v2447 = vadd.f32 %v2326, 1.0
    %v2448 = vadd.f32 %v2328, 1.0
    %v2449 = vadd.f32 %v2330, 1.0
    %v2450 = vadd.f32 %v2332, 1.0
    %v2451 = vadd.f32 %v2334, 1.0
    %v2452 = vadd.f32 %v2336, 1.0
    %v2453 = vadd.f32 %v2338, 1.0
    %v2454 = vadd.f32 %v2340, 1.0
    %v2455 = vadd.f32 %v2342, 1.0
    %v2456 = vadd.f32 %v2344, 1.0
    %v2457 = vadd.f32 %v2346, 1.0
    %v2458 = vadd.f32 %v2348, 1.0
    %v2459 = vadd.f32 %v2350, 1.0
    %v2460 = vadd.f32 %v2352, 1.0
    %v2461 = vadd.f32 %v2354, 1.0
    %v2462 = vadd.f32 %v2356, 1.0
    %v2463 = vadd.f32 %v2358, 1.0
    %v2464 = vadd.f32 %v2360, 1.0
    %v2465 = vadd.f32 %v2362, 1.0
    %v2466 = vadd.f32 %v2364, 1.0
    %v2467 = vadd.f32 %v2366, 1.0
    %v2468 = vadd.f32 %v2368, 1.0
    %v2469 = vadd.f32 %v2370, 1.0
    %v2470 = vadd.f32 %v2372, 1.0
    %v2471 = vadd.f32 %v2374, 1.0
    %v2472 = vadd.f32 %v2376, 1.0
    %v2473 = vadd.f32 %v2378, 1.0
    %v2474 = vadd.f32 %v2380, 1.0
    %v2475 = vadd.f32 %v2382, 1.0
    %v2476 = vadd.f32 %v2384, 1.0
    %v2477 = vadd.f32 %v2386, 1.0
    %v2478 = vadd.f32 %v2388, 1.0
    %v2479 = vadd.f32 %v2390, 1.0
    %v2480 = vadd.f32 %v2392, 1.0
    %v2481 = vadd.f32 %v2394, 1.0
    %v2482 = vadd.f32 %v2396, 1.0
    %v2483 = vadd.f32 %v2398, 1.0
    %v2484 = vadd.f32 %v2400, 1.0
    %v2485 = vadd.f32 %v2402, 1.0
    %v2486 = vadd.f32 %v2404, 1.0
    %v2487 = vadd.f32 %v2406, 1.0
    %v2488 = vadd.f32 %v2408, 1.0
    %v2489 = vadd.f32 %v2410, 1.0
    %v2490 = vadd.f32 %v2412, 1.0
    %v2491 = vadd.f32 %v2414, 1.0
    %v2492 = vadd.f32 %v2416, 1.0
    %v2493 = vadd.f32 %v2418, 1.0
    %v2494 = vadd.f32 %v2420, 1.0
    %v2495 = vadd.f32 %v2422, 1.0
    %v2496 = vadd.f32 %v2424, 1.0
    %v2497 = vadd.f32 %v2426, 1.0
    %v2498 = vadd.f32 %v2428, 1.0
    %v2499 = vadd.f32 %v2430, 1.0
    %v2500 = vadd.f32 %v2432, 1.0
    %v2501 = vadd.f32 %v2434, 1.0
    %v2502 = vadd.f32 %v2436, 1.0
    %v2503 = vadd.f32 %v2438, 1.0
    %v2504 = vadd.f32 %v2440, 1.0
    %v2505 = vrcp.pop %v2441
    %v2506 = vmul.f32 1.0, %v2505
    %v2507 = vrcp.pop %v2442
    %v2508 = vmul.f32 1.0, %v2507
    %v2509 = vrcp.pop %v2443
    %v2510 = vmul.f32 1.0, %v2509
    %v2511 = vrcp.pop %v2444
    %v2512 = vmul.f32 1.0, %v2511
    %v2513 = vrcp.pop %v2445
    %v2514 = vmul.f32 1.0, %v2513
    %v2515 = vrcp.pop %v2446
    %v2516 = vmul.f32 1.0, %v2515
    %v2517 = vrcp.pop %v2447
    %v2518 = vmul.f32 1.0, %v2517
    %v2519 = vrcp.pop %v2448
    %v2520 = vmul.f32 1.0, %v2519
    %v2521 = vrcp.pop %v2449
    %v2522 = vmul.f32 1.0, %v2521
    %v2523 = vrcp.pop %v2450
    %v2524 = vmul.f32 1.0, %v2523
    %v2525 = vrcp.pop %v2451
    %v2526 = vmul.f32 1.0, %v2525
    %v2527 = vrcp.pop %v2452
    %v2528 = vmul.f32 1.0, %v2527
    %v2529 = vrcp.pop %v2453
    %v2530 = vmul.f32 1.0, %v2529
    %v2531 = vrcp.pop %v2454
    %v2532 = vmul.f32 1.0, %v2531
    %v2533 = vrcp.pop %v2455
    %v2534 = vmul.f32 1.0, %v2533
    %v2535 = vrcp.pop %v2456
    %v2536 = vmul.f32 1.0, %v2535
    %v2537 = vrcp.pop %v2457
    %v2538 = vmul.f32 1.0, %v2537
    %v2539 = vrcp.pop %v2458
    %v2540 = vmul.f32 1.0, %v2539
    %v2541 = vrcp.pop %v2459
    %v2542 = vmul.f32 1.0, %v2541
    %v2543 = vrcp.pop %v2460
    %v2544 = vmul.f32 1.0, %v2543
    %v2545 = vrcp.pop %v2461
    %v2546 = vmul.f32 1.0, %v2545
    %v2547 = vrcp.pop %v2462
    %v2548 = vmul.f32 1.0, %v2547
    %v2549 = vrcp.pop %v2463
    %v2550 = vmul.f32 1.0, %v2549
    %v2551 = vrcp.pop %v2464
    %v2552 = vmul.f32 1.0, %v2551
    %v2553 = vrcp.pop %v2465
    %v2554 = vmul.f32 1.0, %v2553
    %v2555 = vrcp.pop %v2466
    %v2556 = vmul.f32 1.0, %v2555
    %v2557 = vrcp.pop %v2467
    %v2558 = vmul.f32 1.0, %v2557
    %v2559 = vrcp.pop %v2468
    %v2560 = vmul.f32 1.0, %v2559
    %v2561 = vrcp.pop %v2469
    %v2562 = vmul.f32 1.0, %v2561
    %v2563 = vrcp.pop %v2470
    %v2564 = vmul.f32 1.0, %v2563
    %v2565 = vrcp.pop %v2471
    %v2566 = vmul.f32 1.0, %v2565
    %v2567 = vrcp.pop %v2472
    %v2568 = vmul.f32 1.0, %v2567
    %v2569 = vrcp.pop %v2473
    %v2570 = vmul.f32 1.0, %v2569
    %v2571 = vrcp.pop %v2474
    %v2572 = vmul.f32 1.0, %v2571
    %v2573 = vrcp.pop %v2475
    %v2574 = vmul.f32 1.0, %v2573
    %v2575 = vrcp.pop %v2476
    %v2576 = vmul.f32 1.0, %v2575
    %v2577 = vrcp.pop %v2477
    %v2578 = vmul.f32 1.0, %v2577
    %v2579 = vrcp.pop %v2478
    %v2580 = vmul.f32 1.0, %v2579
    %v2581 = vrcp.pop %v2479
    %v2582 = vmul.f32 1.0, %v2581
    %v2583 = vrcp.pop %v2480
    %v2584 = vmul.f32 1.0, %v2583
    %v2585 = vrcp.pop %v2481
    %v2586 = vmul.f32 1.0, %v2585
    %v2587 = vrcp.pop %v2482
    %v2588 = vmul.f32 1.0, %v2587
    %v2589 = vrcp.pop %v2483
    %v2590 = vmul.f32 1.0, %v2589
    %v2591 = vrcp.pop %v2484
    %v2592 = vmul.f32 1.0, %v2591
    %v2593 = vrcp.pop %v2485
    %v2594 = vmul.f32 1.0, %v2593
    %v2595 = vrcp.pop %v2486
    %v2596 = vmul.f32 1.0, %v2595
    %v2597 = vrcp.pop %v2487
    %v2598 = vmul.f32 1.0, %v2597
    %v2599 = vrcp.pop %v2488
    %v2600 = vmul.f32 1.0, %v2599
    %v2601 = vrcp.pop %v2489
    %v2602 = vmul.f32 1.0, %v2601
    %v2603 = vrcp.pop %v2490
    %v2604 = vmul.f32 1.0, %v2603
    %v2605 = vrcp.pop %v2491
    %v2606 = vmul.f32 1.0, %v2605
    %v2607 = vrcp.pop %v2492
    %v2608 = vmul.f32 1.0, %v2607
    %v2609 = vrcp.pop %v2493
    %v2610 = vmul.f32 1.0, %v2609
    %v2611 = vrcp.pop %v2494
    %v2612 = vmul.f32 1.0, %v2611
    %v2613 = vrcp.pop %v2495
    %v2614 = vmul.f32 1.0, %v2613
    %v2615 = vrcp.pop %v2496
    %v2616 = vmul.f32 1.0, %v2615
    %v2617 = vrcp.pop %v2497
    %v2618 = vmul.f32 1.0, %v2617
    %v2619 = vrcp.pop %v2498
    %v2620 = vmul.f32 1.0, %v2619
    %v2621 = vrcp.pop %v2499
    %v2622 = vmul.f32 1.0, %v2621
    %v2623 = vrcp.pop %v2500
    %v2624 = vmul.f32 1.0, %v2623
    %v2625 = vrcp.pop %v2501
    %v2626 = vmul.f32 1.0, %v2625
    %v2627 = vrcp.pop %v2502
    %v2628 = vmul.f32 1.0, %v2627
    %v2629 = vrcp.pop %v2503
    %v2630 = vmul.f32 1.0, %v2629
    %v2631 = vrcp.pop %v2504
    %v2632 = vmul.f32 1.0, %v2631
    %v2633 = vmul.f32 %v2506, %v145
    %v2634 = vmul.f32 %v2508, %v146
    %v2635 = vmul.f32 %v2510, %v147
    %v2636 = vmul.f32 %v2512, %v148
    %v2637 = vmul.f32 %v2514, %v149
    %v2638 = vmul.f32 %v2516, %v150
    %v2639 = vmul.f32 %v2518, %v151
    %v2640 = vmul.f32 %v2520, %v152
    %v2641 = vmul.f32 %v2522, %v153
    %v2642 = vmul.f32 %v2524, %v154
    %v2643 = vmul.f32 %v2526, %v155
    %v2644 = vmul.f32 %v2528, %v156
    %v2645 = vmul.f32 %v2530, %v157
    %v2646 = vmul.f32 %v2532, %v158
    %v2647 = vmul.f32 %v2534, %v159
    %v2648 = vmul.f32 %v2536, %v160
    %v2649 = vmul.f32 %v2538, %v161
    %v2650 = vmul.f32 %v2540, %v162
    %v2651 = vmul.f32 %v2542, %v163
    %v2652 = vmul.f32 %v2544, %v164
    %v2653 = vmul.f32 %v2546, %v165
    %v2654 = vmul.f32 %v2548, %v166
    %v2655 = vmul.f32 %v2550, %v167
    %v2656 = vmul.f32 %v2552, %v168
    %v2657 = vmul.f32 %v2554, %v169
    %v2658 = vmul.f32 %v2556, %v170
    %v2659 = vmul.f32 %v2558, %v171
    %v2660 = vmul.f32 %v2560, %v172
    %v2661 = vmul.f32 %v2562, %v173
    %v2662 = vmul.f32 %v2564, %v174
    %v2663 = vmul.f32 %v2566, %v175
    %v2664 = vmul.f32 %v2568, %v176
    %v2665 = vmul.f32 %v2570, %v177
    %v2666 = vmul.f32 %v2572, %v178
    %v2667 = vmul.f32 %v2574, %v179
    %v2668 = vmul.f32 %v2576, %v180
    %v2669 = vmul.f32 %v2578, %v181
    %v2670 = vmul.f32 %v2580, %v182
    %v2671 = vmul.f32 %v2582, %v183
    %v2672 = vmul.f32 %v2584, %v184
    %v2673 = vmul.f32 %v2586, %v185
    %v2674 = vmul.f32 %v2588, %v186
    %v2675 = vmul.f32 %v2590, %v187
    %v2676 = vmul.f32 %v2592, %v188
    %v2677 = vmul.f32 %v2594, %v189
    %v2678 = vmul.f32 %v2596, %v190
    %v2679 = vmul.f32 %v2598, %v191
    %v2680 = vmul.f32 %v2600, %v192
    %v2681 = vmul.f32 %v2602, %v193
    %v2682 = vmul.f32 %v2604, %v194
    %v2683 = vmul.f32 %v2606, %v195
    %v2684 = vmul.f32 %v2608, %v196
    %v2685 = vmul.f32 %v2610, %v197
    %v2686 = vmul.f32 %v2612, %v198
    %v2687 = vmul.f32 %v2614, %v199
    %v2688 = vmul.f32 %v2616, %v200
    %v2689 = vmul.f32 %v2618, %v201
    %v2690 = vmul.f32 %v2620, %v202
    %v2691 = vmul.f32 %v2622, %v203
    %v2692 = vmul.f32 %v2624, %v204
    %v2693 = vmul.f32 %v2626, %v205
    %v2694 = vmul.f32 %v2628, %v206
    %v2695 = vmul.f32 %v2630, %v207
    %v2696 = vmul.f32 %v2632, %v208
    %2697 = vmatprep.subr.mxu0 %v2664
    %2698 = vmatpush1.msra.mxu0 %v2663
    %2699 = vmatprep.subr.mxu0 %v2662
    %2700 = vmatpush1.msra.mxu0 %v2661
    %2701 = vmatprep.subr.mxu0 %v2660
    %2702 = vmatpush1.msra.mxu0 %v2659
    %2703 = vmatprep.subr.mxu0 %v2658
    %2704 = vmatpush1.msra.mxu0 %v2657
    %2705 = vmatprep.subr.mxu0 %v2656
    %2706 = vmatpush1.msra.mxu0 %v2655
    %2707 = vmatprep.subr.mxu0 %v2654
    %2708 = vmatpush1.msra.mxu0 %v2653
    %2709 = vmatprep.subr.mxu0 %v2652
    %2710 = vmatpush1.msra.mxu0 %v2651
    %2711 = vmatprep.subr.mxu0 %v2650
    %2712 = vmatpush1.msra.mxu0 %v2649
    %2713 = vmatprep.subr.mxu0 %v2648
    %2714 = vmatpush1.msra.mxu0 %v2647
    %2715 = vmatprep.subr.mxu0 %v2646
    %2716 = vmatpush1.msra.mxu0 %v2645
    %2717 = vmatprep.subr.mxu0 %v2644
    %2718 = vmatpush1.msra.mxu0 %v2643
    %2719 = vmatprep.subr.mxu0 %v2642
    %2720 = vmatpush1.msra.mxu0 %v2641
    %2721 = vmatprep.subr.mxu0 %v2640
    %2722 = vmatpush1.msra.mxu0 %v2639
    %2723 = vmatprep.subr.mxu0 %v2638
    %2724 = vmatpush1.msra.mxu0 %v2637
    %2725 = vmatprep.subr.mxu0 %v2636
    %2726 = vmatpush1.msra.mxu0 %v2635
    %2727 = vmatprep.subr.mxu0 %v2634
    %2728 = vmatpush1.msra.mxu0 %v2633
    %2729 = vmatprep.subr.mxu0 %v2696
    %2730 = vmatpush2.msra.mxu0 %v2695
    %2731 = vmatprep.subr.mxu0 %v2694
    %2732 = vmatpush2.msra.mxu0 %v2693
    %2733 = vmatprep.subr.mxu0 %v2692
    %2734 = vmatpush2.msra.mxu0 %v2691
    %2735 = vmatprep.subr.mxu0 %v2690
    %2736 = vmatpush2.msra.mxu0 %v2689
    %2737 = vmatprep.subr.mxu0 %v2688
    %2738 = vmatpush2.msra.mxu0 %v2687
    %2739 = vmatprep.subr.mxu0 %v2686
    %2740 = vmatpush2.msra.mxu0 %v2685
    %2741 = vmatprep.subr.mxu0 %v2684
    %2742 = vmatpush2.msra.mxu0 %v2683
    %2743 = vmatprep.subr.mxu0 %v2682
    %2744 = vmatpush2.msra.mxu0 %v2681
    %2745 = vmatprep.subr.mxu0 %v2680
    %2746 = vmatpush2.msra.mxu0 %v2679
    %2747 = vmatprep.subr.mxu0 %v2678
    %2748 = vmatpush2.msra.mxu0 %v2677
    %2749 = vmatprep.subr.mxu0 %v2676
    %2750 = vmatpush2.msra.mxu0 %v2675
    %2751 = vmatprep.subr.mxu0 %v2674
    %2752 = vmatpush2.msra.mxu0 %v2673
    %2753 = vmatprep.subr.mxu0 %v2672
    %2754 = vmatpush2.msra.mxu0 %v2671
    %2755 = vmatprep.subr.mxu0 %v2670
    %2756 = vmatpush2.msra.mxu0 %v2669
    %2757 = vmatprep.subr.mxu0 %v2668
    %2758 = vmatpush2.msra.mxu0 %v2667
    %2759 = vmatprep.subr.mxu0 %v2666
    %2760 = vmatpush2.msra.mxu0 %v2665
    %2761 = vmatprep.mubr.f32.mxu0 %v210
    %2762 = vmatmul.mubr.f32.gmra.mxu0 %v209
    %v2763 = vpop.f32.mrf.mxu0
    %v2764 = vadd.f32 0.0, %v2763
    %v2765 = vpop.f32.mrf.mxu0
    %v2766 = vadd.f32 0.0, %v2765
    %2767 = vmatprep.mubr.f32.mxu0 %v212
    %2768 = vmatmul.mubr.f32.gmra.mxu0 %v211
    %v2769 = vpop.f32.mrf.mxu0
    %v2770 = vadd.f32 0.0, %v2769
    %v2771 = vpop.f32.mrf.mxu0
    %v2772 = vadd.f32 0.0, %v2771
    %2773 = vmatprep.mubr.f32.mxu0 %v214
    %2774 = vmatmul.mubr.f32.gmra.mxu0 %v213
    %v2775 = vpop.f32.mrf.mxu0
    %v2776 = vadd.f32 0.0, %v2775
    %v2777 = vpop.f32.mrf.mxu0
    %v2778 = vadd.f32 0.0, %v2777
    %2779 = vmatprep.mubr.f32.mxu0 %v216
    %2780 = vmatmul.mubr.f32.gmra.mxu0 %v215
    %v2781 = vpop.f32.mrf.mxu0
    %v2782 = vadd.f32 0.0, %v2781
    %v2783 = vpop.f32.mrf.mxu0
    %v2784 = vadd.f32 0.0, %v2783
    %2785 = vdwg.mxu0
    %2786 = vmatprep.subr.mxu0 0.0
    %2787 = vmatpush1.msra.mxu0 %v1567
    %2788 = vmatprep.subr.mxu0 0.0
    %2789 = vmatpush1.msra.mxu0 %v1566
    %2790 = vmatprep.subr.mxu0 0.0
    %2791 = vmatpush1.msra.mxu0 %v1565
    %2792 = vmatprep.subr.mxu0 0.0
    %2793 = vmatpush1.msra.mxu0 %v1564
    %2794 = vmatprep.subr.mxu0 0.0
    %2795 = vmatpush1.msra.mxu0 %v1563
    %2796 = vmatprep.subr.mxu0 0.0
    %2797 = vmatpush1.msra.mxu0 %v1562
    %2798 = vmatprep.subr.mxu0 0.0
    %2799 = vmatpush1.msra.mxu0 %v1561
    %2800 = vmatprep.subr.mxu0 0.0
    %2801 = vmatpush1.msra.mxu0 %v1560
    %2802 = vmatprep.subr.mxu0 0.0
    %2803 = vmatpush1.msra.mxu0 %v1559
    %2804 = vmatprep.subr.mxu0 0.0
    %2805 = vmatpush1.msra.mxu0 %v1558
    %2806 = vmatprep.subr.mxu0 0.0
    %2807 = vmatpush1.msra.mxu0 %v1557
    %2808 = vmatprep.subr.mxu0 0.0
    %2809 = vmatpush1.msra.mxu0 %v1556
    %2810 = vmatprep.subr.mxu0 0.0
    %2811 = vmatpush1.msra.mxu0 %v1555
    %2812 = vmatprep.subr.mxu0 0.0
    %2813 = vmatpush1.msra.mxu0 %v1554
    %2814 = vmatprep.subr.mxu0 0.0
    %2815 = vmatpush1.msra.mxu0 %v1553
    %2816 = vmatprep.subr.mxu0 0.0
    %2817 = vmatpush1.msra.mxu0 %v1552
    %2818 = vmatprep.subr.mxu0 0.0
    %2819 = vmatpush2.msra.mxu0 %v1583
    %2820 = vmatprep.subr.mxu0 0.0
    %2821 = vmatpush2.msra.mxu0 %v1582
    %2822 = vmatprep.subr.mxu0 0.0
    %2823 = vmatpush2.msra.mxu0 %v1581
    %2824 = vmatprep.subr.mxu0 0.0
    %2825 = vmatpush2.msra.mxu0 %v1580
    %2826 = vmatprep.subr.mxu0 0.0
    %2827 = vmatpush2.msra.mxu0 %v1579
    %2828 = vmatprep.subr.mxu0 0.0
    %2829 = vmatpush2.msra.mxu0 %v1578
    %2830 = vmatprep.subr.mxu0 0.0
    %2831 = vmatpush2.msra.mxu0 %v1577
    %2832 = vmatprep.subr.mxu0 0.0
    %2833 = vmatpush2.msra.mxu0 %v1576
    %2834 = vmatprep.subr.mxu0 0.0
    %2835 = vmatpush2.msra.mxu0 %v1575
    %2836 = vmatprep.subr.mxu0 0.0
    %2837 = vmatpush2.msra.mxu0 %v1574
    %2838 = vmatprep.subr.mxu0 0.0
    %2839 = vmatpush2.msra.mxu0 %v1573
    %2840 = vmatprep.subr.mxu0 0.0
    %2841 = vmatpush2.msra.mxu0 %v1572
    %2842 = vmatprep.subr.mxu0 0.0
    %2843 = vmatpush2.msra.mxu0 %v1571
    %2844 = vmatprep.subr.mxu0 0.0
    %2845 = vmatpush2.msra.mxu0 %v1570
    %2846 = vmatprep.subr.mxu0 0.0
    %2847 = vmatpush2.msra.mxu0 %v1569
    %2848 = vmatprep.subr.mxu0 0.0
    %2849 = vmatpush2.msra.mxu0 %v1568
    %2850 = vmatprep.mubr.f32.mxu0 %v2766
    %2851 = vmatmul.mubr.f32.gmra.mxu0 %v2764
    %v2852 = vpop.f32.mrf.mxu0
    %v2853 = vadd.f32 0.0, %v2852
    %v2854 = vpop.f32.mrf.mxu0
    %2855 = vmatprep.mubr.f32.mxu0 %v2772
    %2856 = vmatmul.mubr.f32.gmra.mxu0 %v2770
    %v2857 = vpop.f32.mrf.mxu0
    %v2858 = vadd.f32 0.0, %v2857
    %v2859 = vpop.f32.mrf.mxu0
    %2860 = vmatprep.mubr.f32.mxu0 %v2778
    %2861 = vmatmul.mubr.f32.gmra.mxu0 %v2776
    %v2862 = vpop.f32.mrf.mxu0
    %v2863 = vadd.f32 0.0, %v2862
    %v2864 = vpop.f32.mrf.mxu0
    %2865 = vmatprep.mubr.f32.mxu0 %v2784
    %2866 = vmatmul.mubr.f32.gmra.mxu0 %v2782
    %v2867 = vpop.f32.mrf.mxu0
    %v2868 = vadd.f32 0.0, %v2867
    %v2869 = vpop.f32.mrf.mxu0
    %2870 = vdwg.mxu0
    %v2871 = vld [vmem:[%s10] sm:$0xff]
    %v2872 = vld [vmem:[%s10 + $0x8] sm:$0xff]
    %v2873 = vld [vmem:[%s10 + $0x10] sm:$0xff]
    %v2874 = vld [vmem:[%s10 + $0x18] sm:$0xff]
    %vm2875 = vcmask 261120
    %v2877 = vsel %vm2875, %v217, 0
    %v2880 = vsel %vm2875, %v218, 0
    %v2883 = vsel %vm2875, %v219, 0
    %v2886 = vsel %vm2875, %v220, 0
    %v2889 = vsel %vm2875, %v221, 0
    %v2892 = vsel %vm2875, %v222, 0
    %v2895 = vsel %vm2875, %v223, 0
    %v2898 = vsel %vm2875, %v224, 0
    %v2901 = vsel %vm2875, %v225, 0
    %v2904 = vsel %vm2875, %v226, 0
    %v2907 = vsel %vm2875, %v227, 0
    %v2910 = vsel %vm2875, %v228, 0
    %v2913 = vsel %vm2875, %v229, 0
    %v2916 = vsel %vm2875, %v230, 0
    %v2919 = vsel %vm2875, %v231, 0
    %v2922 = vsel %vm2875, %v232, 0
    %2924 = vmatprep.subr.mxu0 0.0
    %2925 = vmatpush1.msra.mxu0 0.0
    %2926 = vmatprep.subr.mxu0 0.0
    %2927 = vmatpush1.msra.mxu0 0.0
    %2928 = vmatprep.subr.mxu0 0.0
    %2929 = vmatpush1.msra.mxu0 0.0
    %2930 = vmatprep.subr.mxu0 0.0
    %2931 = vmatpush1.msra.mxu0 0.0
    %2932 = vmatprep.subr.mxu0 0.0
    %2933 = vmatpush1.msra.mxu0 0.0
    %2934 = vmatprep.subr.mxu0 0.0
    %2935 = vmatpush1.msra.mxu0 0.0
    %2936 = vmatprep.subr.mxu0 0.0
    %2937 = vmatpush1.msra.mxu0 0.0
    %2938 = vmatprep.subr.mxu0 0.0
    %2939 = vmatpush1.msra.mxu0 0.0
    %2940 = vmatprep.subr.mxu0 0.0
    %2941 = vmatpush1.msra.mxu0 0.0
    %2942 = vmatprep.subr.mxu0 0.0
    %2943 = vmatpush1.msra.mxu0 0.0
    %2944 = vmatprep.subr.mxu0 0.0
    %2945 = vmatpush1.msra.mxu0 0.0
    %2946 = vmatprep.subr.mxu0 0.0
    %2947 = vmatpush1.msra.mxu0 0.0
    %2948 = vmatprep.subr.mxu0 0.0
    %2949 = vmatpush1.msra.mxu0 %v2874
    %2950 = vmatprep.subr.mxu0 0.0
    %2951 = vmatpush1.msra.mxu0 %v2873
    %2952 = vmatprep.subr.mxu0 0.0
    %2953 = vmatpush1.msra.mxu0 %v2872
    %2954 = vmatprep.subr.mxu0 0.0
    %2955 = vmatpush1.msra.mxu0 %v2871
    %2956 = vmatprep.subr.mxu0 0.0
    %2957 = vmatpush2.msra.mxu0 0.0
    %2958 = vmatprep.subr.mxu0 0.0
    %2959 = vmatpush2.msra.mxu0 0.0
    %2960 = vmatprep.subr.mxu0 0.0
    %2961 = vmatpush2.msra.mxu0 0.0
    %2962 = vmatprep.subr.mxu0 0.0
    %2963 = vmatpush2.msra.mxu0 0.0
    %2964 = vmatprep.subr.mxu0 0.0
    %2965 = vmatpush2.msra.mxu0 0.0
    %2966 = vmatprep.subr.mxu0 0.0
    %2967 = vmatpush2.msra.mxu0 0.0
    %2968 = vmatprep.subr.mxu0 0.0
    %2969 = vmatpush2.msra.mxu0 0.0
    %2970 = vmatprep.subr.mxu0 0.0
    %2971 = vmatpush2.msra.mxu0 0.0
    %2972 = vmatprep.subr.mxu0 0.0
    %2973 = vmatpush2.msra.mxu0 0.0
    %2974 = vmatprep.subr.mxu0 0.0
    %2975 = vmatpush2.msra.mxu0 0.0
    %2976 = vmatprep.subr.mxu0 0.0
    %2977 = vmatpush2.msra.mxu0 0.0
    %2978 = vmatprep.subr.mxu0 0.0
    %2979 = vmatpush2.msra.mxu0 0.0
    %2980 = vmatprep.subr.mxu0 0.0
    %2981 = vmatpush2.msra.mxu0 0.0
    %2982 = vmatprep.subr.mxu0 0.0
    %2983 = vmatpush2.msra.mxu0 0.0
    %2984 = vmatprep.subr.mxu0 0.0
    %2985 = vmatpush2.msra.mxu0 0.0
    %2986 = vmatprep.subr.mxu0 0.0
    %2987 = vmatpush2.msra.mxu0 0.0
    %2988 = vmatprep.mubr.f32.mxu0 0.0
    %2989 = vmatmul.mubr.f32.gmra.mxu0 %v2877
    %v2990 = vpop.f32.mrf.mxu0
    %v2991 = vadd.f32 0.0, %v2990
    %v2992 = vpop.f32.mrf.mxu0
    %2993 = vmatprep.mubr.f32.mxu0 0.0
    %2994 = vmatmul.mubr.f32.gmra.mxu0 %v2880
    %v2995 = vpop.f32.mrf.mxu0
    %v2996 = vadd.f32 0.0, %v2995
    %v2997 = vpop.f32.mrf.mxu0
    %2998 = vmatprep.mubr.f32.mxu0 0.0
    %2999 = vmatmul.mubr.f32.gmra.mxu0 %v2883
    %v3000 = vpop.f32.mrf.mxu0
    %v3001 = vadd.f32 0.0, %v3000
    %v3002 = vpop.f32.mrf.mxu0
    %3003 = vmatprep.mubr.f32.mxu0 0.0
    %3004 = vmatmul.mubr.f32.gmra.mxu0 %v2886
    %v3005 = vpop.f32.mrf.mxu0
    %v3006 = vadd.f32 0.0, %v3005
    %v3007 = vpop.f32.mrf.mxu0
    %3008 = vmatprep.mubr.f32.mxu0 0.0
    %3009 = vmatmul.mubr.f32.gmra.mxu0 %v2889
    %v3010 = vpop.f32.mrf.mxu0
    %v3011 = vadd.f32 0.0, %v3010
    %v3012 = vpop.f32.mrf.mxu0
    %3013 = vmatprep.mubr.f32.mxu0 0.0
    %3014 = vmatmul.mubr.f32.gmra.mxu0 %v2892
    %v3015 = vpop.f32.mrf.mxu0
    %v3016 = vadd.f32 0.0, %v3015
    %v3017 = vpop.f32.mrf.mxu0
    %3018 = vmatprep.mubr.f32.mxu0 0.0
    %3019 = vmatmul.mubr.f32.gmra.mxu0 %v2895
    %v3020 = vpop.f32.mrf.mxu0
    %v3021 = vadd.f32 0.0, %v3020
    %v3022 = vpop.f32.mrf.mxu0
    %3023 = vmatprep.mubr.f32.mxu0 0.0
    %3024 = vmatmul.mubr.f32.gmra.mxu0 %v2898
    %v3025 = vpop.f32.mrf.mxu0
    %v3026 = vadd.f32 0.0, %v3025
    %v3027 = vpop.f32.mrf.mxu0
    %3028 = vmatprep.mubr.f32.mxu0 0.0
    %3029 = vmatmul.mubr.f32.gmra.mxu0 %v2901
    %v3030 = vpop.f32.mrf.mxu0
    %v3031 = vadd.f32 0.0, %v3030
    %v3032 = vpop.f32.mrf.mxu0
    %3033 = vmatprep.mubr.f32.mxu0 0.0
    %3034 = vmatmul.mubr.f32.gmra.mxu0 %v2904
    %v3035 = vpop.f32.mrf.mxu0
    %v3036 = vadd.f32 0.0, %v3035
    %v3037 = vpop.f32.mrf.mxu0
    %3038 = vmatprep.mubr.f32.mxu0 0.0
    %3039 = vmatmul.mubr.f32.gmra.mxu0 %v2907
    %v3040 = vpop.f32.mrf.mxu0
    %v3041 = vadd.f32 0.0, %v3040
    %v3042 = vpop.f32.mrf.mxu0
    %3043 = vmatprep.mubr.f32.mxu0 0.0
    %3044 = vmatmul.mubr.f32.gmra.mxu0 %v2910
    %v3045 = vpop.f32.mrf.mxu0
    %v3046 = vadd.f32 0.0, %v3045
    %v3047 = vpop.f32.mrf.mxu0
    %3048 = vmatprep.mubr.f32.mxu0 0.0
    %3049 = vmatmul.mubr.f32.gmra.mxu0 %v2913
    %v3050 = vpop.f32.mrf.mxu0
    %v3051 = vadd.f32 0.0, %v3050
    %v3052 = vpop.f32.mrf.mxu0
    %3053 = vmatprep.mubr.f32.mxu0 0.0
    %3054 = vmatmul.mubr.f32.gmra.mxu0 %v2916
    %v3055 = vpop.f32.mrf.mxu0
    %v3056 = vadd.f32 0.0, %v3055
    %v3057 = vpop.f32.mrf.mxu0
    %3058 = vmatprep.mubr.f32.mxu0 0.0
    %3059 = vmatmul.mubr.f32.gmra.mxu0 %v2919
    %v3060 = vpop.f32.mrf.mxu0
    %v3061 = vadd.f32 0.0, %v3060
    %v3062 = vpop.f32.mrf.mxu0
    %3063 = vmatprep.mubr.f32.mxu0 0.0
    %3064 = vmatmul.mubr.f32.gmra.mxu0 %v2922
    %v3065 = vpop.f32.mrf.mxu0
    %v3066 = vadd.f32 0.0, %v3065
    %v3067 = vpop.f32.mrf.mxu0
    %3068 = vdwg.mxu0
    %3069 = vmatprep.subr.mxu0 0.0
    %3070 = vmatpush1.msra.mxu0 0.0
    %3071 = vmatprep.subr.mxu0 0.0
    %3072 = vmatpush1.msra.mxu0 0.0
    %3073 = vmatprep.subr.mxu0 0.0
    %3074 = vmatpush1.msra.mxu0 0.0
    %3075 = vmatprep.subr.mxu0 0.0
    %3076 = vmatpush1.msra.mxu0 0.0
    %3077 = vmatprep.subr.mxu0 0.0
    %3078 = vmatpush1.msra.mxu0 0.0
    %3079 = vmatprep.subr.mxu0 0.0
    %3080 = vmatpush1.msra.mxu0 0.0
    %3081 = vmatprep.subr.mxu0 0.0
    %3082 = vmatpush1.msra.mxu0 0.0
    %3083 = vmatprep.subr.mxu0 0.0
    %3084 = vmatpush1.msra.mxu0 0.0
    %3085 = vmatprep.subr.mxu0 0.0
    %3086 = vmatpush1.msra.mxu0 0.0
    %3087 = vmatprep.subr.mxu0 0.0
    %3088 = vmatpush1.msra.mxu0 0.0
    %3089 = vmatprep.subr.mxu0 0.0
    %3090 = vmatpush1.msra.mxu0 0.0
    %3091 = vmatprep.subr.mxu0 0.0
    %3092 = vmatpush1.msra.mxu0 0.0
    %3093 = vmatprep.subr.mxu0 0.0
    %3094 = vmatpush1.msra.mxu0 %v1549
    %3095 = vmatprep.subr.mxu0 0.0
    %3096 = vmatpush1.msra.mxu0 %v1544
    %3097 = vmatprep.subr.mxu0 0.0
    %3098 = vmatpush1.msra.mxu0 %v1539
    %3099 = vmatprep.subr.mxu0 0.0
    %3100 = vmatpush1.msra.mxu0 %v1534
    %3101 = vmatprep.subr.mxu0 0.0
    %3102 = vmatpush2.msra.mxu0 0.0
    %3103 = vmatprep.subr.mxu0 0.0
    %3104 = vmatpush2.msra.mxu0 0.0
    %3105 = vmatprep.subr.mxu0 0.0
    %3106 = vmatpush2.msra.mxu0 0.0
    %3107 = vmatprep.subr.mxu0 0.0
    %3108 = vmatpush2.msra.mxu0 0.0
    %3109 = vmatprep.subr.mxu0 0.0
    %3110 = vmatpush2.msra.mxu0 0.0
    %3111 = vmatprep.subr.mxu0 0.0
    %3112 = vmatpush2.msra.mxu0 0.0
    %3113 = vmatprep.subr.mxu0 0.0
    %3114 = vmatpush2.msra.mxu0 0.0
    %3115 = vmatprep.subr.mxu0 0.0
    %3116 = vmatpush2.msra.mxu0 0.0
    %3117 = vmatprep.subr.mxu0 0.0
    %3118 = vmatpush2.msra.mxu0 0.0
    %3119 = vmatprep.subr.mxu0 0.0
    %3120 = vmatpush2.msra.mxu0 0.0
    %3121 = vmatprep.subr.mxu0 0.0
    %3122 = vmatpush2.msra.mxu0 0.0
    %3123 = vmatprep.subr.mxu0 0.0
    %3124 = vmatpush2.msra.mxu0 0.0
    %3125 = vmatprep.subr.mxu0 0.0
    %3126 = vmatpush2.msra.mxu0 0.0
    %3127 = vmatprep.subr.mxu0 0.0
    %3128 = vmatpush2.msra.mxu0 0.0
    %3129 = vmatprep.subr.mxu0 0.0
    %3130 = vmatpush2.msra.mxu0 0.0
    %3131 = vmatprep.subr.mxu0 0.0
    %3132 = vmatpush2.msra.mxu0 0.0
    %3133 = vmatprep.mubr.f32.mxu0 0.0
    %3134 = vmatmul.mubr.f32.gmra.mxu0 %v2877
    %v3135 = vpop.f32.mrf.mxu0
    %v3136 = vadd.f32 0.0, %v3135
    %v3137 = vpop.f32.mrf.mxu0
    %3138 = vmatprep.mubr.f32.mxu0 0.0
    %3139 = vmatmul.mubr.f32.gmra.mxu0 %v2880
    %v3140 = vpop.f32.mrf.mxu0
    %v3141 = vadd.f32 0.0, %v3140
    %v3142 = vpop.f32.mrf.mxu0
    %3143 = vmatprep.mubr.f32.mxu0 0.0
    %3144 = vmatmul.mubr.f32.gmra.mxu0 %v2883
    %v3145 = vpop.f32.mrf.mxu0
    %v3146 = vadd.f32 0.0, %v3145
    %v3147 = vpop.f32.mrf.mxu0
    %3148 = vmatprep.mubr.f32.mxu0 0.0
    %3149 = vmatmul.mubr.f32.gmra.mxu0 %v2886
    %v3150 = vpop.f32.mrf.mxu0
    %v3151 = vadd.f32 0.0, %v3150
    %v3152 = vpop.f32.mrf.mxu0
    %3153 = vmatprep.mubr.f32.mxu0 0.0
    %3154 = vmatmul.mubr.f32.gmra.mxu0 %v2889
    %v3155 = vpop.f32.mrf.mxu0
    %v3156 = vadd.f32 0.0, %v3155
    %v3157 = vpop.f32.mrf.mxu0
    %3158 = vmatprep.mubr.f32.mxu0 0.0
    %3159 = vmatmul.mubr.f32.gmra.mxu0 %v2892
    %v3160 = vpop.f32.mrf.mxu0
    %v3161 = vadd.f32 0.0, %v3160
    %v3162 = vpop.f32.mrf.mxu0
    %3163 = vmatprep.mubr.f32.mxu0 0.0
    %3164 = vmatmul.mubr.f32.gmra.mxu0 %v2895
    %v3165 = vpop.f32.mrf.mxu0
    %v3166 = vadd.f32 0.0, %v3165
    %v3167 = vpop.f32.mrf.mxu0
    %3168 = vmatprep.mubr.f32.mxu0 0.0
    %3169 = vmatmul.mubr.f32.gmra.mxu0 %v2898
    %v3170 = vpop.f32.mrf.mxu0
    %v3171 = vadd.f32 0.0, %v3170
    %v3172 = vpop.f32.mrf.mxu0
    %3173 = vmatprep.mubr.f32.mxu0 0.0
    %3174 = vmatmul.mubr.f32.gmra.mxu0 %v2901
    %v3175 = vpop.f32.mrf.mxu0
    %v3176 = vadd.f32 0.0, %v3175
    %v3177 = vpop.f32.mrf.mxu0
    %3178 = vmatprep.mubr.f32.mxu0 0.0
    %3179 = vmatmul.mubr.f32.gmra.mxu0 %v2904
    %v3180 = vpop.f32.mrf.mxu0
    %v3181 = vadd.f32 0.0, %v3180
    %v3182 = vpop.f32.mrf.mxu0
    %3183 = vmatprep.mubr.f32.mxu0 0.0
    %3184 = vmatmul.mubr.f32.gmra.mxu0 %v2907
    %v3185 = vpop.f32.mrf.mxu0
    %v3186 = vadd.f32 0.0, %v3185
    %v3187 = vpop.f32.mrf.mxu0
    %3188 = vmatprep.mubr.f32.mxu0 0.0
    %3189 = vmatmul.mubr.f32.gmra.mxu0 %v2910
    %v3190 = vpop.f32.mrf.mxu0
    %v3191 = vadd.f32 0.0, %v3190
    %v3192 = vpop.f32.mrf.mxu0
    %3193 = vmatprep.mubr.f32.mxu0 0.0
    %3194 = vmatmul.mubr.f32.gmra.mxu0 %v2913
    %v3195 = vpop.f32.mrf.mxu0
    %v3196 = vadd.f32 0.0, %v3195
    %v3197 = vpop.f32.mrf.mxu0
    %3198 = vmatprep.mubr.f32.mxu0 0.0
    %3199 = vmatmul.mubr.f32.gmra.mxu0 %v2916
    %v3200 = vpop.f32.mrf.mxu0
    %v3201 = vadd.f32 0.0, %v3200
    %v3202 = vpop.f32.mrf.mxu0
    %3203 = vmatprep.mubr.f32.mxu0 0.0
    %3204 = vmatmul.mubr.f32.gmra.mxu0 %v2919
    %v3205 = vpop.f32.mrf.mxu0
    %v3206 = vadd.f32 0.0, %v3205
    %v3207 = vpop.f32.mrf.mxu0
    %3208 = vmatprep.mubr.f32.mxu0 0.0
    %3209 = vmatmul.mubr.f32.gmra.mxu0 %v2922
    %v3210 = vpop.f32.mrf.mxu0
    %v3211 = vadd.f32 0.0, %v3210
    %v3212 = vpop.f32.mrf.mxu0
    %3213 = vdwg.mxu0
    %3214 = vmatprep.subr.mxu0 0.0
    %3215 = vmatpush1.msra.mxu0 0.0
    %3216 = vmatprep.subr.mxu0 0.0
    %3217 = vmatpush1.msra.mxu0 0.0
    %3218 = vmatprep.subr.mxu0 0.0
    %3219 = vmatpush1.msra.mxu0 0.0
    %3220 = vmatprep.subr.mxu0 0.0
    %3221 = vmatpush1.msra.mxu0 0.0
    %3222 = vmatprep.subr.mxu0 0.0
    %3223 = vmatpush1.msra.mxu0 0.0
    %3224 = vmatprep.subr.mxu0 0.0
    %3225 = vmatpush1.msra.mxu0 0.0
    %3226 = vmatprep.subr.mxu0 0.0
    %3227 = vmatpush1.msra.mxu0 0.0
    %3228 = vmatprep.subr.mxu0 0.0
    %3229 = vmatpush1.msra.mxu0 0.0
    %3230 = vmatprep.subr.mxu0 0.0
    %3231 = vmatpush1.msra.mxu0 0.0
    %3232 = vmatprep.subr.mxu0 0.0
    %3233 = vmatpush1.msra.mxu0 0.0
    %3234 = vmatprep.subr.mxu0 0.0
    %3235 = vmatpush1.msra.mxu0 0.0
    %3236 = vmatprep.subr.mxu0 0.0
    %3237 = vmatpush1.msra.mxu0 0.0
    %3238 = vmatprep.subr.mxu0 0.0
    %3239 = vmatpush1.msra.mxu0 %v2868
    %3240 = vmatprep.subr.mxu0 0.0
    %3241 = vmatpush1.msra.mxu0 %v2863
    %3242 = vmatprep.subr.mxu0 0.0
    %3243 = vmatpush1.msra.mxu0 %v2858
    %3244 = vmatprep.subr.mxu0 0.0
    %3245 = vmatpush1.msra.mxu0 %v2853
    %3246 = vmatprep.subr.mxu0 0.0
    %3247 = vmatpush2.msra.mxu0 0.0
    %3248 = vmatprep.subr.mxu0 0.0
    %3249 = vmatpush2.msra.mxu0 0.0
    %3250 = vmatprep.subr.mxu0 0.0
    %3251 = vmatpush2.msra.mxu0 0.0
    %3252 = vmatprep.subr.mxu0 0.0
    %3253 = vmatpush2.msra.mxu0 0.0
    %3254 = vmatprep.subr.mxu0 0.0
    %3255 = vmatpush2.msra.mxu0 0.0
    %3256 = vmatprep.subr.mxu0 0.0
    %3257 = vmatpush2.msra.mxu0 0.0
    %3258 = vmatprep.subr.mxu0 0.0
    %3259 = vmatpush2.msra.mxu0 0.0
    %3260 = vmatprep.subr.mxu0 0.0
    %3261 = vmatpush2.msra.mxu0 0.0
    %3262 = vmatprep.subr.mxu0 0.0
    %3263 = vmatpush2.msra.mxu0 0.0
    %3264 = vmatprep.subr.mxu0 0.0
    %3265 = vmatpush2.msra.mxu0 0.0
    %3266 = vmatprep.subr.mxu0 0.0
    %3267 = vmatpush2.msra.mxu0 0.0
    %3268 = vmatprep.subr.mxu0 0.0
    %3269 = vmatpush2.msra.mxu0 0.0
    %3270 = vmatprep.subr.mxu0 0.0
    %3271 = vmatpush2.msra.mxu0 0.0
    %3272 = vmatprep.subr.mxu0 0.0
    %3273 = vmatpush2.msra.mxu0 0.0
    %3274 = vmatprep.subr.mxu0 0.0
    %3275 = vmatpush2.msra.mxu0 0.0
    %3276 = vmatprep.subr.mxu0 0.0
    %3277 = vmatpush2.msra.mxu0 0.0
    %3278 = vmatprep.mubr.f32.mxu0 0.0
    %3279 = vmatmul.mubr.f32.gmra.mxu0 %v2877
    %v3280 = vpop.f32.mrf.mxu0
    %v3281 = vadd.f32 0.0, %v3280
    %v3282 = vpop.f32.mrf.mxu0
    %3283 = vmatprep.mubr.f32.mxu0 0.0
    %3284 = vmatmul.mubr.f32.gmra.mxu0 %v2880
    %v3285 = vpop.f32.mrf.mxu0
    %v3286 = vadd.f32 0.0, %v3285
    %v3287 = vpop.f32.mrf.mxu0
    %3288 = vmatprep.mubr.f32.mxu0 0.0
    %3289 = vmatmul.mubr.f32.gmra.mxu0 %v2883
    %v3290 = vpop.f32.mrf.mxu0
    %v3291 = vadd.f32 0.0, %v3290
    %v3292 = vpop.f32.mrf.mxu0
    %3293 = vmatprep.mubr.f32.mxu0 0.0
    %3294 = vmatmul.mubr.f32.gmra.mxu0 %v2886
    %v3295 = vpop.f32.mrf.mxu0
    %v3296 = vadd.f32 0.0, %v3295
    %v3297 = vpop.f32.mrf.mxu0
    %3298 = vmatprep.mubr.f32.mxu0 0.0
    %3299 = vmatmul.mubr.f32.gmra.mxu0 %v2889
    %v3300 = vpop.f32.mrf.mxu0
    %v3301 = vadd.f32 0.0, %v3300
    %v3302 = vpop.f32.mrf.mxu0
    %3303 = vmatprep.mubr.f32.mxu0 0.0
    %3304 = vmatmul.mubr.f32.gmra.mxu0 %v2892
    %v3305 = vpop.f32.mrf.mxu0
    %v3306 = vadd.f32 0.0, %v3305
    %v3307 = vpop.f32.mrf.mxu0
    %3308 = vmatprep.mubr.f32.mxu0 0.0
    %3309 = vmatmul.mubr.f32.gmra.mxu0 %v2895
    %v3310 = vpop.f32.mrf.mxu0
    %v3311 = vadd.f32 0.0, %v3310
    %v3312 = vpop.f32.mrf.mxu0
    %3313 = vmatprep.mubr.f32.mxu0 0.0
    %3314 = vmatmul.mubr.f32.gmra.mxu0 %v2898
    %v3315 = vpop.f32.mrf.mxu0
    %v3316 = vadd.f32 0.0, %v3315
    %v3317 = vpop.f32.mrf.mxu0
    %3318 = vmatprep.mubr.f32.mxu0 0.0
    %3319 = vmatmul.mubr.f32.gmra.mxu0 %v2901
    %v3320 = vpop.f32.mrf.mxu0
    %v3321 = vadd.f32 0.0, %v3320
    %v3322 = vpop.f32.mrf.mxu0
    %3323 = vmatprep.mubr.f32.mxu0 0.0
    %3324 = vmatmul.mubr.f32.gmra.mxu0 %v2904
    %v3325 = vpop.f32.mrf.mxu0
    %v3326 = vadd.f32 0.0, %v3325
    %v3327 = vpop.f32.mrf.mxu0
    %3328 = vmatprep.mubr.f32.mxu0 0.0
    %3329 = vmatmul.mubr.f32.gmra.mxu0 %v2907
    %v3330 = vpop.f32.mrf.mxu0
    %v3331 = vadd.f32 0.0, %v3330
    %v3332 = vpop.f32.mrf.mxu0
    %3333 = vmatprep.mubr.f32.mxu0 0.0
    %3334 = vmatmul.mubr.f32.gmra.mxu0 %v2910
    %v3335 = vpop.f32.mrf.mxu0
    %v3336 = vadd.f32 0.0, %v3335
    %v3337 = vpop.f32.mrf.mxu0
    %3338 = vmatprep.mubr.f32.mxu0 0.0
    %3339 = vmatmul.mubr.f32.gmra.mxu0 %v2913
    %v3340 = vpop.f32.mrf.mxu0
    %v3341 = vadd.f32 0.0, %v3340
    %v3342 = vpop.f32.mrf.mxu0
    %3343 = vmatprep.mubr.f32.mxu0 0.0
    %3344 = vmatmul.mubr.f32.gmra.mxu0 %v2916
    %v3345 = vpop.f32.mrf.mxu0
    %v3346 = vadd.f32 0.0, %v3345
    %v3347 = vpop.f32.mrf.mxu0
    %3348 = vmatprep.mubr.f32.mxu0 0.0
    %3349 = vmatmul.mubr.f32.gmra.mxu0 %v2919
    %v3350 = vpop.f32.mrf.mxu0
    %v3351 = vadd.f32 0.0, %v3350
    %v3352 = vpop.f32.mrf.mxu0
    %3353 = vmatprep.mubr.f32.mxu0 0.0
    %3354 = vmatmul.mubr.f32.gmra.mxu0 %v2922
    %v3355 = vpop.f32.mrf.mxu0
    %v3356 = vadd.f32 0.0, %v3355
    %v3357 = vpop.f32.mrf.mxu0
    %3358 = vdwg.mxu0
    %v3359 = vld [vmem:[%s11] sm:$0xff]
    %v3360 = vld [vmem:[%s11 + $0x8] sm:$0xff]
    %v3361 = vld [vmem:[%s11 + $0x10] sm:$0xff]
    %v3362 = vld [vmem:[%s11 + $0x18] sm:$0xff]
    %v3363 = vld [vmem:[%s11 + $0x20] sm:$0xff]
    %v3364 = vld [vmem:[%s11 + $0x28] sm:$0xff]
    %v3365 = vld [vmem:[%s11 + $0x30] sm:$0xff]
    %v3366 = vld [vmem:[%s11 + $0x38] sm:$0xff]
    %v3367 = vld [vmem:[%s11 + $0x40] sm:$0xff]
    %v3368 = vld [vmem:[%s11 + $0x48] sm:$0xff]
    %v3369 = vld [vmem:[%s11 + $0x50] sm:$0xff]
    %v3370 = vld [vmem:[%s11 + $0x58] sm:$0xff]
    %v3371 = vld [vmem:[%s11 + $0x60] sm:$0xff]
    %v3372 = vld [vmem:[%s11 + $0x68] sm:$0xff]
    %v3373 = vld [vmem:[%s11 + $0x70] sm:$0xff]
    %v3374 = vld [vmem:[%s11 + $0x78] sm:$0xff]
    %v3375 = vld [vmem:[%s12] sm:$0xff]
    %v3376 = vld [vmem:[%s12 + $0x8] sm:$0xff]
    %v3377 = vld [vmem:[%s12 + $0x10] sm:$0xff]
    %v3378 = vld [vmem:[%s12 + $0x18] sm:$0xff]
    %v3379 = vld [vmem:[%s12 + $0x20] sm:$0xff]
    %v3380 = vld [vmem:[%s12 + $0x28] sm:$0xff]
    %v3381 = vld [vmem:[%s12 + $0x30] sm:$0xff]
    %v3382 = vld [vmem:[%s12 + $0x38] sm:$0xff]
    %v3383 = vld [vmem:[%s12 + $0x40] sm:$0xff]
    %v3384 = vld [vmem:[%s12 + $0x48] sm:$0xff]
    %v3385 = vld [vmem:[%s12 + $0x50] sm:$0xff]
    %v3386 = vld [vmem:[%s12 + $0x58] sm:$0xff]
    %v3387 = vld [vmem:[%s12 + $0x60] sm:$0xff]
    %v3388 = vld [vmem:[%s12 + $0x68] sm:$0xff]
    %v3389 = vld [vmem:[%s12 + $0x70] sm:$0xff]
    %v3390 = vld [vmem:[%s12 + $0x78] sm:$0xff]
    %v3391 = vsub.f32 %v2991, %v3359
    %v3392 = vsub.f32 %v2996, %v3360
    %v3393 = vsub.f32 %v3001, %v3361
    %v3394 = vsub.f32 %v3006, %v3362
    %v3395 = vsub.f32 %v3011, %v3363
    %v3396 = vsub.f32 %v3016, %v3364
    %v3397 = vsub.f32 %v3021, %v3365
    %v3398 = vsub.f32 %v3026, %v3366
    %v3399 = vsub.f32 %v3031, %v3367
    %v3400 = vsub.f32 %v3036, %v3368
    %v3401 = vsub.f32 %v3041, %v3369
    %v3402 = vsub.f32 %v3046, %v3370
    %v3403 = vsub.f32 %v3051, %v3371
    %v3404 = vsub.f32 %v3056, %v3372
    %v3405 = vsub.f32 %v3061, %v3373
    %v3406 = vsub.f32 %v3066, %v3374
    %v3407 = vmul.f32 %v3391, %v3391
    %v3408 = vmul.f32 %v3392, %v3392
    %v3409 = vmul.f32 %v3393, %v3393
    %v3410 = vmul.f32 %v3394, %v3394
    %v3411 = vmul.f32 %v3395, %v3395
    %v3412 = vmul.f32 %v3396, %v3396
    %v3413 = vmul.f32 %v3397, %v3397
    %v3414 = vmul.f32 %v3398, %v3398
    %v3415 = vmul.f32 %v3399, %v3399
    %v3416 = vmul.f32 %v3400, %v3400
    %v3417 = vmul.f32 %v3401, %v3401
    %v3418 = vmul.f32 %v3402, %v3402
    %v3419 = vmul.f32 %v3403, %v3403
    %v3420 = vmul.f32 %v3404, %v3404
    %v3421 = vmul.f32 %v3405, %v3405
    %v3422 = vmul.f32 %v3406, %v3406
    %3423 = vmatprep.subr.mxu0 0.0
    %3424 = vmatpush1.xpose.msra.mxu0 %v3422
    %3425 = vmatprep.subr.mxu0 0.0
    %3426 = vmatpush1.xpose.msra.mxu0 %v3421
    %3427 = vmatprep.subr.mxu0 0.0
    %3428 = vmatpush1.xpose.msra.mxu0 %v3420
    %3429 = vmatprep.subr.mxu0 0.0
    %3430 = vmatpush1.xpose.msra.mxu0 %v3419
    %3431 = vmatprep.subr.mxu0 0.0
    %3432 = vmatpush1.xpose.msra.mxu0 %v3418
    %3433 = vmatprep.subr.mxu0 0.0
    %3434 = vmatpush1.xpose.msra.mxu0 %v3417
    %3435 = vmatprep.subr.mxu0 0.0
    %3436 = vmatpush1.xpose.msra.mxu0 %v3416
    %3437 = vmatprep.subr.mxu0 0.0
    %3438 = vmatpush1.xpose.msra.mxu0 %v3415
    %3439 = vmatprep.subr.mxu0 0.0
    %3440 = vmatpush1.xpose.msra.mxu0 %v3414
    %3441 = vmatprep.subr.mxu0 0.0
    %3442 = vmatpush1.xpose.msra.mxu0 %v3413
    %3443 = vmatprep.subr.mxu0 0.0
    %3444 = vmatpush1.xpose.msra.mxu0 %v3412
    %3445 = vmatprep.subr.mxu0 0.0
    %3446 = vmatpush1.xpose.msra.mxu0 %v3411
    %3447 = vmatprep.subr.mxu0 0.0
    %3448 = vmatpush1.xpose.msra.mxu0 %v3410
    %3449 = vmatprep.subr.mxu0 0.0
    %3450 = vmatpush1.xpose.msra.mxu0 %v3409
    %3451 = vmatprep.subr.mxu0 0.0
    %3452 = vmatpush1.xpose.msra.mxu0 %v3408
    %3453 = vmatprep.subr.mxu0 0.0
    %3454 = vmatpush1.xpose.msra.mxu0 %v3407
    %3455 = vmatprep.subr.mxu0 0.0
    %3456 = vmatpush2.xpose.msra.mxu0 0.0
    %3457 = vmatprep.subr.mxu0 0.0
    %3458 = vmatpush2.xpose.msra.mxu0 0.0
    %3459 = vmatprep.subr.mxu0 0.0
    %3460 = vmatpush2.xpose.msra.mxu0 0.0
    %3461 = vmatprep.subr.mxu0 0.0
    %3462 = vmatpush2.xpose.msra.mxu0 0.0
    %3463 = vmatprep.subr.mxu0 0.0
    %3464 = vmatpush2.xpose.msra.mxu0 0.0
    %3465 = vmatprep.subr.mxu0 0.0
    %3466 = vmatpush2.xpose.msra.mxu0 0.0
    %3467 = vmatprep.subr.mxu0 0.0
    %3468 = vmatpush2.xpose.msra.mxu0 0.0
    %3469 = vmatprep.subr.mxu0 0.0
    %3470 = vmatpush2.xpose.msra.mxu0 0.0
    %3471 = vmatprep.subr.mxu0 0.0
    %3472 = vmatpush2.xpose.msra.mxu0 0.0
    %3473 = vmatprep.subr.mxu0 0.0
    %3474 = vmatpush2.xpose.msra.mxu0 0.0
    %3475 = vmatprep.subr.mxu0 0.0
    %3476 = vmatpush2.xpose.msra.mxu0 0.0
    %3477 = vmatprep.subr.mxu0 0.0
    %3478 = vmatpush2.xpose.msra.mxu0 0.0
    %3479 = vmatprep.subr.mxu0 0.0
    %3480 = vmatpush2.xpose.msra.mxu0 0.0
    %3481 = vmatprep.subr.mxu0 0.0
    %3482 = vmatpush2.xpose.msra.mxu0 0.0
    %3483 = vmatprep.subr.mxu0 0.0
    %3484 = vmatpush2.xpose.msra.mxu0 0.0
    %3485 = vmatprep.subr.mxu0 0.0
    %3486 = vmatpush2.xpose.msra.mxu0 0.0
    %3487 = vmatprep.mubr.f32.mxu0 0.0
    %3488 = vmatmul.mubr.f32.gmra.mxu0 1.0
    %v3489 = vpop.f32.mrf.mxu0
    %v3490 = vadd.f32 0.0, %v3489
    %v3491 = vpop.f32.mrf.mxu0
    %3492 = vdwg.mxu0
    %v3493 = vrsqrt.pop %v3490
    %v3494 = vmul.f32 %v3490, %v3493
    %vm3495 = vcmp.eq.f32.partialorder %v3490, inf
    %v3496 = vsel %vm3495, %v3490, %v3494
    %vm3497 = vcmp.eq.f32.partialorder %v3490, 0.0
    %v3498 = vand.u32 %v3490, 2147483648
    %v3499 = vsel %vm3497, %v3498, %v3496
    %v3500 = vmul.f32 %v3499, 0.1
    %v3501 = vsub.f32 %v3136, %v3375
    %v3502 = vsub.f32 %v3141, %v3376
    %v3503 = vsub.f32 %v3146, %v3377
    %v3504 = vsub.f32 %v3151, %v3378
    %v3505 = vsub.f32 %v3156, %v3379
    %v3506 = vsub.f32 %v3161, %v3380
    %v3507 = vsub.f32 %v3166, %v3381
    %v3508 = vsub.f32 %v3171, %v3382
    %v3509 = vsub.f32 %v3176, %v3383
    %v3510 = vsub.f32 %v3181, %v3384
    %v3511 = vsub.f32 %v3186, %v3385
    %v3512 = vsub.f32 %v3191, %v3386
    %v3513 = vsub.f32 %v3196, %v3387
    %v3514 = vsub.f32 %v3201, %v3388
    %v3515 = vsub.f32 %v3206, %v3389
    %v3516 = vsub.f32 %v3211, %v3390
    %v3517 = vmul.f32 %v3501, %v3501
    %v3518 = vmul.f32 %v3502, %v3502
    %v3519 = vmul.f32 %v3503, %v3503
    %v3520 = vmul.f32 %v3504, %v3504
    %v3521 = vmul.f32 %v3505, %v3505
    %v3522 = vmul.f32 %v3506, %v3506
    %v3523 = vmul.f32 %v3507, %v3507
    %v3524 = vmul.f32 %v3508, %v3508
    %v3525 = vmul.f32 %v3509, %v3509
    %v3526 = vmul.f32 %v3510, %v3510
    %v3527 = vmul.f32 %v3511, %v3511
    %v3528 = vmul.f32 %v3512, %v3512
    %v3529 = vmul.f32 %v3513, %v3513
    %v3530 = vmul.f32 %v3514, %v3514
    %v3531 = vmul.f32 %v3515, %v3515
    %v3532 = vmul.f32 %v3516, %v3516
    %3533 = vmatprep.subr.mxu0 0.0
    %3534 = vmatpush1.xpose.msra.mxu0 %v3532
    %3535 = vmatprep.subr.mxu0 0.0
    %3536 = vmatpush1.xpose.msra.mxu0 %v3531
    %3537 = vmatprep.subr.mxu0 0.0
    %3538 = vmatpush1.xpose.msra.mxu0 %v3530
    %3539 = vmatprep.subr.mxu0 0.0
    %3540 = vmatpush1.xpose.msra.mxu0 %v3529
    %3541 = vmatprep.subr.mxu0 0.0
    %3542 = vmatpush1.xpose.msra.mxu0 %v3528
    %3543 = vmatprep.subr.mxu0 0.0
    %3544 = vmatpush1.xpose.msra.mxu0 %v3527
    %3545 = vmatprep.subr.mxu0 0.0
    %3546 = vmatpush1.xpose.msra.mxu0 %v3526
    %3547 = vmatprep.subr.mxu0 0.0
    %3548 = vmatpush1.xpose.msra.mxu0 %v3525
    %3549 = vmatprep.subr.mxu0 0.0
    %3550 = vmatpush1.xpose.msra.mxu0 %v3524
    %3551 = vmatprep.subr.mxu0 0.0
    %3552 = vmatpush1.xpose.msra.mxu0 %v3523
    %3553 = vmatprep.subr.mxu0 0.0
    %3554 = vmatpush1.xpose.msra.mxu0 %v3522
    %3555 = vmatprep.subr.mxu0 0.0
    %3556 = vmatpush1.xpose.msra.mxu0 %v3521
    %3557 = vmatprep.subr.mxu0 0.0
    %3558 = vmatpush1.xpose.msra.mxu0 %v3520
    %3559 = vmatprep.subr.mxu0 0.0
    %3560 = vmatpush1.xpose.msra.mxu0 %v3519
    %3561 = vmatprep.subr.mxu0 0.0
    %3562 = vmatpush1.xpose.msra.mxu0 %v3518
    %3563 = vmatprep.subr.mxu0 0.0
    %3564 = vmatpush1.xpose.msra.mxu0 %v3517
    %3565 = vmatprep.subr.mxu0 0.0
    %3566 = vmatpush2.xpose.msra.mxu0 0.0
    %3567 = vmatprep.subr.mxu0 0.0
    %3568 = vmatpush2.xpose.msra.mxu0 0.0
    %3569 = vmatprep.subr.mxu0 0.0
    %3570 = vmatpush2.xpose.msra.mxu0 0.0
    %3571 = vmatprep.subr.mxu0 0.0
    %3572 = vmatpush2.xpose.msra.mxu0 0.0
    %3573 = vmatprep.subr.mxu0 0.0
    %3574 = vmatpush2.xpose.msra.mxu0 0.0
    %3575 = vmatprep.subr.mxu0 0.0
    %3576 = vmatpush2.xpose.msra.mxu0 0.0
    %3577 = vmatprep.subr.mxu0 0.0
    %3578 = vmatpush2.xpose.msra.mxu0 0.0
    %3579 = vmatprep.subr.mxu0 0.0
    %3580 = vmatpush2.xpose.msra.mxu0 0.0
    %3581 = vmatprep.subr.mxu0 0.0
    %3582 = vmatpush2.xpose.msra.mxu0 0.0
    %3583 = vmatprep.subr.mxu0 0.0
    %3584 = vmatpush2.xpose.msra.mxu0 0.0
    %3585 = vmatprep.subr.mxu0 0.0
    %3586 = vmatpush2.xpose.msra.mxu0 0.0
    %3587 = vmatprep.subr.mxu0 0.0
    %3588 = vmatpush2.xpose.msra.mxu0 0.0
    %3589 = vmatprep.subr.mxu0 0.0
    %3590 = vmatpush2.xpose.msra.mxu0 0.0
    %3591 = vmatprep.subr.mxu0 0.0
    %3592 = vmatpush2.xpose.msra.mxu0 0.0
    %3593 = vmatprep.subr.mxu0 0.0
    %3594 = vmatpush2.xpose.msra.mxu0 0.0
    %3595 = vmatprep.subr.mxu0 0.0
    %3596 = vmatpush2.xpose.msra.mxu0 0.0
    %3597 = vmatprep.mubr.f32.mxu0 0.0
    %3598 = vmatmul.mubr.f32.gmra.mxu0 1.0
    %v3599 = vpop.f32.mrf.mxu0
    %v3600 = vadd.f32 0.0, %v3599
    %v3601 = vpop.f32.mrf.mxu0
    %3602 = vdwg.mxu0
    %v3603 = vrsqrt.pop %v3600
    %v3604 = vmul.f32 %v3600, %v3603
    %vm3605 = vcmp.eq.f32.partialorder %v3600, inf
    %v3606 = vsel %vm3605, %v3600, %v3604
    %vm3607 = vcmp.eq.f32.partialorder %v3600, 0.0
    %v3608 = vand.u32 %v3600, 2147483648
    %v3609 = vsel %vm3607, %v3608, %v3606
    %v3610 = vmul.f32 %v3609, 0.8
    %v3611 = vadd.f32 %v3500, %v3610
    %v3612 = vsub.f32 %v3281, %v3375
    %v3613 = vsub.f32 %v3286, %v3376
    %v3614 = vsub.f32 %v3291, %v3377
    %v3615 = vsub.f32 %v3296, %v3378
    %v3616 = vsub.f32 %v3301, %v3379
    %v3617 = vsub.f32 %v3306, %v3380
    %v3618 = vsub.f32 %v3311, %v3381
    %v3619 = vsub.f32 %v3316, %v3382
    %v3620 = vsub.f32 %v3321, %v3383
    %v3621 = vsub.f32 %v3326, %v3384
    %v3622 = vsub.f32 %v3331, %v3385
    %v3623 = vsub.f32 %v3336, %v3386
    %v3624 = vsub.f32 %v3341, %v3387
    %v3625 = vsub.f32 %v3346, %v3388
    %v3626 = vsub.f32 %v3351, %v3389
    %v3627 = vsub.f32 %v3356, %v3390
    %v3628 = vmul.f32 %v3612, %v3612
    %v3629 = vmul.f32 %v3613, %v3613
    %v3630 = vmul.f32 %v3614, %v3614
    %v3631 = vmul.f32 %v3615, %v3615
    %v3632 = vmul.f32 %v3616, %v3616
    %v3633 = vmul.f32 %v3617, %v3617
    %v3634 = vmul.f32 %v3618, %v3618
    %v3635 = vmul.f32 %v3619, %v3619
    %v3636 = vmul.f32 %v3620, %v3620
    %v3637 = vmul.f32 %v3621, %v3621
    %v3638 = vmul.f32 %v3622, %v3622
    %v3639 = vmul.f32 %v3623, %v3623
    %v3640 = vmul.f32 %v3624, %v3624
    %v3641 = vmul.f32 %v3625, %v3625
    %v3642 = vmul.f32 %v3626, %v3626
    %v3643 = vmul.f32 %v3627, %v3627
    %3644 = vmatprep.subr.mxu0 0.0
    %3645 = vmatpush1.xpose.msra.mxu0 %v3643
    %3646 = vmatprep.subr.mxu0 0.0
    %3647 = vmatpush1.xpose.msra.mxu0 %v3642
    %3648 = vmatprep.subr.mxu0 0.0
    %3649 = vmatpush1.xpose.msra.mxu0 %v3641
    %3650 = vmatprep.subr.mxu0 0.0
    %3651 = vmatpush1.xpose.msra.mxu0 %v3640
    %3652 = vmatprep.subr.mxu0 0.0
    %3653 = vmatpush1.xpose.msra.mxu0 %v3639
    %3654 = vmatprep.subr.mxu0 0.0
    %3655 = vmatpush1.xpose.msra.mxu0 %v3638
    %3656 = vmatprep.subr.mxu0 0.0
    %3657 = vmatpush1.xpose.msra.mxu0 %v3637
    %3658 = vmatprep.subr.mxu0 0.0
    %3659 = vmatpush1.xpose.msra.mxu0 %v3636
    %3660 = vmatprep.subr.mxu0 0.0
    %3661 = vmatpush1.xpose.msra.mxu0 %v3635
    %3662 = vmatprep.subr.mxu0 0.0
    %3663 = vmatpush1.xpose.msra.mxu0 %v3634
    %3664 = vmatprep.subr.mxu0 0.0
    %3665 = vmatpush1.xpose.msra.mxu0 %v3633
    %3666 = vmatprep.subr.mxu0 0.0
    %3667 = vmatpush1.xpose.msra.mxu0 %v3632
    %3668 = vmatprep.subr.mxu0 0.0
    %3669 = vmatpush1.xpose.msra.mxu0 %v3631
    %3670 = vmatprep.subr.mxu0 0.0
    %3671 = vmatpush1.xpose.msra.mxu0 %v3630
    %3672 = vmatprep.subr.mxu0 0.0
    %3673 = vmatpush1.xpose.msra.mxu0 %v3629
    %3674 = vmatprep.subr.mxu0 0.0
    %3675 = vmatpush1.xpose.msra.mxu0 %v3628
    %3676 = vmatprep.subr.mxu0 0.0
    %3677 = vmatpush2.xpose.msra.mxu0 0.0
    %3678 = vmatprep.subr.mxu0 0.0
    %3679 = vmatpush2.xpose.msra.mxu0 0.0
    %3680 = vmatprep.subr.mxu0 0.0
    %3681 = vmatpush2.xpose.msra.mxu0 0.0
    %3682 = vmatprep.subr.mxu0 0.0
    %3683 = vmatpush2.xpose.msra.mxu0 0.0
    %3684 = vmatprep.subr.mxu0 0.0
    %3685 = vmatpush2.xpose.msra.mxu0 0.0
    %3686 = vmatprep.subr.mxu0 0.0
    %3687 = vmatpush2.xpose.msra.mxu0 0.0
    %3688 = vmatprep.subr.mxu0 0.0
    %3689 = vmatpush2.xpose.msra.mxu0 0.0
    %3690 = vmatprep.subr.mxu0 0.0
    %3691 = vmatpush2.xpose.msra.mxu0 0.0
    %3692 = vmatprep.subr.mxu0 0.0
    %3693 = vmatpush2.xpose.msra.mxu0 0.0
    %3694 = vmatprep.subr.mxu0 0.0
    %3695 = vmatpush2.xpose.msra.mxu0 0.0
    %3696 = vmatprep.subr.mxu0 0.0
    %3697 = vmatpush2.xpose.msra.mxu0 0.0
    %3698 = vmatprep.subr.mxu0 0.0
    %3699 = vmatpush2.xpose.msra.mxu0 0.0
    %3700 = vmatprep.subr.mxu0 0.0
    %3701 = vmatpush2.xpose.msra.mxu0 0.0
    %3702 = vmatprep.subr.mxu0 0.0
    %3703 = vmatpush2.xpose.msra.mxu0 0.0
    %3704 = vmatprep.subr.mxu0 0.0
    %3705 = vmatpush2.xpose.msra.mxu0 0.0
    %3706 = vmatprep.subr.mxu0 0.0
    %3707 = vmatpush2.xpose.msra.mxu0 0.0
    %3708 = vmatprep.mubr.f32.mxu0 0.0
    %3709 = vmatmul.mubr.f32.gmra.mxu0 1.0
    %v3710 = vpop.f32.mrf.mxu0
    %v3711 = vadd.f32 0.0, %v3710
    %v3712 = vpop.f32.mrf.mxu0
    %3713 = vdwg.mxu0
    %v3714 = vrsqrt.pop %v3711
    %v3715 = vmul.f32 %v3711, %v3714
    %vm3716 = vcmp.eq.f32.partialorder %v3711, inf
    %v3717 = vsel %vm3716, %v3711, %v3715
    %vm3718 = vcmp.eq.f32.partialorder %v3711, 0.0
    %v3719 = vand.u32 %v3711, 2147483648
    %v3720 = vsel %vm3718, %v3719, %v3717
    %v3721 = vmul.f32 %v3720, 0.1
    %v3722 = vadd.f32 %v3611, %v3721
    %3723 = vst [vmem:[%s13] sm:$0x1] %v3722
    // Predicated region
    $region66: #{ucdm_forward.1} parent=1 // pred_check
      _
    $region67: #{ucdm_forward.1} parent=1 // pred_check_branch
      %3725 = sbr.rel (0) target = $region69
    $region68: #{ucdm_forward.1} parent=1 // pred_region
      _
    $region69: #{ucdm_forward.1} parent=1 // pred_fallthru
      _
    // Predicated region
    $region70: #{ucdm_forward.1} parent=1 // pred_check
      _
    $region71: #{ucdm_forward.1} parent=1 // pred_check_branch
      %3727 = sbr.rel (0) target = $region73
    $region72: #{ucdm_forward.1} parent=1 // pred_region
      _
    $region73: #{ucdm_forward.1} parent=1 // pred_fallthru
      _
    %3728 = vsyncpa [#allocation3], 1
    %3729 = vsyncpa [#allocation5], 1

</llo_original>
